<compile_context>
chip_gen: v7x
topology: tpu7x:2x2x1
jax: 0.10.0
libtpu: 0.0.40
codegen_flags: <defaults>
</compile_context>

<pallas_src>
import functools

import jax
import jax.numpy as jnp
from jax.experimental import pallas as pl
from jax.experimental.pallas import tpu as pltpu


def _round_up(x, m):
    return ((x + m - 1) // m) * m


# ----------------------------- Pallas kernel -------------------------------

def _fused_forward_kernel(p_ref, ws_ref, bs_ref, wh_ref, bh_ref, wf_ref, bf_ref,
                          o_ref, acc_ref, *, inv_hw, act_bf16):
    """Grid = (batch, HW tiles).  Per step: stem matmul+SiLU -> head matmul+SiLU ->
    GAP partial sum (on the MXU).  Last HW step: 1/HW scale + classifier matmul."""
    t = pl.program_id(1)                                   # HW-reduction axis

    @pl.when(t == 0)
    def _():
        acc_ref[...] = jnp.zeros_like(acc_ref)

    x = p_ref[...]                                         # (1, thw, Kp) bf16
    thw, kp = x.shape[1], x.shape[2]
    x2 = x.reshape(thw, kp)

    # conv_stem (im2col matmul) + folded BN + SiLU; f32 accumulation on the MXU.
    # sigmoid = exp (EUP) + approximate reciprocal (EUP) -> keeps the VALU slot free.
    h = jnp.dot(x2, ws_ref[...], preferred_element_type=jnp.float32)
    h = h + bs_ref[...]
    h = h * pl.reciprocal(1.0 + jnp.exp(-h), approx=True)

    # conv_head 1x1 -> 1280 + folded BN + SiLU; intermediate never leaves VMEM.
    h = jnp.dot(h.astype(jnp.bfloat16), wh_ref[...],
                preferred_element_type=jnp.float32)        # (thw, 1280) f32
    if act_bf16:
        # v6e/v7x: bf16 VPU/EUP -> half the elementwise work and half the VMEM footprint
        # of the dominant (thw, 1280) activation.  GAP accumulation below stays f32.
        hb = (h + bh_ref[...]).astype(jnp.bfloat16)
        hb = hb * (1.0 / (1.0 + jnp.exp(-hb)))
    else:
        # v5e-class (no bf16 VPU/EUP): keep the activation in f32.
        hf = h + bh_ref[...]
        hf = hf * pl.reciprocal(1.0 + jnp.exp(-hf), approx=True)
        hb = hf.astype(jnp.bfloat16)

    # Global-average-pool partial sum moved onto the (otherwise idle, K=32) MXU:
    # (1, thw) @ (thw, 1280) -> (1, 1280) with f32 accumulation.
    ones = jnp.ones((1, thw), jnp.bfloat16)
    acc_ref[...] += jnp.dot(ones, hb, preferred_element_type=jnp.float32)

    @pl.when(t == pl.num_programs(1) - 1)
    def _():
        feats = (acc_ref[...] * inv_hw).astype(jnp.bfloat16)        # (1, 1280)
        logits = jnp.dot(feats, wf_ref[...],
                         preferred_element_type=jnp.float32)        # (1, Npad)
        o_ref[...] = (logits + bf_ref[...]).reshape(o_ref.shape)


def _pick_hw_tile(hw, cap):
    """Largest multiple-of-16 divisor of hw that is <= cap (bf16 sublane packing);
    fall back to multiple-of-8, then the full extent."""
    for step in (16, 8):
        best = 0
        t = step
        limit = min(cap, hw)
        while t <= limit:
            if hw % t == 0:
                best = t
            t += step
        if best:
            return best
    return hw


def _device_tuning():
    """(row_cap, act_bf16) per TPU generation.
    v5e-class: 16 MiB default scoped VMEM + no bf16 VPU/EUP -> smaller tile, f32 SiLU."""
    try:
        kind = jax.devices()[0].device_kind.lower()
    except Exception:
        kind = ""
    old = any(s in kind for s in ("v2", "v3", "v4", "v5"))
    return (896, False) if old else (1792, True)


def fused_backbone_classifier(patches, ws, bs, wh, bh, wf, bf, *, row_cap, act_bf16):
    """patches: (B, HW, Kp) bf16. Returns lane-padded logits (B, Npad) float32."""
    B, HW, Kp = patches.shape
    Cmid = ws.shape[1]
    Cfeat = wh.shape[1]
    Npad = wf.shape[1]

    thw = _pick_hw_tile(HW, row_cap)
    grid = (B, HW // thw)
    kernel = functools.partial(_fused_forward_kernel, inv_hw=1.0 / HW, act_bf16=act_bf16)

    out = pl.pallas_call(
        kernel,
        out_shape=jax.ShapeDtypeStruct((B, 1, Npad), jnp.float32),
        grid=grid,
        in_specs=[
            pl.BlockSpec((1, thw, Kp), lambda b, t: (b, t, 0)),   # patch tile
            pl.BlockSpec((Kp, Cmid), lambda b, t: (0, 0)),        # stem weight (resident)
            pl.BlockSpec((1, Cmid), lambda b, t: (0, 0)),         # stem bias
            pl.BlockSpec((Cmid, Cfeat), lambda b, t: (0, 0)),     # head weight (resident)
            pl.BlockSpec((1, Cfeat), lambda b, t: (0, 0)),        # head bias
            pl.BlockSpec((Cfeat, Npad), lambda b, t: (0, 0)),     # fc weight (resident)
            pl.BlockSpec((1, Npad), lambda b, t: (0, 0)),         # fc bias
        ],
        out_specs=pl.BlockSpec((1, 1, Npad), lambda b, t: (b, 0, 0)),
        scratch_shapes=[pltpu.VMEM((1, Cfeat), jnp.float32)],     # GAP accumulator
        compiler_params=pltpu.CompilerParams(
            dimension_semantics=("parallel", "arbitrary"),        # batch across cores, HW reduce
            vmem_limit_bytes=32 * 1024 * 1024),
    )(patches, ws, bs, wh, bh, wf, bf)
    return out[:, 0, :]


# ------------------------------- JAX glue ----------------------------------

def fold_bn(w_kc, b_c, gamma, beta, mean, var, eps=1e-5):
    """Fold BatchNorm into a (K, Cout) weight matrix / bias vector."""
    scale = gamma / jnp.sqrt(var + eps)
    return w_kc * scale[None, :], (b_c - mean) * scale + beta


def init_params(key, num_classes=53):
    k = jax.random.split(key, 4)
    p = {}
    # conv_stem: PyTorch layout (Cout=32, Cin=3, 3, 3), bias=False
    p["stem_w"] = 0.05 * jax.random.normal(k[0], (32, 3, 3, 3), jnp.float32)
    p["bn1_gamma"] = jnp.ones((32,), jnp.float32)
    p["bn1_beta"] = jnp.zeros((32,), jnp.float32)
    p["bn1_mean"] = jnp.zeros((32,), jnp.float32)
    p["bn1_var"] = jnp.ones((32,), jnp.float32)
    # conv_head: (Cout=1280, Cin=32, 1, 1), bias=False
    p["head_w"] = 0.05 * jax.random.normal(k[1], (1280, 32, 1, 1), jnp.float32)
    p["bn2_gamma"] = jnp.ones((1280,), jnp.float32)
    p["bn2_beta"] = jnp.zeros((1280,), jnp.float32)
    p["bn2_mean"] = jnp.zeros((1280,), jnp.float32)
    p["bn2_var"] = jnp.ones((1280,), jnp.float32)
    # classifier Linear(1280 -> num_classes): PyTorch layout (out, in) + bias
    p["fc_w"] = 0.05 * jax.random.normal(k[2], (num_classes, 1280), jnp.float32)
    p["fc_b"] = 0.01 * jax.random.normal(k[3], (num_classes,), jnp.float32)
    return p


def prepare_params(params, num_classes=53, lane_pad=128):
    """One-time inference prep: BN fold, transpose to (K, Cout), K/N padding, bf16 cast."""
    cout, cin, kh, kw = params["stem_w"].shape                       # (32, 3, 3, 3)
    # (Cout,Cin,kh,kw) -> (Cin,kh,kw,Cout) -> (Cin*kh*kw, Cout): channel-slowest ordering,
    # matching lax.conv_general_dilated_patches' (C, kh, kw) patch-feature layout.
    w_stem = jnp.transpose(params["stem_w"], (1, 2, 3, 0)).reshape(cin * kh * kw, cout)
    w_stem, b_stem = fold_bn(w_stem, jnp.zeros((cout,), jnp.float32),
                             params["bn1_gamma"], params["bn1_beta"],
                             params["bn1_mean"], params["bn1_var"])
    kp = _round_up(cin * kh * kw, 8)                                 # 27 -> 32
    w_stem = jnp.pad(w_stem, ((0, kp - cin * kh * kw), (0, 0)))

    cfeat = params["head_w"].shape[0]                                # 1280
    w_head = jnp.transpose(params["head_w"].reshape(cfeat, cout), (1, 0))   # (32, 1280)
    w_head, b_head = fold_bn(w_head, jnp.zeros((cfeat,), jnp.float32),
                             params["bn2_gamma"], params["bn2_beta"],
                             params["bn2_mean"], params["bn2_var"])

    npad = _round_up(num_classes, lane_pad)                          # 53 -> 128 (lane-dense)
    w_fc = jnp.pad(params["fc_w"].T, ((0, 0), (0, npad - num_classes)))
    b_fc = jnp.pad(params["fc_b"], (0, npad - num_classes))

    return {
        "w_stem": w_stem.astype(jnp.bfloat16),
        "b_stem": b_stem.reshape(1, -1).astype(jnp.float32),
        "w_head": w_head.astype(jnp.bfloat16),
        "b_head": b_head.reshape(1, -1).astype(jnp.float32),
        "w_fc": w_fc.astype(jnp.bfloat16),
        "b_fc": b_fc.reshape(1, -1).astype(jnp.float32),
    }


def simple_card_classifier_forward(prep, x_nchw, num_classes=53):
    # NCHW -> NHWC
    x = jnp.transpose(x_nchw.astype(jnp.float32), (0, 2, 3, 1))
    B = x.shape[0]

    # conv_stem 3x3 s2 p1 patch extraction as a single fused XLA op.
    patches = jax.lax.conv_general_dilated_patches(
        x, filter_shape=(3, 3), window_strides=(2, 2),
        padding=((1, 1), (1, 1)),
        dimension_numbers=("NHWC", "HWIO", "NHWC"))          # (B, Ho, Wo, Cin*3*3)
    Ho, Wo, K = patches.shape[1], patches.shape[2], patches.shape[3]
    Kp = prep["w_stem"].shape[0]

    patches = patches.reshape(B, Ho * Wo, K)
    # TODO(synk): patch minor dim (32, bf16) is lane-sparse in HBM tiling; pack 4 pixels per
    # 128-lane row with a block-diagonal stem weight if profiling ever shows DMA-bound.
    patches = jnp.pad(patches, ((0, 0), (0, 0), (0, Kp - K))).astype(jnp.bfloat16)

    # TODO(synk): efficientnet_b0 MBConv block stack omitted (no pretrained weights in-script).

    row_cap, act_bf16 = _device_tuning()
    logits_pad = fused_backbone_classifier(
        patches, prep["w_stem"], prep["b_stem"], prep["w_head"], prep["b_head"],
        prep["w_fc"], prep["b_fc"], row_cap=row_cap, act_bf16=act_bf16)   # (B, 128) f32
    return logits_pad[:, :num_classes]                        # (B, num_classes)


def reference_forward(params, x_nchw, num_classes=53, eps=1e-5):
    """Pure-JAX f32 reference with the same structure (stem -> head -> GAP -> FC)."""
    x = jnp.transpose(x_nchw.astype(jnp.float32), (0, 2, 3, 1))
    w = jnp.transpose(params["stem_w"], (2, 3, 1, 0))                # HWIO
    h = jax.lax.conv_general_dilated(
        x, w, (2, 2), ((1, 1), (1, 1)),
        dimension_numbers=("NHWC", "HWIO", "NHWC"))
    s1 = params["bn1_gamma"] / jnp.sqrt(params["bn1_var"] + eps)
    h = (h - params["bn1_mean"]) * s1 + params["bn1_beta"]
    h = h * jax.nn.sigmoid(h)
    wh = params["head_w"].reshape(params["head_w"].shape[0], -1).T   # (32, 1280)
    h = h @ wh
    s2 = params["bn2_gamma"] / jnp.sqrt(params["bn2_var"] + eps)
    h = (h - params["bn2_mean"]) * s2 + params["bn2_beta"]
    h = h * jax.nn.sigmoid(h)
    feats = h.mean(axis=(1, 2))                                      # (B, 1280)
    return feats @ params["fc_w"].T + params["fc_b"]


if __name__ == "__main__":
    key = jax.random.PRNGKey(0)
    k_param, k_x = jax.random.split(key)
    params = init_params(k_param, num_classes=53)
    prep = prepare_params(params, num_classes=53)

    # Small NCHW image batch consistent with the module's conv input convention.
    x = jax.random.normal(k_x, (2, 3, 32, 32), jnp.float32)

    fwd = jax.jit(functools.partial(simple_card_classifier_forward, num_classes=53))
    out = jax.block_until_ready(fwd(prep, x))
    assert out.shape == (2, 53) and out.dtype == jnp.float32

    # Correctness check vs. pure-JAX f32 reference (kernel uses bf16 weights/activations and
    # approximate reciprocal -> loose tolerance).
    ref = jax.block_until_ready(reference_forward(params, x, num_classes=53))
    err = float(jnp.max(jnp.abs(out - ref)))
    assert err < 1e-1, f"kernel vs reference max |err| = {err}"
    print("KERNEL_OK")
</pallas_src>

<mosaic_0001>
module attributes {stable_mosaic.version = 11 : i64} {
  func.func @_fused_forward_kernel(%arg0: i32, %arg1: i32, %arg2: memref<1x256x32xbf16, #tpu.memory_space<vmem>>, %arg3: memref<32x32xbf16, #tpu.memory_space<vmem>>, %arg4: memref<1x32xf32, #tpu.memory_space<vmem>>, %arg5: memref<32x1280xbf16, #tpu.memory_space<vmem>>, %arg6: memref<1x1280xf32, #tpu.memory_space<vmem>>, %arg7: memref<1280x128xbf16, #tpu.memory_space<vmem>>, %arg8: memref<1x128xf32, #tpu.memory_space<vmem>>, %arg9: memref<1x1x128xf32, #tpu.memory_space<vmem>>, %arg10: memref<1x1280xf32, #tpu.memory_space<vmem>>) attributes {dimension_semantics = [#tpu.dimension_semantics<parallel>, #tpu.dimension_semantics<arbitrary>], iteration_bounds = array<i64: 2, 1>, scalar_prefetch = 0 : i64, scratch_operands = 1 : i64, tpu.core_type = #tpu.core_type<tc>, window_params = [{transform_indices = @transform_0, window_bounds = array<i64: 1, 256, 32>}, {pipeline_mode = #tpu.pipeline_mode<synchronous>, transform_indices = @transform_1, window_bounds = array<i64: 32, 32>}, {pipeline_mode = #tpu.pipeline_mode<synchronous>, transform_indices = @transform_2, window_bounds = array<i64: 1, 32>}, {pipeline_mode = #tpu.pipeline_mode<synchronous>, transform_indices = @transform_3, window_bounds = array<i64: 32, 1280>}, {pipeline_mode = #tpu.pipeline_mode<synchronous>, transform_indices = @transform_4, window_bounds = array<i64: 1, 1280>}, {pipeline_mode = #tpu.pipeline_mode<synchronous>, transform_indices = @transform_5, window_bounds = array<i64: 1280, 128>}, {pipeline_mode = #tpu.pipeline_mode<synchronous>, transform_indices = @transform_6, window_bounds = array<i64: 1, 128>}, {transform_indices = @transform_7, window_bounds = array<i64: 1, 1, 128>}]} {
    %c0_i32 = arith.constant 0 : i32
    %0 = arith.cmpi eq, %arg1, %c0_i32 : i32
    %1 = arith.extui %0 : i1 to i32
    %c0_i32_0 = arith.constant 0 : i32
    %2 = arith.cmpi ne, %1, %c0_i32_0 : i32
    scf.if %2 {
      %cst_25 = arith.constant 0.000000e+00 : f32
      %40 = vector.broadcast %cst_25 : f32 to vector<1x1280xf32>
      %c0_26 = arith.constant 0 : index
      %c0_27 = arith.constant 0 : index
      %41 = vector.load %arg10[%c0_26, %c0_27] : memref<1x1280xf32, #tpu.memory_space<vmem>>, vector<1x1280xf32>
      tpu.vector_store %arg10[%c0_26, %c0_27], %40 {strides = array<i32>} : memref<1x1280xf32, #tpu.memory_space<vmem>>, vector<1x1280xf32>,
    } else {
    }
    %c0 = arith.constant 0 : index
    %c0_1 = arith.constant 0 : index
    %c0_2 = arith.constant 0 : index
    %3 = vector.load %arg2[%c0, %c0_1, %c0_2] : memref<1x256x32xbf16, #tpu.memory_space<vmem>>, vector<1x256x32xbf16>
    %4 = vector.shape_cast %3 : vector<1x256x32xbf16> to vector<256x32xbf16>
    %c0_3 = arith.constant 0 : index
    %c0_4 = arith.constant 0 : index
    %5 = vector.load %arg3[%c0_3, %c0_4] : memref<32x32xbf16, #tpu.memory_space<vmem>>, vector<32x32xbf16>
    %cst = arith.constant dense<0.000000e+00> : vector<256x32xf32>
    %6 = tpu.matmul %4, %5, %cst {dimension_numbers = #tpu.dot_dimension_numbers<[1], [0], [0], [1], [0, 0, 1, 1], [], []>} : vector<256x32xbf16>, vector<32x32xbf16>, vector<256x32xf32> -> vector<256x32xf32>
    %c0_5 = arith.constant 0 : index
    %c0_6 = arith.constant 0 : index
    %7 = vector.load %arg4[%c0_5, %c0_6] : memref<1x32xf32, #tpu.memory_space<vmem>>, vector<1x32xf32>
    %8 = vector.broadcast %7 : vector<1x32xf32> to vector<256x32xf32>
    %9 = arith.addf %6, %8 : vector<256x32xf32>
    %cst_7 = arith.constant 0.000000e+00 : f32
    %10 = vector.broadcast %cst_7 : f32 to vector<256x32xf32>
    %11 = arith.subf %10, %9 : vector<256x32xf32>
    %12 = math.exp %11 : vector<256x32xf32>
    %cst_8 = arith.constant 1.000000e+00 : f32
    %13 = vector.broadcast %cst_8 : f32 to vector<256x32xf32>
    %14 = arith.addf %13, %12 : vector<256x32xf32>
    %15 = tpu.reciprocal %14 {approx = true} : vector<256x32xf32> -> vector<256x32xf32>
    %16 = arith.mulf %9, %15 : vector<256x32xf32>
    %17 = arith.truncf %16 : vector<256x32xf32> to vector<256x32xbf16>
    %c0_9 = arith.constant 0 : index
    %c0_10 = arith.constant 0 : index
    %18 = vector.load %arg5[%c0_9, %c0_10] : memref<32x1280xbf16, #tpu.memory_space<vmem>>, vector<32x1280xbf16>
    %cst_11 = arith.constant dense<0.000000e+00> : vector<256x1280xf32>
    %19 = tpu.matmul %17, %18, %cst_11 {dimension_numbers = #tpu.dot_dimension_numbers<[1], [0], [0], [1], [0, 0, 1, 1], [], []>} : vector<256x32xbf16>, vector<32x1280xbf16>, vector<256x1280xf32> -> vector<256x1280xf32>
    %c0_12 = arith.constant 0 : index
    %c0_13 = arith.constant 0 : index
    %20 = vector.load %arg6[%c0_12, %c0_13] : memref<1x1280xf32, #tpu.memory_space<vmem>>, vector<1x1280xf32>
    %21 = vector.broadcast %20 : vector<1x1280xf32> to vector<256x1280xf32>
    %22 = arith.addf %19, %21 : vector<256x1280xf32>
    %23 = arith.truncf %22 : vector<256x1280xf32> to vector<256x1280xbf16>
    %cst_14 = arith.constant 0.000000e+00 : bf16
    %24 = vector.broadcast %cst_14 : bf16 to vector<256x1280xbf16>
    %25 = arith.subf %24, %23 : vector<256x1280xbf16>
    %26 = math.exp %25 : vector<256x1280xbf16>
    %cst_15 = arith.constant 1.000000e+00 : bf16
    %27 = vector.broadcast %cst_15 : bf16 to vector<256x1280xbf16>
    %28 = arith.addf %27, %26 : vector<256x1280xbf16>
    %cst_16 = arith.constant 1.000000e+00 : bf16
    %29 = vector.broadcast %cst_16 : bf16 to vector<256x1280xbf16>
    %30 = arith.divf %29, %28 : vector<256x1280xbf16>
    %31 = arith.mulf %23, %30 : vector<256x1280xbf16>
    %cst_17 = arith.constant 1.000000e+00 : bf16
    %32 = vector.broadcast %cst_17 : bf16 to vector<1x256xbf16>
    %c0_18 = arith.constant 0 : index
    %c0_19 = arith.constant 0 : index
    %33 = vector.load %arg10[%c0_18, %c0_19] : memref<1x1280xf32, #tpu.memory_space<vmem>>, vector<1x1280xf32>
    %cst_20 = arith.constant dense<0.000000e+00> : vector<1x1280xf32>
    %34 = tpu.matmul %32, %31, %cst_20 {dimension_numbers = #tpu.dot_dimension_numbers<[1], [0], [0], [1], [0, 0, 1, 1], [], []>} : vector<1x256xbf16>, vector<256x1280xbf16>, vector<1x1280xf32> -> vector<1x1280xf32>
    %35 = arith.addf %33, %34 : vector<1x1280xf32>
    %c0_21 = arith.constant 0 : index
    %c0_22 = arith.constant 0 : index
    %36 = vector.load %arg10[%c0_21, %c0_22] : memref<1x1280xf32, #tpu.memory_space<vmem>>, vector<1x1280xf32>
    tpu.vector_store %arg10[%c0_21, %c0_22], %35 {strides = array<i32>} : memref<1x1280xf32, #tpu.memory_space<vmem>>, vector<1x1280xf32>,
    %c0_i32_23 = arith.constant 0 : i32
    %37 = arith.cmpi eq, %arg1, %c0_i32_23 : i32
    %38 = arith.extui %37 : i1 to i32
    %c0_i32_24 = arith.constant 0 : i32
    %39 = arith.cmpi ne, %38, %c0_i32_24 : i32
    scf.if %39 {
      %c0_25 = arith.constant 0 : index
      %c0_26 = arith.constant 0 : index
      %40 = vector.load %arg10[%c0_25, %c0_26] : memref<1x1280xf32, #tpu.memory_space<vmem>>, vector<1x1280xf32>
      %cst_27 = arith.constant 3.906250e-03 : f32
      %41 = vector.broadcast %cst_27 : f32 to vector<1x1280xf32>
      %42 = arith.mulf %40, %41 : vector<1x1280xf32>
      %43 = arith.truncf %42 : vector<1x1280xf32> to vector<1x1280xbf16>
      %c0_28 = arith.constant 0 : index
      %c0_29 = arith.constant 0 : index
      %44 = vector.load %arg7[%c0_28, %c0_29] : memref<1280x128xbf16, #tpu.memory_space<vmem>>, vector<1280x128xbf16>
      %cst_30 = arith.constant dense<0.000000e+00> : vector<1x128xf32>
      %45 = tpu.matmul %43, %44, %cst_30 {dimension_numbers = #tpu.dot_dimension_numbers<[1], [0], [0], [1], [0, 0, 1, 1], [], []>} : vector<1x1280xbf16>, vector<1280x128xbf16>, vector<1x128xf32> -> vector<1x128xf32>
      %c0_31 = arith.constant 0 : index
      %c0_32 = arith.constant 0 : index
      %46 = vector.load %arg8[%c0_31, %c0_32] : memref<1x128xf32, #tpu.memory_space<vmem>>, vector<1x128xf32>
      %47 = arith.addf %45, %46 : vector<1x128xf32>
      %48 = vector.shape_cast %47 : vector<1x128xf32> to vector<1x1x128xf32>
      %c0_33 = arith.constant 0 : index
      %c0_34 = arith.constant 0 : index
      %c0_35 = arith.constant 0 : index
      %49 = vector.load %arg9[%c0_33, %c0_34, %c0_35] : memref<1x1x128xf32, #tpu.memory_space<vmem>>, vector<1x1x128xf32>
      tpu.vector_store %arg9[%c0_33, %c0_34, %c0_35], %48 {strides = array<i32>} : memref<1x1x128xf32, #tpu.memory_space<vmem>>, vector<1x1x128xf32>,
    } else {
    }
    return
  }
  func.func @transform_0(%arg0: i32, %arg1: i32) -> (i32, i32, i32) {
    %c0_i32 = arith.constant 0 : i32
    %c0_i32_0 = arith.constant 0 : i32
    return %arg0, %arg1, %c0_i32 : i32, i32, i32
  }
  func.func @transform_1(%arg0: i32, %arg1: i32) -> (i32, i32) {
    %c0_i32 = arith.constant 0 : i32
    %c0_i32_0 = arith.constant 0 : i32
    %c0_i32_1 = arith.constant 0 : i32
    return %c0_i32, %c0_i32_0 : i32, i32
  }
  func.func @transform_2(%arg0: i32, %arg1: i32) -> (i32, i32) {
    %c0_i32 = arith.constant 0 : i32
    %c0_i32_0 = arith.constant 0 : i32
    %c0_i32_1 = arith.constant 0 : i32
    return %c0_i32, %c0_i32_0 : i32, i32
  }
  func.func @transform_3(%arg0: i32, %arg1: i32) -> (i32, i32) {
    %c0_i32 = arith.constant 0 : i32
    %c0_i32_0 = arith.constant 0 : i32
    %c0_i32_1 = arith.constant 0 : i32
    return %c0_i32, %c0_i32_0 : i32, i32
  }
  func.func @transform_4(%arg0: i32, %arg1: i32) -> (i32, i32) {
    %c0_i32 = arith.constant 0 : i32
    %c0_i32_0 = arith.constant 0 : i32
    %c0_i32_1 = arith.constant 0 : i32
    return %c0_i32, %c0_i32_0 : i32, i32
  }
  func.func @transform_5(%arg0: i32, %arg1: i32) -> (i32, i32) {
    %c0_i32 = arith.constant 0 : i32
    %c0_i32_0 = arith.constant 0 : i32
    %c0_i32_1 = arith.constant 0 : i32
    return %c0_i32, %c0_i32_0 : i32, i32
  }
  func.func @transform_6(%arg0: i32, %arg1: i32) -> (i32, i32) {
    %c0_i32 = arith.constant 0 : i32
    %c0_i32_0 = arith.constant 0 : i32
    %c0_i32_1 = arith.constant 0 : i32
    return %c0_i32, %c0_i32_0 : i32, i32
  }
  func.func @transform_7(%arg0: i32, %arg1: i32) -> (i32, i32, i32) {
    %c0_i32 = arith.constant 0 : i32
    %c0_i32_0 = arith.constant 0 : i32
    %c0_i32_1 = arith.constant 0 : i32
    return %arg0, %c0_i32, %c0_i32_0 : i32, i32, i32
  }
}

</mosaic_0001>

<llo_original>
// kernel: simple_card_classifier_forward.1
$region0: #{simple_card_classifier_forward.1}
  #allocation0 [shape = 'u32[]', space=smem, size = 0x4, offset = 0x4, fixed_abs, tag = 'smem constant byte address 0x4 - core index']
  #allocation1 [shape = 'u32[144,128]{1,0:T(1,128)}', space=vmem, size = 0x12000, scoped, tag = 'internal scratch']
  #allocation2 [shape = 'f32[1,1280]{1,0:T(1,128)}', space=vmem, size = 0x1400, scoped, tag = 'scratch operand']
  %s0 = inlined_call_operand.vmem [shape: bf16[2,256,32], index: 0, kind: input, shape index: {}]
  %s1 = inlined_call_operand.vmem [shape: bf16[32,32], index: 1, kind: input, shape index: {}]
  %s2 = inlined_call_operand.vmem [shape: f32[1,32], index: 2, kind: input, shape index: {}]
  %s3 = inlined_call_operand.vmem [shape: bf16[32,1280], index: 3, kind: input, shape index: {}]
  %s4 = inlined_call_operand.vmem [shape: f32[1,1280], index: 4, kind: input, shape index: {}]
  %s5 = inlined_call_operand.vmem [shape: bf16[1280,128], index: 5, kind: input, shape index: {}]
  %s6 = inlined_call_operand.vmem [shape: f32[1,128], index: 6, kind: input, shape index: {}]
  %s7 = inlined_call_operand.hbm [shape: f32[2,1,128], index: 7, kind: output, shape index: {}]
  %s8 = sld [smem:[#allocation0]]
  $region69: #{simple_card_classifier_forward.1} parent=0
    _
  %s10 = ssub.s32 1, %s8
  %s11 = scalar_select 0, %s10, %s8
  $region1: #{simple_card_classifier_forward.1} parent=0
    #allocation3 [shape = 'u8[1024]{0}', space=vmem, size = 0x400, scoped, tag = 'output window, operand 0']
    #allocation4 [shape = 's32[2]{0}', space=sflag, size = 0x8, scoped, tag = 'scoped memory for simple_card_classifier_forward.1']
    %12 = vsyncpa [#allocation4], 0
    %s13 = scalar_lea.sflag [#allocation4], 1
    %14 = vsyncpa %s13, 0
    loop: start=0, step=1, limit=4
    $region2: #{simple_card_classifier_forward.1} parent=1 // loop_pre_header
      _
    $region3: #{simple_card_classifier_forward.1} parent=1 // loop_header
      %s16 = sphi 0, %s20
      %p17 = scmp.ge.s32.totalorder %s16, 4
      %s23 = sphi 0, %s35
      %s24 = sphi 0, %s31
      %s25 = sphi 0, %s23
      %s26 = sphi 0, %s24
      %s27 = sphi 0, %s25
      %s28 = sphi 0, %s26
      %s40 = sphi 0, %s42
      %s43 = sphi 0, %s40
      %s44 = sphi 0, %s43
      %s60 = sphi 0, %s44
      %s64 = sphi 0, %s64
      %s66 = sphi 0, %s64
      %s67 = sphi 0, %s66
      %s81 = sphi 0, %s67
      %s85 = sphi 0, %s85
      %s87 = sphi 0, %s85
      %s88 = sphi 0, %s87
      %s102 = sphi 0, %s88
      %s106 = sphi 0, %s106
      %s108 = sphi 0, %s106
      %s109 = sphi 0, %s108
      %s123 = sphi 0, %s109
      %s127 = sphi 0, %s127
      %s129 = sphi 0, %s127
      %s130 = sphi 0, %s129
      %s144 = sphi 0, %s130
      %s148 = sphi 0, %s148
      %s150 = sphi 0, %s148
      %s151 = sphi 0, %s150
      %s165 = sphi 0, %s151
      %s169 = sphi 0, %s169
      %s171 = sphi 0, %s169
      %s172 = sphi 0, %s171
      %s186 = sphi 0, %s172
      %s192 = sphi 0, %s194
      %s195 = sphi 0, %s192
      %s196 = sphi 0, %s195
      %s212 = sphi 0, %s196
    $region4: #{simple_card_classifier_forward.1} parent=1 // loop_header_branch
      %19 = sbr.rel (%p17) target = $region8
    $region5: #{simple_card_classifier_forward.1} parent=1 // loop_body
      %s21 = ssub.s32 %s16, 1
      %s22 = ssub.s32 %s16, 2
      %s29 = sadd.s32 1, %s24
      %p30 = scmp.ge.s32.totalorder %s29, 1
      %s31 = scalar_select %p30, 0, %s29
      %s32 = sadd.s32 1, %s23
      %s33 = scalar_select %p30, %s32, %s23
      %p34 = scmp.ge.s32.totalorder %s33, 2
      %s35 = scalar_select %p34, 0, %s33
      %s36 = ssub.s32 %s23, %s35
      %s37 = ssub.s32 %s24, %s31
      %s38 = sor.u32 %s36, %s37
      %p39 = scmp.eq.s32.totalorder %s38, 0
      %s41 = sadd.s32 %s40, 1
      %s42 = scalar_select %p39, %s40, %s41
      %p45 = pneg %p39
      %p46 = scmp.eq.s32.totalorder %s16, 1
      %p47 = por %p45, %p46
      %p48 = scmp.ne.s32.totalorder %s40, %s43
      %p49 = scmp.eq.s32.totalorder %s16, 0
      %p50 = por %p48, %p49
      %p51 = scmp.ne.s32.totalorder %s40, %s43
      %p52 = scmp.eq.s32.totalorder %s21, 1
      %p53 = por %p51, %p52
      %p54 = scmp.ne.s32.totalorder %s43, %s44
      %p55 = scmp.eq.s32.totalorder %s21, 0
      %p56 = por %p54, %p55
      %p57 = scmp.ne.s32.totalorder %s43, %s44
      %p58 = scmp.eq.s32.totalorder %s22, 1
      %p59 = por %p57, %p58
      %p61 = scmp.ne.s32.totalorder %s44, %s60
      %p62 = scmp.eq.s32.totalorder %s22, 0
      %p63 = por %p61, %p62
      %s65 = sadd.s32 %s64, 1
      %p68 = scmp.eq.s32.totalorder %s16, 1
      %p69 = scmp.ne.s32.totalorder %s64, %s66
      %p70 = scmp.eq.s32.totalorder %s16, 0
      %p71 = por %p69, %p70
      %p72 = scmp.ne.s32.totalorder %s64, %s66
      %p73 = scmp.eq.s32.totalorder %s21, 1
      %p74 = por %p72, %p73
      %p75 = scmp.ne.s32.totalorder %s66, %s67
      %p76 = scmp.eq.s32.totalorder %s21, 0
      %p77 = por %p75, %p76
      %p78 = scmp.ne.s32.totalorder %s66, %s67
      %p79 = scmp.eq.s32.totalorder %s22, 1
      %p80 = por %p78, %p79
      %p82 = scmp.ne.s32.totalorder %s67, %s81
      %p83 = scmp.eq.s32.totalorder %s22, 0
      %p84 = por %p82, %p83
      %s86 = sadd.s32 %s85, 1
      %p89 = scmp.eq.s32.totalorder %s16, 1
      %p90 = scmp.ne.s32.totalorder %s85, %s87
      %p91 = scmp.eq.s32.totalorder %s16, 0
      %p92 = por %p90, %p91
      %p93 = scmp.ne.s32.totalorder %s85, %s87
      %p94 = scmp.eq.s32.totalorder %s21, 1
      %p95 = por %p93, %p94
      %p96 = scmp.ne.s32.totalorder %s87, %s88
      %p97 = scmp.eq.s32.totalorder %s21, 0
      %p98 = por %p96, %p97
      %p99 = scmp.ne.s32.totalorder %s87, %s88
      %p100 = scmp.eq.s32.totalorder %s22, 1
      %p101 = por %p99, %p100
      %p103 = scmp.ne.s32.totalorder %s88, %s102
      %p104 = scmp.eq.s32.totalorder %s22, 0
      %p105 = por %p103, %p104
      %s107 = sadd.s32 %s106, 1
      %p110 = scmp.eq.s32.totalorder %s16, 1
      %p111 = scmp.ne.s32.totalorder %s106, %s108
      %p112 = scmp.eq.s32.totalorder %s16, 0
      %p113 = por %p111, %p112
      %p114 = scmp.ne.s32.totalorder %s106, %s108
      %p115 = scmp.eq.s32.totalorder %s21, 1
      %p116 = por %p114, %p115
      %p117 = scmp.ne.s32.totalorder %s108, %s109
      %p118 = scmp.eq.s32.totalorder %s21, 0
      %p119 = por %p117, %p118
      %p120 = scmp.ne.s32.totalorder %s108, %s109
      %p121 = scmp.eq.s32.totalorder %s22, 1
      %p122 = por %p120, %p121
      %p124 = scmp.ne.s32.totalorder %s109, %s123
      %p125 = scmp.eq.s32.totalorder %s22, 0
      %p126 = por %p124, %p125
      %s128 = sadd.s32 %s127, 1
      %p131 = scmp.eq.s32.totalorder %s16, 1
      %p132 = scmp.ne.s32.totalorder %s127, %s129
      %p133 = scmp.eq.s32.totalorder %s16, 0
      %p134 = por %p132, %p133
      %p135 = scmp.ne.s32.totalorder %s127, %s129
      %p136 = scmp.eq.s32.totalorder %s21, 1
      %p137 = por %p135, %p136
      %p138 = scmp.ne.s32.totalorder %s129, %s130
      %p139 = scmp.eq.s32.totalorder %s21, 0
      %p140 = por %p138, %p139
      %p141 = scmp.ne.s32.totalorder %s129, %s130
      %p142 = scmp.eq.s32.totalorder %s22, 1
      %p143 = por %p141, %p142
      %p145 = scmp.ne.s32.totalorder %s130, %s144
      %p146 = scmp.eq.s32.totalorder %s22, 0
      %p147 = por %p145, %p146
      %s149 = sadd.s32 %s148, 1
      %p152 = scmp.eq.s32.totalorder %s16, 1
      %p153 = scmp.ne.s32.totalorder %s148, %s150
      %p154 = scmp.eq.s32.totalorder %s16, 0
      %p155 = por %p153, %p154
      %p156 = scmp.ne.s32.totalorder %s148, %s150
      %p157 = scmp.eq.s32.totalorder %s21, 1
      %p158 = por %p156, %p157
      %p159 = scmp.ne.s32.totalorder %s150, %s151
      %p160 = scmp.eq.s32.totalorder %s21, 0
      %p161 = por %p159, %p160
      %p162 = scmp.ne.s32.totalorder %s150, %s151
      %p163 = scmp.eq.s32.totalorder %s22, 1
      %p164 = por %p162, %p163
      %p166 = scmp.ne.s32.totalorder %s151, %s165
      %p167 = scmp.eq.s32.totalorder %s22, 0
      %p168 = por %p166, %p167
      %s170 = sadd.s32 %s169, 1
      %p173 = scmp.eq.s32.totalorder %s16, 1
      %p174 = scmp.ne.s32.totalorder %s169, %s171
      %p175 = scmp.eq.s32.totalorder %s16, 0
      %p176 = por %p174, %p175
      %p177 = scmp.ne.s32.totalorder %s169, %s171
      %p178 = scmp.eq.s32.totalorder %s21, 1
      %p179 = por %p177, %p178
      %p180 = scmp.ne.s32.totalorder %s171, %s172
      %p181 = scmp.eq.s32.totalorder %s21, 0
      %p182 = por %p180, %p181
      %p183 = scmp.ne.s32.totalorder %s171, %s172
      %p184 = scmp.eq.s32.totalorder %s22, 1
      %p185 = por %p183, %p184
      %p187 = scmp.ne.s32.totalorder %s172, %s186
      %p188 = scmp.eq.s32.totalorder %s22, 0
      %p189 = por %p187, %p188
      %s190 = ssub.s32 %s23, %s35
      %p191 = scmp.eq.s32.totalorder %s190, 0
      %s193 = sadd.s32 %s192, 1
      %s194 = scalar_select %p191, %s192, %s193
      %p197 = pneg %p191
      %p198 = scmp.eq.s32.totalorder %s16, 1
      %p199 = por %p197, %p198
      %p200 = scmp.ne.s32.totalorder %s192, %s195
      %p201 = scmp.eq.s32.totalorder %s16, 0
      %p202 = por %p200, %p201
      %p203 = scmp.ne.s32.totalorder %s192, %s195
      %p204 = scmp.eq.s32.totalorder %s21, 1
      %p205 = por %p203, %p204
      %p206 = scmp.ne.s32.totalorder %s195, %s196
      %p207 = scmp.eq.s32.totalorder %s21, 0
      %p208 = por %p206, %p207
      %p209 = scmp.ne.s32.totalorder %s195, %s196
      %p210 = scmp.eq.s32.totalorder %s22, 1
      %p211 = por %p209, %p210
      %p213 = scmp.ne.s32.totalorder %s196, %s212
      %p214 = scmp.eq.s32.totalorder %s22, 0
      %p215 = por %p213, %p214
      %p216 = scmp.le.s32.totalorder 1, %s16
      %p217 = scmp.lt.s32.totalorder %s16, 3
      %p218 = pnand %p216, %p217
      %p219 = pneg %p218
      // Predicated region
      $region9: #{simple_card_classifier_forward.1} parent=5 // pred_check
        _
      $region10: #{simple_card_classifier_forward.1} parent=5 // pred_check_branch
        %221 = sbr.rel (%p218) target = $region12
      $region11: #{simple_card_classifier_forward.1} parent=5 // pred_region
        %s222 = ssub.s32 %s16, 1
        // Predicated region
        $region13: #{simple_card_classifier_forward.1} parent=11 // pred_check
          %p223 = pneg %p77
        $region14: #{simple_card_classifier_forward.1} parent=11 // pred_check_branch
          %225 = sbr.rel (%p223) target = $region16
        $region15: #{simple_card_classifier_forward.1} parent=11 // pred_region
          _
        $region16: #{simple_card_classifier_forward.1} parent=11 // pred_fallthru
          _
        // Predicated region
        $region17: #{simple_card_classifier_forward.1} parent=11 // pred_check
          %p226 = pneg %p98
        $region18: #{simple_card_classifier_forward.1} parent=11 // pred_check_branch
          %228 = sbr.rel (%p226) target = $region20
        $region19: #{simple_card_classifier_forward.1} parent=11 // pred_region
          _
        $region20: #{simple_card_classifier_forward.1} parent=11 // pred_fallthru
          _
        // Predicated region
        $region21: #{simple_card_classifier_forward.1} parent=11 // pred_check
          %p229 = pneg %p119
        $region22: #{simple_card_classifier_forward.1} parent=11 // pred_check_branch
          %231 = sbr.rel (%p229) target = $region24
        $region23: #{simple_card_classifier_forward.1} parent=11 // pred_region
          _
        $region24: #{simple_card_classifier_forward.1} parent=11 // pred_fallthru
          _
        // Predicated region
        $region25: #{simple_card_classifier_forward.1} parent=11 // pred_check
          %p232 = pneg %p140
        $region26: #{simple_card_classifier_forward.1} parent=11 // pred_check_branch
          %234 = sbr.rel (%p232) target = $region28
        $region27: #{simple_card_classifier_forward.1} parent=11 // pred_region
          _
        $region28: #{simple_card_classifier_forward.1} parent=11 // pred_fallthru
          _
        // Predicated region
        $region29: #{simple_card_classifier_forward.1} parent=11 // pred_check
          %p235 = pneg %p161
        $region30: #{simple_card_classifier_forward.1} parent=11 // pred_check_branch
          %237 = sbr.rel (%p235) target = $region32
        $region31: #{simple_card_classifier_forward.1} parent=11 // pred_region
          _
        $region32: #{simple_card_classifier_forward.1} parent=11 // pred_fallthru
          _
        // Predicated region
        $region33: #{simple_card_classifier_forward.1} parent=11 // pred_check
          %p238 = pneg %p182
        $region34: #{simple_card_classifier_forward.1} parent=11 // pred_check_branch
          %240 = sbr.rel (%p238) target = $region36
        $region35: #{simple_card_classifier_forward.1} parent=11 // pred_region
          _
        $region36: #{simple_card_classifier_forward.1} parent=11 // pred_fallthru
          _
      $region12: #{simple_card_classifier_forward.1} parent=5 // pred_fallthru
        _
      %p241 = scmp.lt.s32.totalorder %s16, 2
      // Predicated region
      $region37: #{simple_card_classifier_forward.1} parent=5 // pred_check
        %p242 = pneg %p241
      $region38: #{simple_card_classifier_forward.1} parent=5 // pred_check_branch
        %244 = sbr.rel (%p242) target = $region40
      $region39: #{simple_card_classifier_forward.1} parent=5 // pred_region
        // Predicated region
        $region41: #{simple_card_classifier_forward.1} parent=39 // pred_check
          %p245 = pneg %p50
        $region42: #{simple_card_classifier_forward.1} parent=39 // pred_check_branch
          %247 = sbr.rel (%p245) target = $region44
        $region43: #{simple_card_classifier_forward.1} parent=39 // pred_region
          %s248 = smul.u32 32, %s24
          %p249 = scmp.lt.s32.totalorder %s23, 1
          %s250 = scalar_select %p249, %s23, 1
          %p251 = scmp.lt.s32.totalorder %s248, 31
          %s252 = scalar_select %p251, %s248, 31
          %s253 = smul.addr %s250, 32
          %s254 = sadd.s32 %s252, %s253
          %s255 = smul.addr %s254, 4
          %s256 = scalar_lea.vmem %s0, %s255
          %s257 = smul.u32 32, %s24
        $region44: #{simple_card_classifier_forward.1} parent=39 // pred_fallthru
          _
      $region40: #{simple_card_classifier_forward.1} parent=5 // pred_fallthru
        _
      %p258 = scmp.le.s32.totalorder 1, %s16
      %p259 = scmp.lt.s32.totalorder %s16, 3
      %p260 = pnand %p258, %p259
      %p261 = pneg %p260
      // Predicated region
      $region45: #{simple_card_classifier_forward.1} parent=5 // pred_check
        _
      $region46: #{simple_card_classifier_forward.1} parent=5 // pred_check_branch
        %263 = sbr.rel (%p260) target = $region48
      $region47: #{simple_card_classifier_forward.1} parent=5 // pred_region
        %s264 = ssub.s32 %s16, 1
        %s265 = smul.u32 32, %s26
        %p266 = scmp.lt.s32.totalorder %s25, 1
        %s267 = scalar_select %p266, %s25, 1
        %p268 = scmp.lt.s32.totalorder %s265, 31
        %s269 = scalar_select %p268, %s265, 31
        %s270 = smul.addr %s267, 32
        %s271 = sadd.s32 %s269, %s270
        %s272 = smul.addr %s271, 4
        %s273 = scalar_lea.vmem %s0, %s272
        %p274 = pneg %p56
        %p275 = pneg %p53
        %p276 = pneg %p77
        %p277 = pneg %p74
        %p278 = pneg %p98
        %p279 = pneg %p95
        %p280 = pneg %p119
        %p281 = pneg %p116
        %p282 = pneg %p140
        %p283 = pneg %p137
        %p284 = pneg %p161
        %p285 = pneg %p158
        %p286 = pneg %p182
        %p287 = pneg %p179
        %p288 = pneg %p208
        %p289 = pneg %p205
        %s290 = sand.u32 %s195, 1
        %s291 = scalar_lea.sflag [#allocation4], %s290
        %s292 = sand.u32 %s195, 1
        %s293 = scalar_lea.vmem [#allocation3], %s292
        %s294 = smul.u32 32, %s26
        %p295 = scmp.lt.s32.totalorder %s25, 1
        %s296 = scalar_select %p295, %s25, 1
        %p297 = scmp.lt.s32.totalorder %s294, 31
        %s298 = scalar_select %p297, %s294, 31
        %s299 = smul.addr %s296, 32
        %s300 = sadd.s32 %s298, %s299
        %s301 = smul.addr %s300, 4
        %s302 = scalar_lea.vmem %s0, %s301
        %s303 = smul.u32 32, %s26
        %p306 = scmp.eq.s32.totalorder %s26, 0
        // Predicated region
        $region49: #{simple_card_classifier_forward.1} parent=47 // pred_check
          %p307 = pneg %p306
        $region50: #{simple_card_classifier_forward.1} parent=47 // pred_check_branch
          %309 = sbr.rel (%p307) target = $region52
        $region51: #{simple_card_classifier_forward.1} parent=47 // pred_region
          %310 = vst [vmem:[#allocation2] sm:$0xff] 0.0
          %v311 = vlaneseq
          %vm312 = vcmp.ge.s32.totalorder %v311, 0
          %vm313 = vcmp.lt.s32.totalorder %v311, 256
          %vm314 = vmand %vm312, %vm313
          %315 = vst.msk [vmem:[#allocation2 + $0x8] sm:$0x3] %vm314, 0.0
        $region52: #{simple_card_classifier_forward.1} parent=47 // pred_fallthru
          _
        %v316 = vld [vmem:[%s302] sm:$0xf]
        %v317 = vld [vmem:[%s302 + $0x4] sm:$0xf]
        %v318 = vld [vmem:[%s302 + $0x8] sm:$0xf]
        %v319 = vld [vmem:[%s302 + $0xc] sm:$0xf]
        %v320 = vld [vmem:[%s302 + $0x10] sm:$0xf]
        %v321 = vld [vmem:[%s302 + $0x14] sm:$0xf]
        %v322 = vld [vmem:[%s302 + $0x18] sm:$0xf]
        %v323 = vld [vmem:[%s302 + $0x1c] sm:$0xf]
        %v324 = vld [vmem:[%s302 + $0x20] sm:$0xf]
        %v325 = vld [vmem:[%s302 + $0x24] sm:$0xf]
        %v326 = vld [vmem:[%s302 + $0x28] sm:$0xf]
        %v327 = vld [vmem:[%s302 + $0x2c] sm:$0xf]
        %v328 = vld [vmem:[%s302 + $0x30] sm:$0xf]
        %v329 = vld [vmem:[%s302 + $0x34] sm:$0xf]
        %v330 = vld [vmem:[%s302 + $0x38] sm:$0xf]
        %v331 = vld [vmem:[%s302 + $0x3c] sm:$0xf]
        %v332 = vld [vmem:[%s302 + $0x40] sm:$0xf]
        %v333 = vld [vmem:[%s302 + $0x44] sm:$0xf]
        %v334 = vld [vmem:[%s302 + $0x48] sm:$0xf]
        %v335 = vld [vmem:[%s302 + $0x4c] sm:$0xf]
        %v336 = vld [vmem:[%s302 + $0x50] sm:$0xf]
        %v337 = vld [vmem:[%s302 + $0x54] sm:$0xf]
        %v338 = vld [vmem:[%s302 + $0x58] sm:$0xf]
        %v339 = vld [vmem:[%s302 + $0x5c] sm:$0xf]
        %v340 = vld [vmem:[%s302 + $0x60] sm:$0xf]
        %v341 = vld [vmem:[%s302 + $0x64] sm:$0xf]
        %v342 = vld [vmem:[%s302 + $0x68] sm:$0xf]
        %v343 = vld [vmem:[%s302 + $0x6c] sm:$0xf]
        %v344 = vld [vmem:[%s302 + $0x70] sm:$0xf]
        %v345 = vld [vmem:[%s302 + $0x74] sm:$0xf]
        %v346 = vld [vmem:[%s302 + $0x78] sm:$0xf]
        %v347 = vld [vmem:[%s302 + $0x7c] sm:$0xf]
        %v348 = vld [vmem:[%s1] sm:$0xf]
        %v349 = vld [vmem:[%s1 + $0x4] sm:$0xf]
        %v350 = vld [vmem:[%s1 + $0x8] sm:$0xf]
        %v351 = vld [vmem:[%s1 + $0xc] sm:$0xf]
        %v352 = vld [vmem:[%s2] sm:$0x1]
        %v354 = vlaneseq
        %v355 = vshrl.u32 %v354, 7
        %v356 = vsub.s32 0, %v355
        %v357 = vrot.slane %v352, %v356
        %v391 = vunpack.c.l.b16 %v316
        %v392 = vunpack.c.l.b16 %v317
        %v393 = vunpack.c.l.b16 %v318
        %v394 = vunpack.c.l.b16 %v319
        %v395 = vunpack.c.l.b16 %v320
        %v396 = vunpack.c.l.b16 %v321
        %v397 = vunpack.c.l.b16 %v322
        %v398 = vunpack.c.l.b16 %v323
        %v399 = vunpack.c.l.b16 %v324
        %v400 = vunpack.c.l.b16 %v325
        %v401 = vunpack.c.l.b16 %v326
        %v402 = vunpack.c.l.b16 %v327
        %v403 = vunpack.c.l.b16 %v328
        %v404 = vunpack.c.l.b16 %v329
        %v405 = vunpack.c.l.b16 %v330
        %v406 = vunpack.c.l.b16 %v331
        %v407 = vunpack.c.l.b16 %v332
        %v408 = vunpack.c.l.b16 %v333
        %v409 = vunpack.c.l.b16 %v334
        %v410 = vunpack.c.l.b16 %v335
        %v411 = vunpack.c.l.b16 %v336
        %v412 = vunpack.c.l.b16 %v337
        %v413 = vunpack.c.l.b16 %v338
        %v414 = vunpack.c.l.b16 %v339
        %v415 = vunpack.c.l.b16 %v340
        %v416 = vunpack.c.l.b16 %v341
        %v417 = vunpack.c.l.b16 %v342
        %v418 = vunpack.c.l.b16 %v343
        %v419 = vunpack.c.l.b16 %v344
        %v420 = vunpack.c.l.b16 %v345
        %v421 = vunpack.c.l.b16 %v346
        %v422 = vunpack.c.l.b16 %v347
        %v423 = vpack.c.b16 %v392, %v391
        %v424 = vpack.c.b16 %v394, %v393
        %v425 = vpack.c.b16 %v396, %v395
        %v426 = vpack.c.b16 %v398, %v397
        %v427 = vpack.c.b16 %v400, %v399
        %v428 = vpack.c.b16 %v402, %v401
        %v429 = vpack.c.b16 %v404, %v403
        %v430 = vpack.c.b16 %v406, %v405
        %v431 = vpack.c.b16 %v408, %v407
        %v432 = vpack.c.b16 %v410, %v409
        %v433 = vpack.c.b16 %v412, %v411
        %v434 = vpack.c.b16 %v414, %v413
        %v435 = vpack.c.b16 %v416, %v415
        %v436 = vpack.c.b16 %v418, %v417
        %v437 = vpack.c.b16 %v420, %v419
        %v438 = vpack.c.b16 %v422, %v421
        %v443 = vunpack.c.l.b16 %v348
        %v444 = vunpack.c.l.b16 %v349
        %v445 = vunpack.c.l.b16 %v350
        %v446 = vunpack.c.l.b16 %v351
        %v447 = vpack.c.b16 %v444, %v443
        %v448 = vpack.c.b16 %v446, %v445
        %vm451 = vcmask 261120
        %v453 = vsel %vm451, %v423, 0
        %v456 = vsel %vm451, %v424, 0
        %v459 = vsel %vm451, %v425, 0
        %v462 = vsel %vm451, %v426, 0
        %v465 = vsel %vm451, %v427, 0
        %v468 = vsel %vm451, %v428, 0
        %v471 = vsel %vm451, %v429, 0
        %v474 = vsel %vm451, %v430, 0
        %v477 = vsel %vm451, %v431, 0
        %v480 = vsel %vm451, %v432, 0
        %v483 = vsel %vm451, %v433, 0
        %v486 = vsel %vm451, %v434, 0
        %v489 = vsel %vm451, %v435, 0
        %v492 = vsel %vm451, %v436, 0
        %v495 = vsel %vm451, %v437, 0
        %v498 = vsel %vm451, %v438, 0
        %500 = vmatprep.subr.bf16.mxu0 0
        %501 = vmatpush1.bf16.msra.mxu0 %v447
        %502 = vmatprep.subr.bf16.mxu0 0
        %503 = vmatpush1.bf16.msra.mxu0 %v448
        %504 = vmatprep.subr.bf16.mxu0 0
        %505 = vmatpush1.bf16.msra.mxu0 0
        %506 = vmatprep.subr.bf16.mxu0 0
        %507 = vmatpush1.bf16.msra.mxu0 0
        %508 = vmatprep.subr.bf16.mxu0 0
        %509 = vmatpush1.bf16.msra.mxu0 0
        %510 = vmatprep.subr.bf16.mxu0 0
        %511 = vmatpush1.bf16.msra.mxu0 0
        %512 = vmatprep.subr.bf16.mxu0 0
        %513 = vmatpush1.bf16.msra.mxu0 0
        %514 = vmatprep.subr.bf16.mxu0 0
        %515 = vmatpush1.bf16.msra.mxu0 0
        %516 = vmatprep.subr.bf16.mxu0 0
        %517 = vmatpush1.bf16.msra.mxu0 0
        %518 = vmatprep.subr.bf16.mxu0 0
        %519 = vmatpush1.bf16.msra.mxu0 0
        %520 = vmatprep.subr.bf16.mxu0 0
        %521 = vmatpush1.bf16.msra.mxu0 0
        %522 = vmatprep.subr.bf16.mxu0 0
        %523 = vmatpush1.bf16.msra.mxu0 0
        %524 = vmatprep.subr.bf16.mxu0 0
        %525 = vmatpush1.bf16.msra.mxu0 0
        %526 = vmatprep.subr.bf16.mxu0 0
        %527 = vmatpush1.bf16.msra.mxu0 0
        %528 = vmatprep.subr.bf16.mxu0 0
        %529 = vmatpush1.bf16.msra.mxu0 0
        %530 = vmatprep.subr.bf16.mxu0 0
        %531 = vmatpush1.bf16.msra.mxu0 0
        %532 = vmatprep.mubr.bf16.mxu0 0
        %533 = vmatmul.mubr.bf16.gmra.mrb[0].mxu0 %v453
        %v534 = vpop.f32.mrb[0].mxu0
        %v535 = vadd.f32 %v357, %v534
        %v536 = vpop.f32.mrb[0].mxu0
        %v537 = vpop.f32.mrb[0].mxu0
        %v538 = vadd.f32 %v357, %v537
        %v539 = vpop.f32.mrb[0].mxu0
        %540 = vmatprep.mubr.bf16.mxu0 0
        %541 = vmatmul.mubr.bf16.gmra.mrb[0].mxu0 %v456
        %v542 = vpop.f32.mrb[0].mxu0
        %v543 = vadd.f32 %v357, %v542
        %v544 = vpop.f32.mrb[0].mxu0
        %v545 = vpop.f32.mrb[0].mxu0
        %v546 = vadd.f32 %v357, %v545
        %v547 = vpop.f32.mrb[0].mxu0
        %548 = vmatprep.mubr.bf16.mxu0 0
        %549 = vmatmul.mubr.bf16.gmra.mrb[0].mxu0 %v459
        %v550 = vpop.f32.mrb[0].mxu0
        %v551 = vadd.f32 %v357, %v550
        %v552 = vpop.f32.mrb[0].mxu0
        %v553 = vpop.f32.mrb[0].mxu0
        %v554 = vadd.f32 %v357, %v553
        %v555 = vpop.f32.mrb[0].mxu0
        %556 = vmatprep.mubr.bf16.mxu0 0
        %557 = vmatmul.mubr.bf16.gmra.mrb[0].mxu0 %v462
        %v558 = vpop.f32.mrb[0].mxu0
        %v559 = vadd.f32 %v357, %v558
        %v560 = vpop.f32.mrb[0].mxu0
        %v561 = vpop.f32.mrb[0].mxu0
        %v562 = vadd.f32 %v357, %v561
        %v563 = vpop.f32.mrb[0].mxu0
        %564 = vmatprep.mubr.bf16.mxu0 0
        %565 = vmatmul.mubr.bf16.gmra.mrb[0].mxu0 %v465
        %v566 = vpop.f32.mrb[0].mxu0
        %v567 = vadd.f32 %v357, %v566
        %v568 = vpop.f32.mrb[0].mxu0
        %v569 = vpop.f32.mrb[0].mxu0
        %v570 = vadd.f32 %v357, %v569
        %v571 = vpop.f32.mrb[0].mxu0
        %572 = vmatprep.mubr.bf16.mxu0 0
        %573 = vmatmul.mubr.bf16.gmra.mrb[0].mxu0 %v468
        %v574 = vpop.f32.mrb[0].mxu0
        %v575 = vadd.f32 %v357, %v574
        %v576 = vpop.f32.mrb[0].mxu0
        %v577 = vpop.f32.mrb[0].mxu0
        %v578 = vadd.f32 %v357, %v577
        %v579 = vpop.f32.mrb[0].mxu0
        %580 = vmatprep.mubr.bf16.mxu0 0
        %581 = vmatmul.mubr.bf16.gmra.mrb[0].mxu0 %v471
        %v582 = vpop.f32.mrb[0].mxu0
        %v583 = vadd.f32 %v357, %v582
        %v584 = vpop.f32.mrb[0].mxu0
        %v585 = vpop.f32.mrb[0].mxu0
        %v586 = vadd.f32 %v357, %v585
        %v587 = vpop.f32.mrb[0].mxu0
        %588 = vmatprep.mubr.bf16.mxu0 0
        %589 = vmatmul.mubr.bf16.gmra.mrb[0].mxu0 %v474
        %v590 = vpop.f32.mrb[0].mxu0
        %v591 = vadd.f32 %v357, %v590
        %v592 = vpop.f32.mrb[0].mxu0
        %v593 = vpop.f32.mrb[0].mxu0
        %v594 = vadd.f32 %v357, %v593
        %v595 = vpop.f32.mrb[0].mxu0
        %596 = vmatprep.mubr.bf16.mxu0 0
        %597 = vmatmul.mubr.bf16.gmra.mrb[0].mxu0 %v477
        %v598 = vpop.f32.mrb[0].mxu0
        %v599 = vadd.f32 %v357, %v598
        %v600 = vpop.f32.mrb[0].mxu0
        %v601 = vpop.f32.mrb[0].mxu0
        %v602 = vadd.f32 %v357, %v601
        %v603 = vpop.f32.mrb[0].mxu0
        %604 = vmatprep.mubr.bf16.mxu0 0
        %605 = vmatmul.mubr.bf16.gmra.mrb[0].mxu0 %v480
        %v606 = vpop.f32.mrb[0].mxu0
        %v607 = vadd.f32 %v357, %v606
        %v608 = vpop.f32.mrb[0].mxu0
        %v609 = vpop.f32.mrb[0].mxu0
        %v610 = vadd.f32 %v357, %v609
        %v611 = vpop.f32.mrb[0].mxu0
        %612 = vmatprep.mubr.bf16.mxu0 0
        %613 = vmatmul.mubr.bf16.gmra.mrb[0].mxu0 %v483
        %v614 = vpop.f32.mrb[0].mxu0
        %v615 = vadd.f32 %v357, %v614
        %v616 = vpop.f32.mrb[0].mxu0
        %v617 = vpop.f32.mrb[0].mxu0
        %v618 = vadd.f32 %v357, %v617
        %v619 = vpop.f32.mrb[0].mxu0
        %620 = vmatprep.mubr.bf16.mxu0 0
        %621 = vmatmul.mubr.bf16.gmra.mrb[0].mxu0 %v486
        %v622 = vpop.f32.mrb[0].mxu0
        %v623 = vadd.f32 %v357, %v622
        %v624 = vpop.f32.mrb[0].mxu0
        %v625 = vpop.f32.mrb[0].mxu0
        %v626 = vadd.f32 %v357, %v625
        %v627 = vpop.f32.mrb[0].mxu0
        %628 = vmatprep.mubr.bf16.mxu0 0
        %629 = vmatmul.mubr.bf16.gmra.mrb[0].mxu0 %v489
        %v630 = vpop.f32.mrb[0].mxu0
        %v631 = vadd.f32 %v357, %v630
        %v632 = vpop.f32.mrb[0].mxu0
        %v633 = vpop.f32.mrb[0].mxu0
        %v634 = vadd.f32 %v357, %v633
        %v635 = vpop.f32.mrb[0].mxu0
        %636 = vmatprep.mubr.bf16.mxu0 0
        %637 = vmatmul.mubr.bf16.gmra.mrb[0].mxu0 %v492
        %v638 = vpop.f32.mrb[0].mxu0
        %v639 = vadd.f32 %v357, %v638
        %v640 = vpop.f32.mrb[0].mxu0
        %v641 = vpop.f32.mrb[0].mxu0
        %v642 = vadd.f32 %v357, %v641
        %v643 = vpop.f32.mrb[0].mxu0
        %644 = vmatprep.mubr.bf16.mxu0 0
        %645 = vmatmul.mubr.bf16.gmra.mrb[0].mxu0 %v495
        %v646 = vpop.f32.mrb[0].mxu0
        %v647 = vadd.f32 %v357, %v646
        %v648 = vpop.f32.mrb[0].mxu0
        %v649 = vpop.f32.mrb[0].mxu0
        %v650 = vadd.f32 %v357, %v649
        %v651 = vpop.f32.mrb[0].mxu0
        %652 = vmatprep.mubr.bf16.mxu0 0
        %653 = vmatmul.mubr.bf16.gmra.mrb[0].mxu0 %v498
        %v654 = vpop.f32.mrb[0].mxu0
        %v655 = vadd.f32 %v357, %v654
        %v656 = vpop.f32.mrb[0].mxu0
        %v657 = vpop.f32.mrb[0].mxu0
        %v658 = vadd.f32 %v357, %v657
        %v659 = vpop.f32.mrb[0].mxu0
        %660 = vdwg.mxu0
        %v661 = vsub.f32 0.0, %v535
        %v662 = vsub.f32 0.0, %v538
        %v663 = vsub.f32 0.0, %v543
        %v664 = vsub.f32 0.0, %v546
        %v665 = vsub.f32 0.0, %v551
        %v666 = vsub.f32 0.0, %v554
        %v667 = vsub.f32 0.0, %v559
        %v668 = vsub.f32 0.0, %v562
        %v669 = vsub.f32 0.0, %v567
        %v670 = vsub.f32 0.0, %v570
        %v671 = vsub.f32 0.0, %v575
        %v672 = vsub.f32 0.0, %v578
        %v673 = vsub.f32 0.0, %v583
        %v674 = vsub.f32 0.0, %v586
        %v675 = vsub.f32 0.0, %v591
        %v676 = vsub.f32 0.0, %v594
        %v677 = vsub.f32 0.0, %v599
        %v678 = vsub.f32 0.0, %v602
        %v679 = vsub.f32 0.0, %v607
        %v680 = vsub.f32 0.0, %v610
        %v681 = vsub.f32 0.0, %v615
        %v682 = vsub.f32 0.0, %v618
        %v683 = vsub.f32 0.0, %v623
        %v684 = vsub.f32 0.0, %v626
        %v685 = vsub.f32 0.0, %v631
        %v686 = vsub.f32 0.0, %v634
        %v687 = vsub.f32 0.0, %v639
        %v688 = vsub.f32 0.0, %v642
        %v689 = vsub.f32 0.0, %v647
        %v690 = vsub.f32 0.0, %v650
        %v691 = vsub.f32 0.0, %v655
        %v692 = vsub.f32 0.0, %v658
        %v693 = vmul.f32 %v661, 1.442695
        %v694 = vpow.pop %v693
        %v695 = vmul.f32 %v662, 1.442695
        %v696 = vpow.pop %v695
        %v697 = vmul.f32 %v663, 1.442695
        %v698 = vpow.pop %v697
        %v699 = vmul.f32 %v664, 1.442695
        %v700 = vpow.pop %v699
        %v701 = vmul.f32 %v665, 1.442695
        %v702 = vpow.pop %v701
        %v703 = vmul.f32 %v666, 1.442695
        %v704 = vpow.pop %v703
        %v705 = vmul.f32 %v667, 1.442695
        %v706 = vpow.pop %v705
        %v707 = vmul.f32 %v668, 1.442695
        %v708 = vpow.pop %v707
        %v709 = vmul.f32 %v669, 1.442695
        %v710 = vpow.pop %v709
        %v711 = vmul.f32 %v670, 1.442695
        %v712 = vpow.pop %v711
        %v713 = vmul.f32 %v671, 1.442695
        %v714 = vpow.pop %v713
        %v715 = vmul.f32 %v672, 1.442695
        %v716 = vpow.pop %v715
        %v717 = vmul.f32 %v673, 1.442695
        %v718 = vpow.pop %v717
        %v719 = vmul.f32 %v674, 1.442695
        %v720 = vpow.pop %v719
        %v721 = vmul.f32 %v675, 1.442695
        %v722 = vpow.pop %v721
        %v723 = vmul.f32 %v676, 1.442695
        %v724 = vpow.pop %v723
        %v725 = vmul.f32 %v677, 1.442695
        %v726 = vpow.pop %v725
        %v727 = vmul.f32 %v678, 1.442695
        %v728 = vpow.pop %v727
        %v729 = vmul.f32 %v679, 1.442695
        %v730 = vpow.pop %v729
        %v731 = vmul.f32 %v680, 1.442695
        %v732 = vpow.pop %v731
        %v733 = vmul.f32 %v681, 1.442695
        %v734 = vpow.pop %v733
        %v735 = vmul.f32 %v682, 1.442695
        %v736 = vpow.pop %v735
        %v737 = vmul.f32 %v683, 1.442695
        %v738 = vpow.pop %v737
        %v739 = vmul.f32 %v684, 1.442695
        %v740 = vpow.pop %v739
        %v741 = vmul.f32 %v685, 1.442695
        %v742 = vpow.pop %v741
        %v743 = vmul.f32 %v686, 1.442695
        %v744 = vpow.pop %v743
        %v745 = vmul.f32 %v687, 1.442695
        %v746 = vpow.pop %v745
        %v747 = vmul.f32 %v688, 1.442695
        %v748 = vpow.pop %v747
        %v749 = vmul.f32 %v689, 1.442695
        %v750 = vpow.pop %v749
        %v751 = vmul.f32 %v690, 1.442695
        %v752 = vpow.pop %v751
        %v753 = vmul.f32 %v691, 1.442695
        %v754 = vpow.pop %v753
        %v755 = vmul.f32 %v692, 1.442695
        %v756 = vpow.pop %v755
        %v757 = vadd.f32 %v694, 1.0
        %v758 = vadd.f32 %v696, 1.0
        %v759 = vadd.f32 %v698, 1.0
        %v760 = vadd.f32 %v700, 1.0
        %v761 = vadd.f32 %v702, 1.0
        %v762 = vadd.f32 %v704, 1.0
        %v763 = vadd.f32 %v706, 1.0
        %v764 = vadd.f32 %v708, 1.0
        %v765 = vadd.f32 %v710, 1.0
        %v766 = vadd.f32 %v712, 1.0
        %v767 = vadd.f32 %v714, 1.0
        %v768 = vadd.f32 %v716, 1.0
        %v769 = vadd.f32 %v718, 1.0
        %v770 = vadd.f32 %v720, 1.0
        %v771 = vadd.f32 %v722, 1.0
        %v772 = vadd.f32 %v724, 1.0
        %v773 = vadd.f32 %v726, 1.0
        %v774 = vadd.f32 %v728, 1.0
        %v775 = vadd.f32 %v730, 1.0
        %v776 = vadd.f32 %v732, 1.0
        %v777 = vadd.f32 %v734, 1.0
        %v778 = vadd.f32 %v736, 1.0
        %v779 = vadd.f32 %v738, 1.0
        %v780 = vadd.f32 %v740, 1.0
        %v781 = vadd.f32 %v742, 1.0
        %v782 = vadd.f32 %v744, 1.0
        %v783 = vadd.f32 %v746, 1.0
        %v784 = vadd.f32 %v748, 1.0
        %v785 = vadd.f32 %v750, 1.0
        %v786 = vadd.f32 %v752, 1.0
        %v787 = vadd.f32 %v754, 1.0
        %v788 = vadd.f32 %v756, 1.0
        %v789 = vrcp.pop %v757
        %v790 = vrcp.pop %v758
        %v791 = vrcp.pop %v759
        %v792 = vrcp.pop %v760
        %v793 = vrcp.pop %v761
        %v794 = vrcp.pop %v762
        %v795 = vrcp.pop %v763
        %v796 = vrcp.pop %v764
        %v797 = vrcp.pop %v765
        %v798 = vrcp.pop %v766
        %v799 = vrcp.pop %v767
        %v800 = vrcp.pop %v768
        %v801 = vrcp.pop %v769
        %v802 = vrcp.pop %v770
        %v803 = vrcp.pop %v771
        %v804 = vrcp.pop %v772
        %v805 = vrcp.pop %v773
        %v806 = vrcp.pop %v774
        %v807 = vrcp.pop %v775
        %v808 = vrcp.pop %v776
        %v809 = vrcp.pop %v777
        %v810 = vrcp.pop %v778
        %v811 = vrcp.pop %v779
        %v812 = vrcp.pop %v780
        %v813 = vrcp.pop %v781
        %v814 = vrcp.pop %v782
        %v815 = vrcp.pop %v783
        %v816 = vrcp.pop %v784
        %v817 = vrcp.pop %v785
        %v818 = vrcp.pop %v786
        %v819 = vrcp.pop %v787
        %v820 = vrcp.pop %v788
        %v821 = vmul.f32 %v535, %v789
        %v822 = vmul.f32 %v538, %v790
        %v823 = vmul.f32 %v543, %v791
        %v824 = vmul.f32 %v546, %v792
        %v825 = vmul.f32 %v551, %v793
        %v826 = vmul.f32 %v554, %v794
        %v827 = vmul.f32 %v559, %v795
        %v828 = vmul.f32 %v562, %v796
        %v829 = vmul.f32 %v567, %v797
        %v830 = vmul.f32 %v570, %v798
        %v831 = vmul.f32 %v575, %v799
        %v832 = vmul.f32 %v578, %v800
        %v833 = vmul.f32 %v583, %v801
        %v834 = vmul.f32 %v586, %v802
        %v835 = vmul.f32 %v591, %v803
        %v836 = vmul.f32 %v594, %v804
        %v837 = vmul.f32 %v599, %v805
        %v838 = vmul.f32 %v602, %v806
        %v839 = vmul.f32 %v607, %v807
        %v840 = vmul.f32 %v610, %v808
        %v841 = vmul.f32 %v615, %v809
        %v842 = vmul.f32 %v618, %v810
        %v843 = vmul.f32 %v623, %v811
        %v844 = vmul.f32 %v626, %v812
        %v845 = vmul.f32 %v631, %v813
        %v846 = vmul.f32 %v634, %v814
        %v847 = vmul.f32 %v639, %v815
        %v848 = vmul.f32 %v642, %v816
        %v849 = vmul.f32 %v647, %v817
        %v850 = vmul.f32 %v650, %v818
        %v851 = vmul.f32 %v655, %v819
        %v852 = vmul.f32 %v658, %v820
        %v853 = vpack.c.bf16 %v822, %v821
        %v854 = vpack.c.bf16 %v824, %v823
        %v855 = vpack.c.bf16 %v826, %v825
        %v856 = vpack.c.bf16 %v828, %v827
        %v857 = vpack.c.bf16 %v830, %v829
        %v858 = vpack.c.bf16 %v832, %v831
        %v859 = vpack.c.bf16 %v834, %v833
        %v860 = vpack.c.bf16 %v836, %v835
        %v861 = vpack.c.bf16 %v838, %v837
        %v862 = vpack.c.bf16 %v840, %v839
        %v863 = vpack.c.bf16 %v842, %v841
        %v864 = vpack.c.bf16 %v844, %v843
        %v865 = vpack.c.bf16 %v846, %v845
        %v866 = vpack.c.bf16 %v848, %v847
        %v867 = vpack.c.bf16 %v850, %v849
        %v868 = vpack.c.bf16 %v852, %v851
        %v869 = vld [vmem:[%s3] sm:$0xff]
        %v870 = vld [vmem:[%s3 + $0x8] sm:$0xff]
        %v871 = vld [vmem:[%s3 + $0x10] sm:$0xff]
        %v872 = vld [vmem:[%s3 + $0x18] sm:$0xff]
        %v873 = vld [vmem:[%s3 + $0x20] sm:$0xff]
        %v874 = vld [vmem:[%s3 + $0x28] sm:$0xff]
        %v875 = vld [vmem:[%s3 + $0x30] sm:$0xff]
        %v876 = vld [vmem:[%s3 + $0x38] sm:$0xff]
        %v877 = vld [vmem:[%s3 + $0x40] sm:$0xff]
        %v878 = vld [vmem:[%s3 + $0x48] sm:$0xff]
        %v879 = vld [vmem:[%s3 + $0x50] sm:$0xff]
        %v880 = vld [vmem:[%s3 + $0x58] sm:$0xff]
        %v881 = vld [vmem:[%s3 + $0x60] sm:$0xff]
        %v882 = vld [vmem:[%s3 + $0x68] sm:$0xff]
        %v883 = vld [vmem:[%s3 + $0x70] sm:$0xff]
        %v884 = vld [vmem:[%s3 + $0x78] sm:$0xff]
        %v885 = vld [vmem:[%s3 + $0x80] sm:$0xff]
        %v886 = vld [vmem:[%s3 + $0x88] sm:$0xff]
        %v887 = vld [vmem:[%s3 + $0x90] sm:$0xff]
        %v888 = vld [vmem:[%s3 + $0x98] sm:$0xff]
        %v889 = vld [vmem:[%s4] sm:$0xff]
        %v890 = vld [vmem:[%s4 + $0x8] sm:$0x3]
        %v893 = vlaneseq
        %v894 = vshrl.u32 %v893, 7
        %v895 = vsub.s32 0, %v894
        %v896 = vrot.slane %v889, %v895
        %v897 = vlaneseq
        %v898 = vshrl.u32 %v897, 7
        %v899 = vsub.s32 1, %v898
        %v900 = vrot.slane %v889, %v899
        %v901 = vlaneseq
        %v902 = vshrl.u32 %v901, 7
        %v903 = vsub.s32 2, %v902
        %v904 = vrot.slane %v889, %v903
        %v905 = vlaneseq
        %v906 = vshrl.u32 %v905, 7
        %v907 = vsub.s32 3, %v906
        %v908 = vrot.slane %v889, %v907
        %v909 = vlaneseq
        %v910 = vshrl.u32 %v909, 7
        %v911 = vsub.s32 4, %v910
        %v912 = vrot.slane %v889, %v911
        %v913 = vlaneseq
        %v914 = vshrl.u32 %v913, 7
        %v915 = vsub.s32 5, %v914
        %v916 = vrot.slane %v889, %v915
        %v917 = vlaneseq
        %v918 = vshrl.u32 %v917, 7
        %v919 = vsub.s32 6, %v918
        %v920 = vrot.slane %v889, %v919
        %v921 = vlaneseq
        %v922 = vshrl.u32 %v921, 7
        %v923 = vsub.s32 7, %v922
        %v924 = vrot.slane %v889, %v923
        %v925 = vlaneseq
        %v926 = vshrl.u32 %v925, 7
        %v927 = vsub.s32 0, %v926
        %v928 = vrot.slane %v890, %v927
        %v929 = vlaneseq
        %v930 = vshrl.u32 %v929, 7
        %v931 = vsub.s32 1, %v930
        %v932 = vrot.slane %v890, %v931
        %v963 = vunpack.c.l.b16 %v869
        %v964 = vunpack.c.h.b16 %v869
        %v965 = vunpack.c.l.b16 %v870
        %v966 = vunpack.c.h.b16 %v870
        %v967 = vunpack.c.l.b16 %v871
        %v968 = vunpack.c.h.b16 %v871
        %v969 = vunpack.c.l.b16 %v872
        %v970 = vunpack.c.h.b16 %v872
        %v971 = vunpack.c.l.b16 %v873
        %v972 = vunpack.c.h.b16 %v873
        %v973 = vunpack.c.l.b16 %v874
        %v974 = vunpack.c.h.b16 %v874
        %v975 = vunpack.c.l.b16 %v875
        %v976 = vunpack.c.h.b16 %v875
        %v977 = vunpack.c.l.b16 %v876
        %v978 = vunpack.c.h.b16 %v876
        %v979 = vunpack.c.l.b16 %v877
        %v980 = vunpack.c.h.b16 %v877
        %v981 = vunpack.c.l.b16 %v878
        %v982 = vunpack.c.h.b16 %v878
        %v983 = vunpack.c.l.b16 %v879
        %v984 = vunpack.c.h.b16 %v879
        %v985 = vunpack.c.l.b16 %v880
        %v986 = vunpack.c.h.b16 %v880
        %v987 = vunpack.c.l.b16 %v881
        %v988 = vunpack.c.h.b16 %v881
        %v989 = vunpack.c.l.b16 %v882
        %v990 = vunpack.c.h.b16 %v882
        %v991 = vunpack.c.l.b16 %v883
        %v992 = vunpack.c.h.b16 %v883
        %v993 = vunpack.c.l.b16 %v884
        %v994 = vunpack.c.h.b16 %v884
        %v995 = vunpack.c.l.b16 %v885
        %v996 = vunpack.c.h.b16 %v885
        %v997 = vunpack.c.l.b16 %v886
        %v998 = vunpack.c.h.b16 %v886
        %v999 = vunpack.c.l.b16 %v887
        %v1000 = vunpack.c.h.b16 %v887
        %v1001 = vunpack.c.l.b16 %v888
        %v1002 = vunpack.c.h.b16 %v888
        %v1003 = vpack.c.b16 %v973, %v963
        %v1004 = vpack.c.b16 %v974, %v964
        %v1005 = vpack.c.b16 %v975, %v965
        %v1006 = vpack.c.b16 %v976, %v966
        %v1007 = vpack.c.b16 %v977, %v967
        %v1008 = vpack.c.b16 %v978, %v968
        %v1009 = vpack.c.b16 %v979, %v969
        %v1010 = vpack.c.b16 %v980, %v970
        %v1011 = vpack.c.b16 %v981, %v971
        %v1012 = vpack.c.b16 %v982, %v972
        %v1013 = vpack.c.b16 %v993, %v983
        %v1014 = vpack.c.b16 %v994, %v984
        %v1015 = vpack.c.b16 %v995, %v985
        %v1016 = vpack.c.b16 %v996, %v986
        %v1017 = vpack.c.b16 %v997, %v987
        %v1018 = vpack.c.b16 %v998, %v988
        %v1019 = vpack.c.b16 %v999, %v989
        %v1020 = vpack.c.b16 %v1000, %v990
        %v1021 = vpack.c.b16 %v1001, %v991
        %v1022 = vpack.c.b16 %v1002, %v992
        %v1044 = vsel %vm451, %v853, 0
        %v1047 = vsel %vm451, %v854, 0
        %v1050 = vsel %vm451, %v855, 0
        %v1053 = vsel %vm451, %v856, 0
        %v1056 = vsel %vm451, %v857, 0
        %v1059 = vsel %vm451, %v858, 0
        %v1062 = vsel %vm451, %v859, 0
        %v1065 = vsel %vm451, %v860, 0
        %v1068 = vsel %vm451, %v861, 0
        %v1071 = vsel %vm451, %v862, 0
        %v1074 = vsel %vm451, %v863, 0
        %v1077 = vsel %vm451, %v864, 0
        %v1080 = vsel %vm451, %v865, 0
        %v1083 = vsel %vm451, %v866, 0
        %v1086 = vsel %vm451, %v867, 0
        %v1089 = vsel %vm451, %v868, 0
        %1091 = vmatprep.subr.bf16.mxu0 %v1004
        %1092 = vmatpush1.bf16.msra.mxu0 %v1003
        %1093 = vmatprep.subr.bf16.mxu0 %v1014
        %1094 = vmatpush1.bf16.msra.mxu0 %v1013
        %1095 = vmatprep.subr.bf16.mxu0 0
        %1096 = vmatpush1.bf16.msra.mxu0 0
        %1097 = vmatprep.subr.bf16.mxu0 0
        %1098 = vmatpush1.bf16.msra.mxu0 0
        %1099 = vmatprep.subr.bf16.mxu0 0
        %1100 = vmatpush1.bf16.msra.mxu0 0
        %1101 = vmatprep.subr.bf16.mxu0 0
        %1102 = vmatpush1.bf16.msra.mxu0 0
        %1103 = vmatprep.subr.bf16.mxu0 0
        %1104 = vmatpush1.bf16.msra.mxu0 0
        %1105 = vmatprep.subr.bf16.mxu0 0
        %1106 = vmatpush1.bf16.msra.mxu0 0
        %1107 = vmatprep.subr.bf16.mxu0 0
        %1108 = vmatpush1.bf16.msra.mxu0 0
        %1109 = vmatprep.subr.bf16.mxu0 0
        %1110 = vmatpush1.bf16.msra.mxu0 0
        %1111 = vmatprep.subr.bf16.mxu0 0
        %1112 = vmatpush1.bf16.msra.mxu0 0
        %1113 = vmatprep.subr.bf16.mxu0 0
        %1114 = vmatpush1.bf16.msra.mxu0 0
        %1115 = vmatprep.subr.bf16.mxu0 0
        %1116 = vmatpush1.bf16.msra.mxu0 0
        %1117 = vmatprep.subr.bf16.mxu0 0
        %1118 = vmatpush1.bf16.msra.mxu0 0
        %1119 = vmatprep.subr.bf16.mxu0 0
        %1120 = vmatpush1.bf16.msra.mxu0 0
        %1121 = vmatprep.subr.bf16.mxu0 0
        %1122 = vmatpush1.bf16.msra.mxu0 0
        %1123 = vmatprep.mubr.bf16.mxu0 0
        %1124 = vmatmul.mubr.bf16.gmra.mrb[0].mxu0 %v1044
        %v1125 = vpop.f32.mrb[0].mxu0
        %v1126 = vadd.f32 %v896, %v1125
        %v1127 = vpop.f32.mrb[0].mxu0
        %v1128 = vadd.f32 %v900, %v1127
        %v1129 = vpop.f32.mrb[0].mxu0
        %v1130 = vadd.f32 %v896, %v1129
        %v1131 = vpop.f32.mrb[0].mxu0
        %v1132 = vadd.f32 %v900, %v1131
        %1133 = vmatprep.mubr.bf16.mxu0 0
        %1134 = vmatmul.mubr.bf16.gmra.mrb[0].mxu0 %v1047
        %v1135 = vpop.f32.mrb[0].mxu0
        %v1136 = vadd.f32 %v896, %v1135
        %v1137 = vpop.f32.mrb[0].mxu0
        %v1138 = vadd.f32 %v900, %v1137
        %v1139 = vpop.f32.mrb[0].mxu0
        %v1140 = vadd.f32 %v896, %v1139
        %v1141 = vpop.f32.mrb[0].mxu0
        %v1142 = vadd.f32 %v900, %v1141
        %1143 = vmatprep.mubr.bf16.mxu0 0
        %1144 = vmatmul.mubr.bf16.gmra.mrb[0].mxu0 %v1050
        %v1145 = vpop.f32.mrb[0].mxu0
        %v1146 = vadd.f32 %v896, %v1145
        %v1147 = vpop.f32.mrb[0].mxu0
        %v1148 = vadd.f32 %v900, %v1147
        %v1149 = vpop.f32.mrb[0].mxu0
        %v1150 = vadd.f32 %v896, %v1149
        %v1151 = vpop.f32.mrb[0].mxu0
        %v1152 = vadd.f32 %v900, %v1151
        %1153 = vmatprep.mubr.bf16.mxu0 0
        %1154 = vmatmul.mubr.bf16.gmra.mrb[0].mxu0 %v1053
        %v1155 = vpop.f32.mrb[0].mxu0
        %v1156 = vadd.f32 %v896, %v1155
        %v1157 = vpop.f32.mrb[0].mxu0
        %v1158 = vadd.f32 %v900, %v1157
        %v1159 = vpop.f32.mrb[0].mxu0
        %v1160 = vadd.f32 %v896, %v1159
        %v1161 = vpop.f32.mrb[0].mxu0
        %v1162 = vadd.f32 %v900, %v1161
        %1163 = vmatprep.mubr.bf16.mxu0 0
        %1164 = vmatmul.mubr.bf16.gmra.mrb[0].mxu0 %v1056
        %v1165 = vpop.f32.mrb[0].mxu0
        %v1166 = vadd.f32 %v896, %v1165
        %v1167 = vpop.f32.mrb[0].mxu0
        %v1168 = vadd.f32 %v900, %v1167
        %v1169 = vpop.f32.mrb[0].mxu0
        %v1170 = vadd.f32 %v896, %v1169
        %v1171 = vpop.f32.mrb[0].mxu0
        %v1172 = vadd.f32 %v900, %v1171
        %1173 = vmatprep.mubr.bf16.mxu0 0
        %1174 = vmatmul.mubr.bf16.gmra.mrb[0].mxu0 %v1059
        %v1175 = vpop.f32.mrb[0].mxu0
        %v1176 = vadd.f32 %v896, %v1175
        %v1177 = vpop.f32.mrb[0].mxu0
        %v1178 = vadd.f32 %v900, %v1177
        %v1179 = vpop.f32.mrb[0].mxu0
        %v1180 = vadd.f32 %v896, %v1179
        %v1181 = vpop.f32.mrb[0].mxu0
        %v1182 = vadd.f32 %v900, %v1181
        %1183 = vmatprep.mubr.bf16.mxu0 0
        %1184 = vmatmul.mubr.bf16.gmra.mrb[0].mxu0 %v1062
        %v1185 = vpop.f32.mrb[0].mxu0
        %v1186 = vadd.f32 %v896, %v1185
        %v1187 = vpop.f32.mrb[0].mxu0
        %v1188 = vadd.f32 %v900, %v1187
        %v1189 = vpop.f32.mrb[0].mxu0
        %v1190 = vadd.f32 %v896, %v1189
        %v1191 = vpop.f32.mrb[0].mxu0
        %v1192 = vadd.f32 %v900, %v1191
        %1193 = vmatprep.mubr.bf16.mxu0 0
        %1194 = vmatmul.mubr.bf16.gmra.mrb[0].mxu0 %v1065
        %v1195 = vpop.f32.mrb[0].mxu0
        %v1196 = vadd.f32 %v896, %v1195
        %v1197 = vpop.f32.mrb[0].mxu0
        %v1198 = vadd.f32 %v900, %v1197
        %v1199 = vpop.f32.mrb[0].mxu0
        %v1200 = vadd.f32 %v896, %v1199
        %v1201 = vpop.f32.mrb[0].mxu0
        %v1202 = vadd.f32 %v900, %v1201
        %1203 = vmatprep.mubr.bf16.mxu0 0
        %1204 = vmatmul.mubr.bf16.gmra.mrb[0].mxu0 %v1068
        %v1205 = vpop.f32.mrb[0].mxu0
        %v1206 = vadd.f32 %v896, %v1205
        %v1207 = vpop.f32.mrb[0].mxu0
        %v1208 = vadd.f32 %v900, %v1207
        %v1209 = vpop.f32.mrb[0].mxu0
        %v1210 = vadd.f32 %v896, %v1209
        %v1211 = vpop.f32.mrb[0].mxu0
        %v1212 = vadd.f32 %v900, %v1211
        %1213 = vmatprep.mubr.bf16.mxu0 0
        %1214 = vmatmul.mubr.bf16.gmra.mrb[0].mxu0 %v1071
        %v1215 = vpop.f32.mrb[0].mxu0
        %v1216 = vadd.f32 %v896, %v1215
        %v1217 = vpop.f32.mrb[0].mxu0
        %v1218 = vadd.f32 %v900, %v1217
        %v1219 = vpop.f32.mrb[0].mxu0
        %v1220 = vadd.f32 %v896, %v1219
        %v1221 = vpop.f32.mrb[0].mxu0
        %v1222 = vadd.f32 %v900, %v1221
        %1223 = vmatprep.mubr.bf16.mxu0 0
        %1224 = vmatmul.mubr.bf16.gmra.mrb[0].mxu0 %v1074
        %v1225 = vpop.f32.mrb[0].mxu0
        %v1226 = vadd.f32 %v896, %v1225
        %v1227 = vpop.f32.mrb[0].mxu0
        %v1228 = vadd.f32 %v900, %v1227
        %v1229 = vpop.f32.mrb[0].mxu0
        %v1230 = vadd.f32 %v896, %v1229
        %v1231 = vpop.f32.mrb[0].mxu0
        %v1232 = vadd.f32 %v900, %v1231
        %1233 = vmatprep.mubr.bf16.mxu0 0
        %1234 = vmatmul.mubr.bf16.gmra.mrb[0].mxu0 %v1077
        %v1235 = vpop.f32.mrb[0].mxu0
        %v1236 = vadd.f32 %v896, %v1235
        %v1237 = vpop.f32.mrb[0].mxu0
        %v1238 = vadd.f32 %v900, %v1237
        %v1239 = vpop.f32.mrb[0].mxu0
        %v1240 = vadd.f32 %v896, %v1239
        %v1241 = vpop.f32.mrb[0].mxu0
        %v1242 = vadd.f32 %v900, %v1241
        %1243 = vmatprep.mubr.bf16.mxu0 0
        %1244 = vmatmul.mubr.bf16.gmra.mrb[0].mxu0 %v1080
        %v1245 = vpop.f32.mrb[0].mxu0
        %v1246 = vadd.f32 %v896, %v1245
        %v1247 = vpop.f32.mrb[0].mxu0
        %v1248 = vadd.f32 %v900, %v1247
        %v1249 = vpop.f32.mrb[0].mxu0
        %v1250 = vadd.f32 %v896, %v1249
        %v1251 = vpop.f32.mrb[0].mxu0
        %v1252 = vadd.f32 %v900, %v1251
        %1253 = vmatprep.mubr.bf16.mxu0 0
        %1254 = vmatmul.mubr.bf16.gmra.mrb[0].mxu0 %v1083
        %v1255 = vpop.f32.mrb[0].mxu0
        %v1256 = vadd.f32 %v896, %v1255
        %v1257 = vpop.f32.mrb[0].mxu0
        %v1258 = vadd.f32 %v900, %v1257
        %v1259 = vpop.f32.mrb[0].mxu0
        %v1260 = vadd.f32 %v896, %v1259
        %v1261 = vpop.f32.mrb[0].mxu0
        %v1262 = vadd.f32 %v900, %v1261
        %1263 = vmatprep.mubr.bf16.mxu0 0
        %1264 = vmatmul.mubr.bf16.gmra.mrb[0].mxu0 %v1086
        %v1265 = vpop.f32.mrb[0].mxu0
        %v1266 = vadd.f32 %v896, %v1265
        %v1267 = vpop.f32.mrb[0].mxu0
        %v1268 = vadd.f32 %v900, %v1267
        %v1269 = vpop.f32.mrb[0].mxu0
        %v1270 = vadd.f32 %v896, %v1269
        %v1271 = vpop.f32.mrb[0].mxu0
        %v1272 = vadd.f32 %v900, %v1271
        %1273 = vmatprep.mubr.bf16.mxu0 0
        %1274 = vmatmul.mubr.bf16.gmra.mrb[0].mxu0 %v1089
        %v1275 = vpop.f32.mrb[0].mxu0
        %v1276 = vadd.f32 %v896, %v1275
        %v1277 = vpop.f32.mrb[0].mxu0
        %v1278 = vadd.f32 %v900, %v1277
        %v1279 = vpop.f32.mrb[0].mxu0
        %v1280 = vadd.f32 %v896, %v1279
        %v1281 = vpop.f32.mrb[0].mxu0
        %v1282 = vadd.f32 %v900, %v1281
        %1283 = vdwg.mxu0
        %1284 = vmatprep.subr.bf16.mxu0 %v1006
        %1285 = vmatpush1.bf16.msra.mxu0 %v1005
        %1286 = vmatprep.subr.bf16.mxu0 %v1016
        %1287 = vmatpush1.bf16.msra.mxu0 %v1015
        %1288 = vmatprep.subr.bf16.mxu0 0
        %1289 = vmatpush1.bf16.msra.mxu0 0
        %1290 = vmatprep.subr.bf16.mxu0 0
        %1291 = vmatpush1.bf16.msra.mxu0 0
        %1292 = vmatprep.subr.bf16.mxu0 0
        %1293 = vmatpush1.bf16.msra.mxu0 0
        %1294 = vmatprep.subr.bf16.mxu0 0
        %1295 = vmatpush1.bf16.msra.mxu0 0
        %1296 = vmatprep.subr.bf16.mxu0 0
        %1297 = vmatpush1.bf16.msra.mxu0 0
        %1298 = vmatprep.subr.bf16.mxu0 0
        %1299 = vmatpush1.bf16.msra.mxu0 0
        %1300 = vmatprep.subr.bf16.mxu0 0
        %1301 = vmatpush1.bf16.msra.mxu0 0
        %1302 = vmatprep.subr.bf16.mxu0 0
        %1303 = vmatpush1.bf16.msra.mxu0 0
        %1304 = vmatprep.subr.bf16.mxu0 0
        %1305 = vmatpush1.bf16.msra.mxu0 0
        %1306 = vmatprep.subr.bf16.mxu0 0
        %1307 = vmatpush1.bf16.msra.mxu0 0
        %1308 = vmatprep.subr.bf16.mxu0 0
        %1309 = vmatpush1.bf16.msra.mxu0 0
        %1310 = vmatprep.subr.bf16.mxu0 0
        %1311 = vmatpush1.bf16.msra.mxu0 0
        %1312 = vmatprep.subr.bf16.mxu0 0
        %1313 = vmatpush1.bf16.msra.mxu0 0
        %1314 = vmatprep.subr.bf16.mxu0 0
        %1315 = vmatpush1.bf16.msra.mxu0 0
        %1316 = vmatprep.mubr.bf16.mxu0 0
        %1317 = vmatmul.mubr.bf16.gmra.mrb[0].mxu0 %v1044
        %v1318 = vpop.f32.mrb[0].mxu0
        %v1319 = vadd.f32 %v904, %v1318
        %v1320 = vpop.f32.mrb[0].mxu0
        %v1321 = vadd.f32 %v908, %v1320
        %v1322 = vpop.f32.mrb[0].mxu0
        %v1323 = vadd.f32 %v904, %v1322
        %v1324 = vpop.f32.mrb[0].mxu0
        %v1325 = vadd.f32 %v908, %v1324
        %1326 = vmatprep.mubr.bf16.mxu0 0
        %1327 = vmatmul.mubr.bf16.gmra.mrb[0].mxu0 %v1047
        %v1328 = vpop.f32.mrb[0].mxu0
        %v1329 = vadd.f32 %v904, %v1328
        %v1330 = vpop.f32.mrb[0].mxu0
        %v1331 = vadd.f32 %v908, %v1330
        %v1332 = vpop.f32.mrb[0].mxu0
        %v1333 = vadd.f32 %v904, %v1332
        %v1334 = vpop.f32.mrb[0].mxu0
        %v1335 = vadd.f32 %v908, %v1334
        %1336 = vmatprep.mubr.bf16.mxu0 0
        %1337 = vmatmul.mubr.bf16.gmra.mrb[0].mxu0 %v1050
        %v1338 = vpop.f32.mrb[0].mxu0
        %v1339 = vadd.f32 %v904, %v1338
        %v1340 = vpop.f32.mrb[0].mxu0
        %v1341 = vadd.f32 %v908, %v1340
        %v1342 = vpop.f32.mrb[0].mxu0
        %v1343 = vadd.f32 %v904, %v1342
        %v1344 = vpop.f32.mrb[0].mxu0
        %v1345 = vadd.f32 %v908, %v1344
        %1346 = vmatprep.mubr.bf16.mxu0 0
        %1347 = vmatmul.mubr.bf16.gmra.mrb[0].mxu0 %v1053
        %v1348 = vpop.f32.mrb[0].mxu0
        %v1349 = vadd.f32 %v904, %v1348
        %v1350 = vpop.f32.mrb[0].mxu0
        %v1351 = vadd.f32 %v908, %v1350
        %v1352 = vpop.f32.mrb[0].mxu0
        %v1353 = vadd.f32 %v904, %v1352
        %v1354 = vpop.f32.mrb[0].mxu0
        %v1355 = vadd.f32 %v908, %v1354
        %1356 = vmatprep.mubr.bf16.mxu0 0
        %1357 = vmatmul.mubr.bf16.gmra.mrb[0].mxu0 %v1056
        %v1358 = vpop.f32.mrb[0].mxu0
        %v1359 = vadd.f32 %v904, %v1358
        %v1360 = vpop.f32.mrb[0].mxu0
        %v1361 = vadd.f32 %v908, %v1360
        %v1362 = vpop.f32.mrb[0].mxu0
        %v1363 = vadd.f32 %v904, %v1362
        %v1364 = vpop.f32.mrb[0].mxu0
        %v1365 = vadd.f32 %v908, %v1364
        %1366 = vmatprep.mubr.bf16.mxu0 0
        %1367 = vmatmul.mubr.bf16.gmra.mrb[0].mxu0 %v1059
        %v1368 = vpop.f32.mrb[0].mxu0
        %v1369 = vadd.f32 %v904, %v1368
        %v1370 = vpop.f32.mrb[0].mxu0
        %v1371 = vadd.f32 %v908, %v1370
        %v1372 = vpop.f32.mrb[0].mxu0
        %v1373 = vadd.f32 %v904, %v1372
        %v1374 = vpop.f32.mrb[0].mxu0
        %v1375 = vadd.f32 %v908, %v1374
        %1376 = vmatprep.mubr.bf16.mxu0 0
        %1377 = vmatmul.mubr.bf16.gmra.mrb[0].mxu0 %v1062
        %v1378 = vpop.f32.mrb[0].mxu0
        %v1379 = vadd.f32 %v904, %v1378
        %v1380 = vpop.f32.mrb[0].mxu0
        %v1381 = vadd.f32 %v908, %v1380
        %v1382 = vpop.f32.mrb[0].mxu0
        %v1383 = vadd.f32 %v904, %v1382
        %v1384 = vpop.f32.mrb[0].mxu0
        %v1385 = vadd.f32 %v908, %v1384
        %1386 = vmatprep.mubr.bf16.mxu0 0
        %1387 = vmatmul.mubr.bf16.gmra.mrb[0].mxu0 %v1065
        %v1388 = vpop.f32.mrb[0].mxu0
        %v1389 = vadd.f32 %v904, %v1388
        %v1390 = vpop.f32.mrb[0].mxu0
        %v1391 = vadd.f32 %v908, %v1390
        %v1392 = vpop.f32.mrb[0].mxu0
        %v1393 = vadd.f32 %v904, %v1392
        %v1394 = vpop.f32.mrb[0].mxu0
        %v1395 = vadd.f32 %v908, %v1394
        %1396 = vmatprep.mubr.bf16.mxu0 0
        %1397 = vmatmul.mubr.bf16.gmra.mrb[0].mxu0 %v1068
        %v1398 = vpop.f32.mrb[0].mxu0
        %v1399 = vadd.f32 %v904, %v1398
        %v1400 = vpop.f32.mrb[0].mxu0
        %v1401 = vadd.f32 %v908, %v1400
        %v1402 = vpop.f32.mrb[0].mxu0
        %v1403 = vadd.f32 %v904, %v1402
        %v1404 = vpop.f32.mrb[0].mxu0
        %v1405 = vadd.f32 %v908, %v1404
        %1406 = vmatprep.mubr.bf16.mxu0 0
        %1407 = vmatmul.mubr.bf16.gmra.mrb[0].mxu0 %v1071
        %v1408 = vpop.f32.mrb[0].mxu0
        %v1409 = vadd.f32 %v904, %v1408
        %v1410 = vpop.f32.mrb[0].mxu0
        %v1411 = vadd.f32 %v908, %v1410
        %v1412 = vpop.f32.mrb[0].mxu0
        %v1413 = vadd.f32 %v904, %v1412
        %v1414 = vpop.f32.mrb[0].mxu0
        %v1415 = vadd.f32 %v908, %v1414
        %1416 = vmatprep.mubr.bf16.mxu0 0
        %1417 = vmatmul.mubr.bf16.gmra.mrb[0].mxu0 %v1074
        %v1418 = vpop.f32.mrb[0].mxu0
        %v1419 = vadd.f32 %v904, %v1418
        %v1420 = vpop.f32.mrb[0].mxu0
        %v1421 = vadd.f32 %v908, %v1420
        %v1422 = vpop.f32.mrb[0].mxu0
        %v1423 = vadd.f32 %v904, %v1422
        %v1424 = vpop.f32.mrb[0].mxu0
        %v1425 = vadd.f32 %v908, %v1424
        %1426 = vmatprep.mubr.bf16.mxu0 0
        %1427 = vmatmul.mubr.bf16.gmra.mrb[0].mxu0 %v1077
        %v1428 = vpop.f32.mrb[0].mxu0
        %v1429 = vadd.f32 %v904, %v1428
        %v1430 = vpop.f32.mrb[0].mxu0
        %v1431 = vadd.f32 %v908, %v1430
        %v1432 = vpop.f32.mrb[0].mxu0
        %v1433 = vadd.f32 %v904, %v1432
        %v1434 = vpop.f32.mrb[0].mxu0
        %v1435 = vadd.f32 %v908, %v1434
        %1436 = vmatprep.mubr.bf16.mxu0 0
        %1437 = vmatmul.mubr.bf16.gmra.mrb[0].mxu0 %v1080
        %v1438 = vpop.f32.mrb[0].mxu0
        %v1439 = vadd.f32 %v904, %v1438
        %v1440 = vpop.f32.mrb[0].mxu0
        %v1441 = vadd.f32 %v908, %v1440
        %v1442 = vpop.f32.mrb[0].mxu0
        %v1443 = vadd.f32 %v904, %v1442
        %v1444 = vpop.f32.mrb[0].mxu0
        %v1445 = vadd.f32 %v908, %v1444
        %1446 = vmatprep.mubr.bf16.mxu0 0
        %1447 = vmatmul.mubr.bf16.gmra.mrb[0].mxu0 %v1083
        %v1448 = vpop.f32.mrb[0].mxu0
        %v1449 = vadd.f32 %v904, %v1448
        %v1450 = vpop.f32.mrb[0].mxu0
        %v1451 = vadd.f32 %v908, %v1450
        %v1452 = vpop.f32.mrb[0].mxu0
        %v1453 = vadd.f32 %v904, %v1452
        %v1454 = vpop.f32.mrb[0].mxu0
        %v1455 = vadd.f32 %v908, %v1454
        %1456 = vmatprep.mubr.bf16.mxu0 0
        %1457 = vmatmul.mubr.bf16.gmra.mrb[0].mxu0 %v1086
        %v1458 = vpop.f32.mrb[0].mxu0
        %v1459 = vadd.f32 %v904, %v1458
        %v1460 = vpop.f32.mrb[0].mxu0
        %v1461 = vadd.f32 %v908, %v1460
        %v1462 = vpop.f32.mrb[0].mxu0
        %v1463 = vadd.f32 %v904, %v1462
        %v1464 = vpop.f32.mrb[0].mxu0
        %v1465 = vadd.f32 %v908, %v1464
        %1466 = vmatprep.mubr.bf16.mxu0 0
        %1467 = vmatmul.mubr.bf16.gmra.mrb[0].mxu0 %v1089
        %v1468 = vpop.f32.mrb[0].mxu0
        %v1469 = vadd.f32 %v904, %v1468
        %v1470 = vpop.f32.mrb[0].mxu0
        %v1471 = vadd.f32 %v908, %v1470
        %v1472 = vpop.f32.mrb[0].mxu0
        %v1473 = vadd.f32 %v904, %v1472
        %v1474 = vpop.f32.mrb[0].mxu0
        %v1475 = vadd.f32 %v908, %v1474
        %1476 = vdwg.mxu0
        %1477 = vmatprep.subr.bf16.mxu0 %v1008
        %1478 = vmatpush1.bf16.msra.mxu0 %v1007
        %1479 = vmatprep.subr.bf16.mxu0 %v1018
        %1480 = vmatpush1.bf16.msra.mxu0 %v1017
        %1481 = vmatprep.subr.bf16.mxu0 0
        %1482 = vmatpush1.bf16.msra.mxu0 0
        %1483 = vmatprep.subr.bf16.mxu0 0
        %1484 = vmatpush1.bf16.msra.mxu0 0
        %1485 = vmatprep.subr.bf16.mxu0 0
        %1486 = vmatpush1.bf16.msra.mxu0 0
        %1487 = vmatprep.subr.bf16.mxu0 0
        %1488 = vmatpush1.bf16.msra.mxu0 0
        %1489 = vmatprep.subr.bf16.mxu0 0
        %1490 = vmatpush1.bf16.msra.mxu0 0
        %1491 = vmatprep.subr.bf16.mxu0 0
        %1492 = vmatpush1.bf16.msra.mxu0 0
        %1493 = vmatprep.subr.bf16.mxu0 0
        %1494 = vmatpush1.bf16.msra.mxu0 0
        %1495 = vmatprep.subr.bf16.mxu0 0
        %1496 = vmatpush1.bf16.msra.mxu0 0
        %1497 = vmatprep.subr.bf16.mxu0 0
        %1498 = vmatpush1.bf16.msra.mxu0 0
        %1499 = vmatprep.subr.bf16.mxu0 0
        %1500 = vmatpush1.bf16.msra.mxu0 0
        %1501 = vmatprep.subr.bf16.mxu0 0
        %1502 = vmatpush1.bf16.msra.mxu0 0
        %1503 = vmatprep.subr.bf16.mxu0 0
        %1504 = vmatpush1.bf16.msra.mxu0 0
        %1505 = vmatprep.subr.bf16.mxu0 0
        %1506 = vmatpush1.bf16.msra.mxu0 0
        %1507 = vmatprep.subr.bf16.mxu0 0
        %1508 = vmatpush1.bf16.msra.mxu0 0
        %1509 = vmatprep.mubr.bf16.mxu0 0
        %1510 = vmatmul.mubr.bf16.gmra.mrb[0].mxu0 %v1044
        %v1511 = vpop.f32.mrb[0].mxu0
        %v1512 = vadd.f32 %v912, %v1511
        %v1513 = vpop.f32.mrb[0].mxu0
        %v1514 = vadd.f32 %v916, %v1513
        %v1515 = vpop.f32.mrb[0].mxu0
        %v1516 = vadd.f32 %v912, %v1515
        %v1517 = vpop.f32.mrb[0].mxu0
        %v1518 = vadd.f32 %v916, %v1517
        %1519 = vmatprep.mubr.bf16.mxu0 0
        %1520 = vmatmul.mubr.bf16.gmra.mrb[0].mxu0 %v1047
        %v1521 = vpop.f32.mrb[0].mxu0
        %v1522 = vadd.f32 %v912, %v1521
        %v1523 = vpop.f32.mrb[0].mxu0
        %v1524 = vadd.f32 %v916, %v1523
        %v1525 = vpop.f32.mrb[0].mxu0
        %v1526 = vadd.f32 %v912, %v1525
        %v1527 = vpop.f32.mrb[0].mxu0
        %v1528 = vadd.f32 %v916, %v1527
        %1529 = vmatprep.mubr.bf16.mxu0 0
        %1530 = vmatmul.mubr.bf16.gmra.mrb[0].mxu0 %v1050
        %v1531 = vpop.f32.mrb[0].mxu0
        %v1532 = vadd.f32 %v912, %v1531
        %v1533 = vpop.f32.mrb[0].mxu0
        %v1534 = vadd.f32 %v916, %v1533
        %v1535 = vpop.f32.mrb[0].mxu0
        %v1536 = vadd.f32 %v912, %v1535
        %v1537 = vpop.f32.mrb[0].mxu0
        %v1538 = vadd.f32 %v916, %v1537
        %1539 = vmatprep.mubr.bf16.mxu0 0
        %1540 = vmatmul.mubr.bf16.gmra.mrb[0].mxu0 %v1053
        %v1541 = vpop.f32.mrb[0].mxu0
        %v1542 = vadd.f32 %v912, %v1541
        %v1543 = vpop.f32.mrb[0].mxu0
        %v1544 = vadd.f32 %v916, %v1543
        %v1545 = vpop.f32.mrb[0].mxu0
        %v1546 = vadd.f32 %v912, %v1545
        %v1547 = vpop.f32.mrb[0].mxu0
        %v1548 = vadd.f32 %v916, %v1547
        %1549 = vmatprep.mubr.bf16.mxu0 0
        %1550 = vmatmul.mubr.bf16.gmra.mrb[0].mxu0 %v1056
        %v1551 = vpop.f32.mrb[0].mxu0
        %v1552 = vadd.f32 %v912, %v1551
        %v1553 = vpop.f32.mrb[0].mxu0
        %v1554 = vadd.f32 %v916, %v1553
        %v1555 = vpop.f32.mrb[0].mxu0
        %v1556 = vadd.f32 %v912, %v1555
        %v1557 = vpop.f32.mrb[0].mxu0
        %v1558 = vadd.f32 %v916, %v1557
        %1559 = vmatprep.mubr.bf16.mxu0 0
        %1560 = vmatmul.mubr.bf16.gmra.mrb[0].mxu0 %v1059
        %v1561 = vpop.f32.mrb[0].mxu0
        %v1562 = vadd.f32 %v912, %v1561
        %v1563 = vpop.f32.mrb[0].mxu0
        %v1564 = vadd.f32 %v916, %v1563
        %v1565 = vpop.f32.mrb[0].mxu0
        %v1566 = vadd.f32 %v912, %v1565
        %v1567 = vpop.f32.mrb[0].mxu0
        %v1568 = vadd.f32 %v916, %v1567
        %1569 = vmatprep.mubr.bf16.mxu0 0
        %1570 = vmatmul.mubr.bf16.gmra.mrb[0].mxu0 %v1062
        %v1571 = vpop.f32.mrb[0].mxu0
        %v1572 = vadd.f32 %v912, %v1571
        %v1573 = vpop.f32.mrb[0].mxu0
        %v1574 = vadd.f32 %v916, %v1573
        %v1575 = vpop.f32.mrb[0].mxu0
        %v1576 = vadd.f32 %v912, %v1575
        %v1577 = vpop.f32.mrb[0].mxu0
        %v1578 = vadd.f32 %v916, %v1577
        %1579 = vmatprep.mubr.bf16.mxu0 0
        %1580 = vmatmul.mubr.bf16.gmra.mrb[0].mxu0 %v1065
        %v1581 = vpop.f32.mrb[0].mxu0
        %v1582 = vadd.f32 %v912, %v1581
        %v1583 = vpop.f32.mrb[0].mxu0
        %v1584 = vadd.f32 %v916, %v1583
        %v1585 = vpop.f32.mrb[0].mxu0
        %v1586 = vadd.f32 %v912, %v1585
        %v1587 = vpop.f32.mrb[0].mxu0
        %v1588 = vadd.f32 %v916, %v1587
        %1589 = vmatprep.mubr.bf16.mxu0 0
        %1590 = vmatmul.mubr.bf16.gmra.mrb[0].mxu0 %v1068
        %v1591 = vpop.f32.mrb[0].mxu0
        %v1592 = vadd.f32 %v912, %v1591
        %v1593 = vpop.f32.mrb[0].mxu0
        %v1594 = vadd.f32 %v916, %v1593
        %v1595 = vpop.f32.mrb[0].mxu0
        %v1596 = vadd.f32 %v912, %v1595
        %v1597 = vpop.f32.mrb[0].mxu0
        %v1598 = vadd.f32 %v916, %v1597
        %1599 = vmatprep.mubr.bf16.mxu0 0
        %1600 = vmatmul.mubr.bf16.gmra.mrb[0].mxu0 %v1071
        %v1601 = vpop.f32.mrb[0].mxu0
        %v1602 = vadd.f32 %v912, %v1601
        %v1603 = vpop.f32.mrb[0].mxu0
        %v1604 = vadd.f32 %v916, %v1603
        %v1605 = vpop.f32.mrb[0].mxu0
        %v1606 = vadd.f32 %v912, %v1605
        %v1607 = vpop.f32.mrb[0].mxu0
        %v1608 = vadd.f32 %v916, %v1607
        %1609 = vmatprep.mubr.bf16.mxu0 0
        %1610 = vmatmul.mubr.bf16.gmra.mrb[0].mxu0 %v1074
        %v1611 = vpop.f32.mrb[0].mxu0
        %v1612 = vadd.f32 %v912, %v1611
        %v1613 = vpop.f32.mrb[0].mxu0
        %v1614 = vadd.f32 %v916, %v1613
        %v1615 = vpop.f32.mrb[0].mxu0
        %v1616 = vadd.f32 %v912, %v1615
        %v1617 = vpop.f32.mrb[0].mxu0
        %v1618 = vadd.f32 %v916, %v1617
        %1619 = vmatprep.mubr.bf16.mxu0 0
        %1620 = vmatmul.mubr.bf16.gmra.mrb[0].mxu0 %v1077
        %v1621 = vpop.f32.mrb[0].mxu0
        %v1622 = vadd.f32 %v912, %v1621
        %v1623 = vpop.f32.mrb[0].mxu0
        %v1624 = vadd.f32 %v916, %v1623
        %v1625 = vpop.f32.mrb[0].mxu0
        %v1626 = vadd.f32 %v912, %v1625
        %v1627 = vpop.f32.mrb[0].mxu0
        %v1628 = vadd.f32 %v916, %v1627
        %1629 = vmatprep.mubr.bf16.mxu0 0
        %1630 = vmatmul.mubr.bf16.gmra.mrb[0].mxu0 %v1080
        %v1631 = vpop.f32.mrb[0].mxu0
        %v1632 = vadd.f32 %v912, %v1631
        %v1633 = vpop.f32.mrb[0].mxu0
        %v1634 = vadd.f32 %v916, %v1633
        %v1635 = vpop.f32.mrb[0].mxu0
        %v1636 = vadd.f32 %v912, %v1635
        %v1637 = vpop.f32.mrb[0].mxu0
        %v1638 = vadd.f32 %v916, %v1637
        %1639 = vmatprep.mubr.bf16.mxu0 0
        %1640 = vmatmul.mubr.bf16.gmra.mrb[0].mxu0 %v1083
        %v1641 = vpop.f32.mrb[0].mxu0
        %v1642 = vadd.f32 %v912, %v1641
        %v1643 = vpop.f32.mrb[0].mxu0
        %v1644 = vadd.f32 %v916, %v1643
        %v1645 = vpop.f32.mrb[0].mxu0
        %v1646 = vadd.f32 %v912, %v1645
        %v1647 = vpop.f32.mrb[0].mxu0
        %v1648 = vadd.f32 %v916, %v1647
        %1649 = vmatprep.mubr.bf16.mxu0 0
        %1650 = vmatmul.mubr.bf16.gmra.mrb[0].mxu0 %v1086
        %v1651 = vpop.f32.mrb[0].mxu0
        %v1652 = vadd.f32 %v912, %v1651
        %v1653 = vpop.f32.mrb[0].mxu0
        %v1654 = vadd.f32 %v916, %v1653
        %v1655 = vpop.f32.mrb[0].mxu0
        %v1656 = vadd.f32 %v912, %v1655
        %v1657 = vpop.f32.mrb[0].mxu0
        %v1658 = vadd.f32 %v916, %v1657
        %1659 = vmatprep.mubr.bf16.mxu0 0
        %1660 = vmatmul.mubr.bf16.gmra.mrb[0].mxu0 %v1089
        %v1661 = vpop.f32.mrb[0].mxu0
        %v1662 = vadd.f32 %v912, %v1661
        %v1663 = vpop.f32.mrb[0].mxu0
        %v1664 = vadd.f32 %v916, %v1663
        %v1665 = vpop.f32.mrb[0].mxu0
        %v1666 = vadd.f32 %v912, %v1665
        %v1667 = vpop.f32.mrb[0].mxu0
        %v1668 = vadd.f32 %v916, %v1667
        %1669 = vdwg.mxu0
        %1670 = vmatprep.subr.bf16.mxu0 %v1010
        %1671 = vmatpush1.bf16.msra.mxu0 %v1009
        %1672 = vmatprep.subr.bf16.mxu0 %v1020
        %1673 = vmatpush1.bf16.msra.mxu0 %v1019
        %1674 = vmatprep.subr.bf16.mxu0 0
        %1675 = vmatpush1.bf16.msra.mxu0 0
        %1676 = vmatprep.subr.bf16.mxu0 0
        %1677 = vmatpush1.bf16.msra.mxu0 0
        %1678 = vmatprep.subr.bf16.mxu0 0
        %1679 = vmatpush1.bf16.msra.mxu0 0
        %1680 = vmatprep.subr.bf16.mxu0 0
        %1681 = vmatpush1.bf16.msra.mxu0 0
        %1682 = vmatprep.subr.bf16.mxu0 0
        %1683 = vmatpush1.bf16.msra.mxu0 0
        %1684 = vmatprep.subr.bf16.mxu0 0
        %1685 = vmatpush1.bf16.msra.mxu0 0
        %1686 = vmatprep.subr.bf16.mxu0 0
        %1687 = vmatpush1.bf16.msra.mxu0 0
        %1688 = vmatprep.subr.bf16.mxu0 0
        %1689 = vmatpush1.bf16.msra.mxu0 0
        %1690 = vmatprep.subr.bf16.mxu0 0
        %1691 = vmatpush1.bf16.msra.mxu0 0
        %1692 = vmatprep.subr.bf16.mxu0 0
        %1693 = vmatpush1.bf16.msra.mxu0 0
        %1694 = vmatprep.subr.bf16.mxu0 0
        %1695 = vmatpush1.bf16.msra.mxu0 0
        %1696 = vmatprep.subr.bf16.mxu0 0
        %1697 = vmatpush1.bf16.msra.mxu0 0
        %1698 = vmatprep.subr.bf16.mxu0 0
        %1699 = vmatpush1.bf16.msra.mxu0 0
        %1700 = vmatprep.subr.bf16.mxu0 0
        %1701 = vmatpush1.bf16.msra.mxu0 0
        %1702 = vmatprep.mubr.bf16.mxu0 0
        %1703 = vmatmul.mubr.bf16.gmra.mrb[0].mxu0 %v1044
        %v1704 = vpop.f32.mrb[0].mxu0
        %v1705 = vadd.f32 %v920, %v1704
        %v1706 = vpop.f32.mrb[0].mxu0
        %v1707 = vadd.f32 %v924, %v1706
        %v1708 = vpop.f32.mrb[0].mxu0
        %v1709 = vadd.f32 %v920, %v1708
        %v1710 = vpop.f32.mrb[0].mxu0
        %v1711 = vadd.f32 %v924, %v1710
        %1712 = vmatprep.mubr.bf16.mxu0 0
        %1713 = vmatmul.mubr.bf16.gmra.mrb[0].mxu0 %v1047
        %v1714 = vpop.f32.mrb[0].mxu0
        %v1715 = vadd.f32 %v920, %v1714
        %v1716 = vpop.f32.mrb[0].mxu0
        %v1717 = vadd.f32 %v924, %v1716
        %v1718 = vpop.f32.mrb[0].mxu0
        %v1719 = vadd.f32 %v920, %v1718
        %v1720 = vpop.f32.mrb[0].mxu0
        %v1721 = vadd.f32 %v924, %v1720
        %1722 = vmatprep.mubr.bf16.mxu0 0
        %1723 = vmatmul.mubr.bf16.gmra.mrb[0].mxu0 %v1050
        %v1724 = vpop.f32.mrb[0].mxu0
        %v1725 = vadd.f32 %v920, %v1724
        %v1726 = vpop.f32.mrb[0].mxu0
        %v1727 = vadd.f32 %v924, %v1726
        %v1728 = vpop.f32.mrb[0].mxu0
        %v1729 = vadd.f32 %v920, %v1728
        %v1730 = vpop.f32.mrb[0].mxu0
        %v1731 = vadd.f32 %v924, %v1730
        %1732 = vmatprep.mubr.bf16.mxu0 0
        %1733 = vmatmul.mubr.bf16.gmra.mrb[0].mxu0 %v1053
        %v1734 = vpop.f32.mrb[0].mxu0
        %v1735 = vadd.f32 %v920, %v1734
        %v1736 = vpop.f32.mrb[0].mxu0
        %v1737 = vadd.f32 %v924, %v1736
        %v1738 = vpop.f32.mrb[0].mxu0
        %v1739 = vadd.f32 %v920, %v1738
        %v1740 = vpop.f32.mrb[0].mxu0
        %v1741 = vadd.f32 %v924, %v1740
        %1742 = vmatprep.mubr.bf16.mxu0 0
        %1743 = vmatmul.mubr.bf16.gmra.mrb[0].mxu0 %v1056
        %v1744 = vpop.f32.mrb[0].mxu0
        %v1745 = vadd.f32 %v920, %v1744
        %v1746 = vpop.f32.mrb[0].mxu0
        %v1747 = vadd.f32 %v924, %v1746
        %v1748 = vpop.f32.mrb[0].mxu0
        %v1749 = vadd.f32 %v920, %v1748
        %v1750 = vpop.f32.mrb[0].mxu0
        %v1751 = vadd.f32 %v924, %v1750
        %1752 = vmatprep.mubr.bf16.mxu0 0
        %1753 = vmatmul.mubr.bf16.gmra.mrb[0].mxu0 %v1059
        %v1754 = vpop.f32.mrb[0].mxu0
        %v1755 = vadd.f32 %v920, %v1754
        %v1756 = vpop.f32.mrb[0].mxu0
        %v1757 = vadd.f32 %v924, %v1756
        %v1758 = vpop.f32.mrb[0].mxu0
        %v1759 = vadd.f32 %v920, %v1758
        %v1760 = vpop.f32.mrb[0].mxu0
        %v1761 = vadd.f32 %v924, %v1760
        %1762 = vmatprep.mubr.bf16.mxu0 0
        %1763 = vmatmul.mubr.bf16.gmra.mrb[0].mxu0 %v1062
        %v1764 = vpop.f32.mrb[0].mxu0
        %v1765 = vadd.f32 %v920, %v1764
        %v1766 = vpop.f32.mrb[0].mxu0
        %v1767 = vadd.f32 %v924, %v1766
        %v1768 = vpop.f32.mrb[0].mxu0
        %v1769 = vadd.f32 %v920, %v1768
        %v1770 = vpop.f32.mrb[0].mxu0
        %v1771 = vadd.f32 %v924, %v1770
        %1772 = vmatprep.mubr.bf16.mxu0 0
        %1773 = vmatmul.mubr.bf16.gmra.mrb[0].mxu0 %v1065
        %v1774 = vpop.f32.mrb[0].mxu0
        %v1775 = vadd.f32 %v920, %v1774
        %v1776 = vpop.f32.mrb[0].mxu0
        %v1777 = vadd.f32 %v924, %v1776
        %v1778 = vpop.f32.mrb[0].mxu0
        %v1779 = vadd.f32 %v920, %v1778
        %v1780 = vpop.f32.mrb[0].mxu0
        %v1781 = vadd.f32 %v924, %v1780
        %1782 = vmatprep.mubr.bf16.mxu0 0
        %1783 = vmatmul.mubr.bf16.gmra.mrb[0].mxu0 %v1068
        %v1784 = vpop.f32.mrb[0].mxu0
        %v1785 = vadd.f32 %v920, %v1784
        %v1786 = vpop.f32.mrb[0].mxu0
        %v1787 = vadd.f32 %v924, %v1786
        %v1788 = vpop.f32.mrb[0].mxu0
        %v1789 = vadd.f32 %v920, %v1788
        %v1790 = vpop.f32.mrb[0].mxu0
        %v1791 = vadd.f32 %v924, %v1790
        %1792 = vmatprep.mubr.bf16.mxu0 0
        %1793 = vmatmul.mubr.bf16.gmra.mrb[0].mxu0 %v1071
        %v1794 = vpop.f32.mrb[0].mxu0
        %v1795 = vadd.f32 %v920, %v1794
        %v1796 = vpop.f32.mrb[0].mxu0
        %v1797 = vadd.f32 %v924, %v1796
        %v1798 = vpop.f32.mrb[0].mxu0
        %v1799 = vadd.f32 %v920, %v1798
        %v1800 = vpop.f32.mrb[0].mxu0
        %v1801 = vadd.f32 %v924, %v1800
        %1802 = vmatprep.mubr.bf16.mxu0 0
        %1803 = vmatmul.mubr.bf16.gmra.mrb[0].mxu0 %v1074
        %v1804 = vpop.f32.mrb[0].mxu0
        %v1805 = vadd.f32 %v920, %v1804
        %v1806 = vpop.f32.mrb[0].mxu0
        %v1807 = vadd.f32 %v924, %v1806
        %v1808 = vpop.f32.mrb[0].mxu0
        %v1809 = vadd.f32 %v920, %v1808
        %v1810 = vpop.f32.mrb[0].mxu0
        %v1811 = vadd.f32 %v924, %v1810
        %1812 = vmatprep.mubr.bf16.mxu0 0
        %1813 = vmatmul.mubr.bf16.gmra.mrb[0].mxu0 %v1077
        %v1814 = vpop.f32.mrb[0].mxu0
        %v1815 = vadd.f32 %v920, %v1814
        %v1816 = vpop.f32.mrb[0].mxu0
        %v1817 = vadd.f32 %v924, %v1816
        %v1818 = vpop.f32.mrb[0].mxu0
        %v1819 = vadd.f32 %v920, %v1818
        %v1820 = vpop.f32.mrb[0].mxu0
        %v1821 = vadd.f32 %v924, %v1820
        %1822 = vmatprep.mubr.bf16.mxu0 0
        %1823 = vmatmul.mubr.bf16.gmra.mrb[0].mxu0 %v1080
        %v1824 = vpop.f32.mrb[0].mxu0
        %v1825 = vadd.f32 %v920, %v1824
        %v1826 = vpop.f32.mrb[0].mxu0
        %v1827 = vadd.f32 %v924, %v1826
        %v1828 = vpop.f32.mrb[0].mxu0
        %v1829 = vadd.f32 %v920, %v1828
        %v1830 = vpop.f32.mrb[0].mxu0
        %v1831 = vadd.f32 %v924, %v1830
        %1832 = vmatprep.mubr.bf16.mxu0 0
        %1833 = vmatmul.mubr.bf16.gmra.mrb[0].mxu0 %v1083
        %v1834 = vpop.f32.mrb[0].mxu0
        %v1835 = vadd.f32 %v920, %v1834
        %v1836 = vpop.f32.mrb[0].mxu0
        %v1837 = vadd.f32 %v924, %v1836
        %v1838 = vpop.f32.mrb[0].mxu0
        %v1839 = vadd.f32 %v920, %v1838
        %v1840 = vpop.f32.mrb[0].mxu0
        %v1841 = vadd.f32 %v924, %v1840
        %1842 = vmatprep.mubr.bf16.mxu0 0
        %1843 = vmatmul.mubr.bf16.gmra.mrb[0].mxu0 %v1086
        %v1844 = vpop.f32.mrb[0].mxu0
        %v1845 = vadd.f32 %v920, %v1844
        %v1846 = vpop.f32.mrb[0].mxu0
        %v1847 = vadd.f32 %v924, %v1846
        %v1848 = vpop.f32.mrb[0].mxu0
        %v1849 = vadd.f32 %v920, %v1848
        %v1850 = vpop.f32.mrb[0].mxu0
        %v1851 = vadd.f32 %v924, %v1850
        %1852 = vmatprep.mubr.bf16.mxu0 0
        %1853 = vmatmul.mubr.bf16.gmra.mrb[0].mxu0 %v1089
        %v1854 = vpop.f32.mrb[0].mxu0
        %v1855 = vadd.f32 %v920, %v1854
        %v1856 = vpop.f32.mrb[0].mxu0
        %v1857 = vadd.f32 %v924, %v1856
        %v1858 = vpop.f32.mrb[0].mxu0
        %v1859 = vadd.f32 %v920, %v1858
        %v1860 = vpop.f32.mrb[0].mxu0
        %v1861 = vadd.f32 %v924, %v1860
        %1862 = vdwg.mxu0
        %1863 = vmatprep.subr.bf16.mxu0 %v1012
        %1864 = vmatpush1.bf16.msra.mxu0 %v1011
        %1865 = vmatprep.subr.bf16.mxu0 %v1022
        %1866 = vmatpush1.bf16.msra.mxu0 %v1021
        %1867 = vmatprep.subr.bf16.mxu0 0
        %1868 = vmatpush1.bf16.msra.mxu0 0
        %1869 = vmatprep.subr.bf16.mxu0 0
        %1870 = vmatpush1.bf16.msra.mxu0 0
        %1871 = vmatprep.subr.bf16.mxu0 0
        %1872 = vmatpush1.bf16.msra.mxu0 0
        %1873 = vmatprep.subr.bf16.mxu0 0
        %1874 = vmatpush1.bf16.msra.mxu0 0
        %1875 = vmatprep.subr.bf16.mxu0 0
        %1876 = vmatpush1.bf16.msra.mxu0 0
        %1877 = vmatprep.subr.bf16.mxu0 0
        %1878 = vmatpush1.bf16.msra.mxu0 0
        %1879 = vmatprep.subr.bf16.mxu0 0
        %1880 = vmatpush1.bf16.msra.mxu0 0
        %1881 = vmatprep.subr.bf16.mxu0 0
        %1882 = vmatpush1.bf16.msra.mxu0 0
        %1883 = vmatprep.subr.bf16.mxu0 0
        %1884 = vmatpush1.bf16.msra.mxu0 0
        %1885 = vmatprep.subr.bf16.mxu0 0
        %1886 = vmatpush1.bf16.msra.mxu0 0
        %1887 = vmatprep.subr.bf16.mxu0 0
        %1888 = vmatpush1.bf16.msra.mxu0 0
        %1889 = vmatprep.subr.bf16.mxu0 0
        %1890 = vmatpush1.bf16.msra.mxu0 0
        %1891 = vmatprep.subr.bf16.mxu0 0
        %1892 = vmatpush1.bf16.msra.mxu0 0
        %1893 = vmatprep.subr.bf16.mxu0 0
        %1894 = vmatpush1.bf16.msra.mxu0 0
        %1895 = vmatprep.mubr.bf16.mxu0 0
        %1896 = vmatmul.mubr.bf16.gmra.mrb[0].mxu0 %v1044
        %v1897 = vpop.f32.mrb[0].mxu0
        %v1898 = vadd.f32 %v928, %v1897
        %v1899 = vpop.f32.mrb[0].mxu0
        %v1900 = vadd.f32 %v932, %v1899
        %v1901 = vpop.f32.mrb[0].mxu0
        %v1902 = vadd.f32 %v928, %v1901
        %v1903 = vpop.f32.mrb[0].mxu0
        %v1904 = vadd.f32 %v932, %v1903
        %1905 = vmatprep.mubr.bf16.mxu0 0
        %1906 = vmatmul.mubr.bf16.gmra.mrb[0].mxu0 %v1047
        %v1907 = vpop.f32.mrb[0].mxu0
        %v1908 = vadd.f32 %v928, %v1907
        %v1909 = vpop.f32.mrb[0].mxu0
        %v1910 = vadd.f32 %v932, %v1909
        %v1911 = vpop.f32.mrb[0].mxu0
        %v1912 = vadd.f32 %v928, %v1911
        %v1913 = vpop.f32.mrb[0].mxu0
        %v1914 = vadd.f32 %v932, %v1913
        %1915 = vmatprep.mubr.bf16.mxu0 0
        %1916 = vmatmul.mubr.bf16.gmra.mrb[0].mxu0 %v1050
        %v1917 = vpop.f32.mrb[0].mxu0
        %v1918 = vadd.f32 %v928, %v1917
        %v1919 = vpop.f32.mrb[0].mxu0
        %v1920 = vadd.f32 %v932, %v1919
        %v1921 = vpop.f32.mrb[0].mxu0
        %v1922 = vadd.f32 %v928, %v1921
        %v1923 = vpop.f32.mrb[0].mxu0
        %v1924 = vadd.f32 %v932, %v1923
        %1925 = vmatprep.mubr.bf16.mxu0 0
        %1926 = vmatmul.mubr.bf16.gmra.mrb[0].mxu0 %v1053
        %v1927 = vpop.f32.mrb[0].mxu0
        %v1928 = vadd.f32 %v928, %v1927
        %v1929 = vpop.f32.mrb[0].mxu0
        %v1930 = vadd.f32 %v932, %v1929
        %v1931 = vpop.f32.mrb[0].mxu0
        %v1932 = vadd.f32 %v928, %v1931
        %v1933 = vpop.f32.mrb[0].mxu0
        %v1934 = vadd.f32 %v932, %v1933
        %1935 = vmatprep.mubr.bf16.mxu0 0
        %1936 = vmatmul.mubr.bf16.gmra.mrb[0].mxu0 %v1056
        %v1937 = vpop.f32.mrb[0].mxu0
        %v1938 = vadd.f32 %v928, %v1937
        %v1939 = vpop.f32.mrb[0].mxu0
        %v1940 = vadd.f32 %v932, %v1939
        %v1941 = vpop.f32.mrb[0].mxu0
        %v1942 = vadd.f32 %v928, %v1941
        %v1943 = vpop.f32.mrb[0].mxu0
        %v1944 = vadd.f32 %v932, %v1943
        %1945 = vmatprep.mubr.bf16.mxu0 0
        %1946 = vmatmul.mubr.bf16.gmra.mrb[0].mxu0 %v1059
        %v1947 = vpop.f32.mrb[0].mxu0
        %v1948 = vadd.f32 %v928, %v1947
        %v1949 = vpop.f32.mrb[0].mxu0
        %v1950 = vadd.f32 %v932, %v1949
        %v1951 = vpop.f32.mrb[0].mxu0
        %v1952 = vadd.f32 %v928, %v1951
        %v1953 = vpop.f32.mrb[0].mxu0
        %v1954 = vadd.f32 %v932, %v1953
        %1955 = vmatprep.mubr.bf16.mxu0 0
        %1956 = vmatmul.mubr.bf16.gmra.mrb[0].mxu0 %v1062
        %v1957 = vpop.f32.mrb[0].mxu0
        %v1958 = vadd.f32 %v928, %v1957
        %v1959 = vpop.f32.mrb[0].mxu0
        %v1960 = vadd.f32 %v932, %v1959
        %v1961 = vpop.f32.mrb[0].mxu0
        %v1962 = vadd.f32 %v928, %v1961
        %v1963 = vpop.f32.mrb[0].mxu0
        %v1964 = vadd.f32 %v932, %v1963
        %1965 = vmatprep.mubr.bf16.mxu0 0
        %1966 = vmatmul.mubr.bf16.gmra.mrb[0].mxu0 %v1065
        %v1967 = vpop.f32.mrb[0].mxu0
        %v1968 = vadd.f32 %v928, %v1967
        %v1969 = vpop.f32.mrb[0].mxu0
        %v1970 = vadd.f32 %v932, %v1969
        %v1971 = vpop.f32.mrb[0].mxu0
        %v1972 = vadd.f32 %v928, %v1971
        %v1973 = vpop.f32.mrb[0].mxu0
        %v1974 = vadd.f32 %v932, %v1973
        %1975 = vmatprep.mubr.bf16.mxu0 0
        %1976 = vmatmul.mubr.bf16.gmra.mrb[0].mxu0 %v1068
        %v1977 = vpop.f32.mrb[0].mxu0
        %v1978 = vadd.f32 %v928, %v1977
        %v1979 = vpop.f32.mrb[0].mxu0
        %v1980 = vadd.f32 %v932, %v1979
        %v1981 = vpop.f32.mrb[0].mxu0
        %v1982 = vadd.f32 %v928, %v1981
        %v1983 = vpop.f32.mrb[0].mxu0
        %v1984 = vadd.f32 %v932, %v1983
        %1985 = vmatprep.mubr.bf16.mxu0 0
        %1986 = vmatmul.mubr.bf16.gmra.mrb[0].mxu0 %v1071
        %v1987 = vpop.f32.mrb[0].mxu0
        %v1988 = vadd.f32 %v928, %v1987
        %v1989 = vpop.f32.mrb[0].mxu0
        %v1990 = vadd.f32 %v932, %v1989
        %v1991 = vpop.f32.mrb[0].mxu0
        %v1992 = vadd.f32 %v928, %v1991
        %v1993 = vpop.f32.mrb[0].mxu0
        %v1994 = vadd.f32 %v932, %v1993
        %1995 = vmatprep.mubr.bf16.mxu0 0
        %1996 = vmatmul.mubr.bf16.gmra.mrb[0].mxu0 %v1074
        %v1997 = vpop.f32.mrb[0].mxu0
        %v1998 = vadd.f32 %v928, %v1997
        %v1999 = vpop.f32.mrb[0].mxu0
        %v2000 = vadd.f32 %v932, %v1999
        %v2001 = vpop.f32.mrb[0].mxu0
        %v2002 = vadd.f32 %v928, %v2001
        %v2003 = vpop.f32.mrb[0].mxu0
        %v2004 = vadd.f32 %v932, %v2003
        %2005 = vmatprep.mubr.bf16.mxu0 0
        %2006 = vmatmul.mubr.bf16.gmra.mrb[0].mxu0 %v1077
        %v2007 = vpop.f32.mrb[0].mxu0
        %v2008 = vadd.f32 %v928, %v2007
        %v2009 = vpop.f32.mrb[0].mxu0
        %v2010 = vadd.f32 %v932, %v2009
        %v2011 = vpop.f32.mrb[0].mxu0
        %v2012 = vadd.f32 %v928, %v2011
        %v2013 = vpop.f32.mrb[0].mxu0
        %v2014 = vadd.f32 %v932, %v2013
        %2015 = vmatprep.mubr.bf16.mxu0 0
        %2016 = vmatmul.mubr.bf16.gmra.mrb[0].mxu0 %v1080
        %v2017 = vpop.f32.mrb[0].mxu0
        %v2018 = vadd.f32 %v928, %v2017
        %v2019 = vpop.f32.mrb[0].mxu0
        %v2020 = vadd.f32 %v932, %v2019
        %v2021 = vpop.f32.mrb[0].mxu0
        %v2022 = vadd.f32 %v928, %v2021
        %v2023 = vpop.f32.mrb[0].mxu0
        %v2024 = vadd.f32 %v932, %v2023
        %2025 = vmatprep.mubr.bf16.mxu0 0
        %2026 = vmatmul.mubr.bf16.gmra.mrb[0].mxu0 %v1083
        %v2027 = vpop.f32.mrb[0].mxu0
        %v2028 = vadd.f32 %v928, %v2027
        %v2029 = vpop.f32.mrb[0].mxu0
        %v2030 = vadd.f32 %v932, %v2029
        %v2031 = vpop.f32.mrb[0].mxu0
        %v2032 = vadd.f32 %v928, %v2031
        %v2033 = vpop.f32.mrb[0].mxu0
        %v2034 = vadd.f32 %v932, %v2033
        %2035 = vmatprep.mubr.bf16.mxu0 0
        %2036 = vmatmul.mubr.bf16.gmra.mrb[0].mxu0 %v1086
        %v2037 = vpop.f32.mrb[0].mxu0
        %v2038 = vadd.f32 %v928, %v2037
        %v2039 = vpop.f32.mrb[0].mxu0
        %v2040 = vadd.f32 %v932, %v2039
        %v2041 = vpop.f32.mrb[0].mxu0
        %v2042 = vadd.f32 %v928, %v2041
        %v2043 = vpop.f32.mrb[0].mxu0
        %v2044 = vadd.f32 %v932, %v2043
        %2045 = vmatprep.mubr.bf16.mxu0 0
        %2046 = vmatmul.mubr.bf16.gmra.mrb[0].mxu0 %v1089
        %v2047 = vpop.f32.mrb[0].mxu0
        %v2048 = vadd.f32 %v928, %v2047
        %v2049 = vpop.f32.mrb[0].mxu0
        %v2050 = vadd.f32 %v932, %v2049
        %v2051 = vpop.f32.mrb[0].mxu0
        %v2052 = vadd.f32 %v928, %v2051
        %v2053 = vpop.f32.mrb[0].mxu0
        %v2054 = vadd.f32 %v932, %v2053
        %2055 = vdwg.mxu0
        %v2056 = vpack.c.bf16 %v1130, %v1126
        %v2057 = vpack.c.bf16 %v1132, %v1128
        %v2058 = vpack.c.bf16 %v1323, %v1319
        %v2059 = vpack.c.bf16 %v1325, %v1321
        %v2060 = vpack.c.bf16 %v1516, %v1512
        %v2061 = vpack.c.bf16 %v1518, %v1514
        %v2062 = vpack.c.bf16 %v1709, %v1705
        %v2063 = vpack.c.bf16 %v1711, %v1707
        %v2064 = vpack.c.bf16 %v1902, %v1898
        %v2065 = vpack.c.bf16 %v1904, %v1900
        %v2066 = vpack.c.bf16 %v1140, %v1136
        %v2067 = vpack.c.bf16 %v1142, %v1138
        %v2068 = vpack.c.bf16 %v1333, %v1329
        %v2069 = vpack.c.bf16 %v1335, %v1331
        %v2070 = vpack.c.bf16 %v1526, %v1522
        %v2071 = vpack.c.bf16 %v1528, %v1524
        %v2072 = vpack.c.bf16 %v1719, %v1715
        %v2073 = vpack.c.bf16 %v1721, %v1717
        %v2074 = vpack.c.bf16 %v1912, %v1908
        %v2075 = vpack.c.bf16 %v1914, %v1910
        %v2076 = vpack.c.bf16 %v1150, %v1146
        %v2077 = vpack.c.bf16 %v1152, %v1148
        %v2078 = vpack.c.bf16 %v1343, %v1339
        %v2079 = vpack.c.bf16 %v1345, %v1341
        %v2080 = vpack.c.bf16 %v1536, %v1532
        %v2081 = vpack.c.bf16 %v1538, %v1534
        %v2082 = vpack.c.bf16 %v1729, %v1725
        %v2083 = vpack.c.bf16 %v1731, %v1727
        %v2084 = vpack.c.bf16 %v1922, %v1918
        %v2085 = vpack.c.bf16 %v1924, %v1920
        %v2086 = vpack.c.bf16 %v1160, %v1156
        %v2087 = vpack.c.bf16 %v1162, %v1158
        %v2088 = vpack.c.bf16 %v1353, %v1349
        %v2089 = vpack.c.bf16 %v1355, %v1351
        %v2090 = vpack.c.bf16 %v1546, %v1542
        %v2091 = vpack.c.bf16 %v1548, %v1544
        %v2092 = vpack.c.bf16 %v1739, %v1735
        %v2093 = vpack.c.bf16 %v1741, %v1737
        %v2094 = vpack.c.bf16 %v1932, %v1928
        %v2095 = vpack.c.bf16 %v1934, %v1930
        %v2096 = vpack.c.bf16 %v1170, %v1166
        %v2097 = vpack.c.bf16 %v1172, %v1168
        %v2098 = vpack.c.bf16 %v1363, %v1359
        %v2099 = vpack.c.bf16 %v1365, %v1361
        %v2100 = vpack.c.bf16 %v1556, %v1552
        %v2101 = vpack.c.bf16 %v1558, %v1554
        %v2102 = vpack.c.bf16 %v1749, %v1745
        %v2103 = vpack.c.bf16 %v1751, %v1747
        %v2104 = vpack.c.bf16 %v1942, %v1938
        %v2105 = vpack.c.bf16 %v1944, %v1940
        %v2106 = vpack.c.bf16 %v1180, %v1176
        %v2107 = vpack.c.bf16 %v1182, %v1178
        %v2108 = vpack.c.bf16 %v1373, %v1369
        %v2109 = vpack.c.bf16 %v1375, %v1371
        %v2110 = vpack.c.bf16 %v1566, %v1562
        %v2111 = vpack.c.bf16 %v1568, %v1564
        %v2112 = vpack.c.bf16 %v1759, %v1755
        %v2113 = vpack.c.bf16 %v1761, %v1757
        %v2114 = vpack.c.bf16 %v1952, %v1948
        %v2115 = vpack.c.bf16 %v1954, %v1950
        %v2116 = vpack.c.bf16 %v1190, %v1186
        %v2117 = vpack.c.bf16 %v1192, %v1188
        %v2118 = vpack.c.bf16 %v1383, %v1379
        %v2119 = vpack.c.bf16 %v1385, %v1381
        %v2120 = vpack.c.bf16 %v1576, %v1572
        %v2121 = vpack.c.bf16 %v1578, %v1574
        %v2122 = vpack.c.bf16 %v1769, %v1765
        %v2123 = vpack.c.bf16 %v1771, %v1767
        %v2124 = vpack.c.bf16 %v1962, %v1958
        %v2125 = vpack.c.bf16 %v1964, %v1960
        %v2126 = vpack.c.bf16 %v1200, %v1196
        %v2127 = vpack.c.bf16 %v1202, %v1198
        %v2128 = vpack.c.bf16 %v1393, %v1389
        %v2129 = vpack.c.bf16 %v1395, %v1391
        %v2130 = vpack.c.bf16 %v1586, %v1582
        %v2131 = vpack.c.bf16 %v1588, %v1584
        %v2132 = vpack.c.bf16 %v1779, %v1775
        %v2133 = vpack.c.bf16 %v1781, %v1777
        %v2134 = vpack.c.bf16 %v1972, %v1968
        %v2135 = vpack.c.bf16 %v1974, %v1970
        %v2136 = vpack.c.bf16 %v1210, %v1206
        %v2137 = vpack.c.bf16 %v1212, %v1208
        %v2138 = vpack.c.bf16 %v1403, %v1399
        %v2139 = vpack.c.bf16 %v1405, %v1401
        %v2140 = vpack.c.bf16 %v1596, %v1592
        %v2141 = vpack.c.bf16 %v1598, %v1594
        %v2142 = vpack.c.bf16 %v1789, %v1785
        %v2143 = vpack.c.bf16 %v1791, %v1787
        %v2144 = vpack.c.bf16 %v1982, %v1978
        %v2145 = vpack.c.bf16 %v1984, %v1980
        %v2146 = vpack.c.bf16 %v1220, %v1216
        %v2147 = vpack.c.bf16 %v1222, %v1218
        %v2148 = vpack.c.bf16 %v1413, %v1409
        %v2149 = vpack.c.bf16 %v1415, %v1411
        %v2150 = vpack.c.bf16 %v1606, %v1602
        %v2151 = vpack.c.bf16 %v1608, %v1604
        %v2152 = vpack.c.bf16 %v1799, %v1795
        %v2153 = vpack.c.bf16 %v1801, %v1797
        %v2154 = vpack.c.bf16 %v1992, %v1988
        %v2155 = vpack.c.bf16 %v1994, %v1990
        %v2156 = vpack.c.bf16 %v1230, %v1226
        %v2157 = vpack.c.bf16 %v1232, %v1228
        %v2158 = vpack.c.bf16 %v1423, %v1419
        %v2159 = vpack.c.bf16 %v1425, %v1421
        %v2160 = vpack.c.bf16 %v1616, %v1612
        %v2161 = vpack.c.bf16 %v1618, %v1614
        %v2162 = vpack.c.bf16 %v1809, %v1805
        %v2163 = vpack.c.bf16 %v1811, %v1807
        %v2164 = vpack.c.bf16 %v2002, %v1998
        %v2165 = vpack.c.bf16 %v2004, %v2000
        %v2166 = vpack.c.bf16 %v1240, %v1236
        %v2167 = vpack.c.bf16 %v1242, %v1238
        %v2168 = vpack.c.bf16 %v1433, %v1429
        %v2169 = vpack.c.bf16 %v1435, %v1431
        %v2170 = vpack.c.bf16 %v1626, %v1622
        %v2171 = vpack.c.bf16 %v1628, %v1624
        %v2172 = vpack.c.bf16 %v1819, %v1815
        %v2173 = vpack.c.bf16 %v1821, %v1817
        %v2174 = vpack.c.bf16 %v2012, %v2008
        %v2175 = vpack.c.bf16 %v2014, %v2010
        %v2176 = vpack.c.bf16 %v1250, %v1246
        %v2177 = vpack.c.bf16 %v1252, %v1248
        %v2178 = vpack.c.bf16 %v1443, %v1439
        %v2179 = vpack.c.bf16 %v1445, %v1441
        %v2180 = vpack.c.bf16 %v1636, %v1632
        %v2181 = vpack.c.bf16 %v1638, %v1634
        %v2182 = vpack.c.bf16 %v1829, %v1825
        %v2183 = vpack.c.bf16 %v1831, %v1827
        %v2184 = vpack.c.bf16 %v2022, %v2018
        %v2185 = vpack.c.bf16 %v2024, %v2020
        %v2186 = vpack.c.bf16 %v1260, %v1256
        %v2187 = vpack.c.bf16 %v1262, %v1258
        %v2188 = vpack.c.bf16 %v1453, %v1449
        %v2189 = vpack.c.bf16 %v1455, %v1451
        %v2190 = vpack.c.bf16 %v1646, %v1642
        %v2191 = vpack.c.bf16 %v1648, %v1644
        %v2192 = vpack.c.bf16 %v1839, %v1835
        %v2193 = vpack.c.bf16 %v1841, %v1837
        %v2194 = vpack.c.bf16 %v2032, %v2028
        %v2195 = vpack.c.bf16 %v2034, %v2030
        %v2196 = vpack.c.bf16 %v1270, %v1266
        %v2197 = vpack.c.bf16 %v1272, %v1268
        %v2198 = vpack.c.bf16 %v1463, %v1459
        %v2199 = vpack.c.bf16 %v1465, %v1461
        %v2200 = vpack.c.bf16 %v1656, %v1652
        %v2201 = vpack.c.bf16 %v1658, %v1654
        %v2202 = vpack.c.bf16 %v1849, %v1845
        %v2203 = vpack.c.bf16 %v1851, %v1847
        %v2204 = vpack.c.bf16 %v2042, %v2038
        %v2205 = vpack.c.bf16 %v2044, %v2040
        %v2206 = vpack.c.bf16 %v1280, %v1276
        %v2207 = vpack.c.bf16 %v1282, %v1278
        %v2208 = vpack.c.bf16 %v1473, %v1469
        %v2209 = vpack.c.bf16 %v1475, %v1471
        %v2210 = vpack.c.bf16 %v1666, %v1662
        %v2211 = vpack.c.bf16 %v1668, %v1664
        %v2212 = vpack.c.bf16 %v1859, %v1855
        %v2213 = vpack.c.bf16 %v1861, %v1857
        %v2214 = vpack.c.bf16 %v2052, %v2048
        %v2215 = vpack.c.bf16 %v2054, %v2050
        %v2216 = vsub.bf16 0, %v2056
        %v2217 = vsub.bf16 0, %v2057
        %v2218 = vsub.bf16 0, %v2058
        %v2219 = vsub.bf16 0, %v2059
        %v2220 = vsub.bf16 0, %v2060
        %v2221 = vsub.bf16 0, %v2061
        %v2222 = vsub.bf16 0, %v2062
        %v2223 = vsub.bf16 0, %v2063
        %v2224 = vsub.bf16 0, %v2064
        %v2225 = vsub.bf16 0, %v2065
        %v2226 = vsub.bf16 0, %v2066
        %v2227 = vsub.bf16 0, %v2067
        %v2228 = vsub.bf16 0, %v2068
        %v2229 = vsub.bf16 0, %v2069
        %v2230 = vsub.bf16 0, %v2070
        %v2231 = vsub.bf16 0, %v2071
        %v2232 = vsub.bf16 0, %v2072
        %v2233 = vsub.bf16 0, %v2073
        %v2234 = vsub.bf16 0, %v2074
        %v2235 = vsub.bf16 0, %v2075
        %v2236 = vsub.bf16 0, %v2076
        %v2237 = vsub.bf16 0, %v2077
        %v2238 = vsub.bf16 0, %v2078
        %v2239 = vsub.bf16 0, %v2079
        %v2240 = vsub.bf16 0, %v2080
        %v2241 = vsub.bf16 0, %v2081
        %v2242 = vsub.bf16 0, %v2082
        %v2243 = vsub.bf16 0, %v2083
        %v2244 = vsub.bf16 0, %v2084
        %v2245 = vsub.bf16 0, %v2085
        %v2246 = vsub.bf16 0, %v2086
        %v2247 = vsub.bf16 0, %v2087
        %v2248 = vsub.bf16 0, %v2088
        %v2249 = vsub.bf16 0, %v2089
        %v2250 = vsub.bf16 0, %v2090
        %v2251 = vsub.bf16 0, %v2091
        %v2252 = vsub.bf16 0, %v2092
        %v2253 = vsub.bf16 0, %v2093
        %v2254 = vsub.bf16 0, %v2094
        %v2255 = vsub.bf16 0, %v2095
        %v2256 = vsub.bf16 0, %v2096
        %v2257 = vsub.bf16 0, %v2097
        %v2258 = vsub.bf16 0, %v2098
        %v2259 = vsub.bf16 0, %v2099
        %v2260 = vsub.bf16 0, %v2100
        %v2261 = vsub.bf16 0, %v2101
        %v2262 = vsub.bf16 0, %v2102
        %v2263 = vsub.bf16 0, %v2103
        %v2264 = vsub.bf16 0, %v2104
        %v2265 = vsub.bf16 0, %v2105
        %v2266 = vsub.bf16 0, %v2106
        %v2267 = vsub.bf16 0, %v2107
        %v2268 = vsub.bf16 0, %v2108
        %v2269 = vsub.bf16 0, %v2109
        %v2270 = vsub.bf16 0, %v2110
        %v2271 = vsub.bf16 0, %v2111
        %v2272 = vsub.bf16 0, %v2112
        %v2273 = vsub.bf16 0, %v2113
        %v2274 = vsub.bf16 0, %v2114
        %v2275 = vsub.bf16 0, %v2115
        %v2276 = vsub.bf16 0, %v2116
        %v2277 = vsub.bf16 0, %v2117
        %v2278 = vsub.bf16 0, %v2118
        %v2279 = vsub.bf16 0, %v2119
        %v2280 = vsub.bf16 0, %v2120
        %v2281 = vsub.bf16 0, %v2121
        %v2282 = vsub.bf16 0, %v2122
        %v2283 = vsub.bf16 0, %v2123
        %v2284 = vsub.bf16 0, %v2124
        %v2285 = vsub.bf16 0, %v2125
        %v2286 = vsub.bf16 0, %v2126
        %v2287 = vsub.bf16 0, %v2127
        %v2288 = vsub.bf16 0, %v2128
        %v2289 = vsub.bf16 0, %v2129
        %v2290 = vsub.bf16 0, %v2130
        %v2291 = vsub.bf16 0, %v2131
        %v2292 = vsub.bf16 0, %v2132
        %v2293 = vsub.bf16 0, %v2133
        %v2294 = vsub.bf16 0, %v2134
        %v2295 = vsub.bf16 0, %v2135
        %v2296 = vsub.bf16 0, %v2136
        %v2297 = vsub.bf16 0, %v2137
        %v2298 = vsub.bf16 0, %v2138
        %v2299 = vsub.bf16 0, %v2139
        %v2300 = vsub.bf16 0, %v2140
        %v2301 = vsub.bf16 0, %v2141
        %v2302 = vsub.bf16 0, %v2142
        %v2303 = vsub.bf16 0, %v2143
        %v2304 = vsub.bf16 0, %v2144
        %v2305 = vsub.bf16 0, %v2145
        %v2306 = vsub.bf16 0, %v2146
        %v2307 = vsub.bf16 0, %v2147
        %v2308 = vsub.bf16 0, %v2148
        %v2309 = vsub.bf16 0, %v2149
        %v2310 = vsub.bf16 0, %v2150
        %v2311 = vsub.bf16 0, %v2151
        %v2312 = vsub.bf16 0, %v2152
        %v2313 = vsub.bf16 0, %v2153
        %v2314 = vsub.bf16 0, %v2154
        %v2315 = vsub.bf16 0, %v2155
        %v2316 = vsub.bf16 0, %v2156
        %v2317 = vsub.bf16 0, %v2157
        %v2318 = vsub.bf16 0, %v2158
        %v2319 = vsub.bf16 0, %v2159
        %v2320 = vsub.bf16 0, %v2160
        %v2321 = vsub.bf16 0, %v2161
        %v2322 = vsub.bf16 0, %v2162
        %v2323 = vsub.bf16 0, %v2163
        %v2324 = vsub.bf16 0, %v2164
        %v2325 = vsub.bf16 0, %v2165
        %v2326 = vsub.bf16 0, %v2166
        %v2327 = vsub.bf16 0, %v2167
        %v2328 = vsub.bf16 0, %v2168
        %v2329 = vsub.bf16 0, %v2169
        %v2330 = vsub.bf16 0, %v2170
        %v2331 = vsub.bf16 0, %v2171
        %v2332 = vsub.bf16 0, %v2172
        %v2333 = vsub.bf16 0, %v2173
        %v2334 = vsub.bf16 0, %v2174
        %v2335 = vsub.bf16 0, %v2175
        %v2336 = vsub.bf16 0, %v2176
        %v2337 = vsub.bf16 0, %v2177
        %v2338 = vsub.bf16 0, %v2178
        %v2339 = vsub.bf16 0, %v2179
        %v2340 = vsub.bf16 0, %v2180
        %v2341 = vsub.bf16 0, %v2181
        %v2342 = vsub.bf16 0, %v2182
        %v2343 = vsub.bf16 0, %v2183
        %v2344 = vsub.bf16 0, %v2184
        %v2345 = vsub.bf16 0, %v2185
        %v2346 = vsub.bf16 0, %v2186
        %v2347 = vsub.bf16 0, %v2187
        %v2348 = vsub.bf16 0, %v2188
        %v2349 = vsub.bf16 0, %v2189
        %v2350 = vsub.bf16 0, %v2190
        %v2351 = vsub.bf16 0, %v2191
        %v2352 = vsub.bf16 0, %v2192
        %v2353 = vsub.bf16 0, %v2193
        %v2354 = vsub.bf16 0, %v2194
        %v2355 = vsub.bf16 0, %v2195
        %v2356 = vsub.bf16 0, %v2196
        %v2357 = vsub.bf16 0, %v2197
        %v2358 = vsub.bf16 0, %v2198
        %v2359 = vsub.bf16 0, %v2199
        %v2360 = vsub.bf16 0, %v2200
        %v2361 = vsub.bf16 0, %v2201
        %v2362 = vsub.bf16 0, %v2202
        %v2363 = vsub.bf16 0, %v2203
        %v2364 = vsub.bf16 0, %v2204
        %v2365 = vsub.bf16 0, %v2205
        %v2366 = vsub.bf16 0, %v2206
        %v2367 = vsub.bf16 0, %v2207
        %v2368 = vsub.bf16 0, %v2208
        %v2369 = vsub.bf16 0, %v2209
        %v2370 = vsub.bf16 0, %v2210
        %v2371 = vsub.bf16 0, %v2211
        %v2372 = vsub.bf16 0, %v2212
        %v2373 = vsub.bf16 0, %v2213
        %v2374 = vsub.bf16 0, %v2214
        %v2375 = vsub.bf16 0, %v2215
        %v2377 = vmul.bf16 %v2216, 1069105081
        %v2378 = vpow.bf16.pop %v2377
        %v2380 = vmul.bf16 %v2217, 1069105081
        %v2381 = vpow.bf16.pop %v2380
        %v2383 = vmul.bf16 %v2218, 1069105081
        %v2384 = vpow.bf16.pop %v2383
        %v2386 = vmul.bf16 %v2219, 1069105081
        %v2387 = vpow.bf16.pop %v2386
        %v2389 = vmul.bf16 %v2220, 1069105081
        %v2390 = vpow.bf16.pop %v2389
        %v2392 = vmul.bf16 %v2221, 1069105081
        %v2393 = vpow.bf16.pop %v2392
        %v2395 = vmul.bf16 %v2222, 1069105081
        %v2396 = vpow.bf16.pop %v2395
        %v2398 = vmul.bf16 %v2223, 1069105081
        %v2399 = vpow.bf16.pop %v2398
        %v2401 = vmul.bf16 %v2224, 1069105081
        %v2402 = vpow.bf16.pop %v2401
        %v2404 = vmul.bf16 %v2225, 1069105081
        %v2405 = vpow.bf16.pop %v2404
        %v2407 = vmul.bf16 %v2226, 1069105081
        %v2408 = vpow.bf16.pop %v2407
        %v2410 = vmul.bf16 %v2227, 1069105081
        %v2411 = vpow.bf16.pop %v2410
        %v2413 = vmul.bf16 %v2228, 1069105081
        %v2414 = vpow.bf16.pop %v2413
        %v2416 = vmul.bf16 %v2229, 1069105081
        %v2417 = vpow.bf16.pop %v2416
        %v2419 = vmul.bf16 %v2230, 1069105081
        %v2420 = vpow.bf16.pop %v2419
        %v2422 = vmul.bf16 %v2231, 1069105081
        %v2423 = vpow.bf16.pop %v2422
        %v2425 = vmul.bf16 %v2232, 1069105081
        %v2426 = vpow.bf16.pop %v2425
        %v2428 = vmul.bf16 %v2233, 1069105081
        %v2429 = vpow.bf16.pop %v2428
        %v2431 = vmul.bf16 %v2234, 1069105081
        %v2432 = vpow.bf16.pop %v2431
        %v2434 = vmul.bf16 %v2235, 1069105081
        %v2435 = vpow.bf16.pop %v2434
        %v2437 = vmul.bf16 %v2236, 1069105081
        %v2438 = vpow.bf16.pop %v2437
        %v2440 = vmul.bf16 %v2237, 1069105081
        %v2441 = vpow.bf16.pop %v2440
        %v2443 = vmul.bf16 %v2238, 1069105081
        %v2444 = vpow.bf16.pop %v2443
        %v2446 = vmul.bf16 %v2239, 1069105081
        %v2447 = vpow.bf16.pop %v2446
        %v2449 = vmul.bf16 %v2240, 1069105081
        %v2450 = vpow.bf16.pop %v2449
        %v2452 = vmul.bf16 %v2241, 1069105081
        %v2453 = vpow.bf16.pop %v2452
        %v2455 = vmul.bf16 %v2242, 1069105081
        %v2456 = vpow.bf16.pop %v2455
        %v2458 = vmul.bf16 %v2243, 1069105081
        %v2459 = vpow.bf16.pop %v2458
        %v2461 = vmul.bf16 %v2244, 1069105081
        %v2462 = vpow.bf16.pop %v2461
        %v2464 = vmul.bf16 %v2245, 1069105081
        %v2465 = vpow.bf16.pop %v2464
        %v2467 = vmul.bf16 %v2246, 1069105081
        %v2468 = vpow.bf16.pop %v2467
        %v2470 = vmul.bf16 %v2247, 1069105081
        %v2471 = vpow.bf16.pop %v2470
        %v2473 = vmul.bf16 %v2248, 1069105081
        %v2474 = vpow.bf16.pop %v2473
        %v2476 = vmul.bf16 %v2249, 1069105081
        %v2477 = vpow.bf16.pop %v2476
        %v2479 = vmul.bf16 %v2250, 1069105081
        %v2480 = vpow.bf16.pop %v2479
        %v2482 = vmul.bf16 %v2251, 1069105081
        %v2483 = vpow.bf16.pop %v2482
        %v2485 = vmul.bf16 %v2252, 1069105081
        %v2486 = vpow.bf16.pop %v2485
        %v2488 = vmul.bf16 %v2253, 1069105081
        %v2489 = vpow.bf16.pop %v2488
        %v2491 = vmul.bf16 %v2254, 1069105081
        %v2492 = vpow.bf16.pop %v2491
        %v2494 = vmul.bf16 %v2255, 1069105081
        %v2495 = vpow.bf16.pop %v2494
        %v2497 = vmul.bf16 %v2256, 1069105081
        %v2498 = vpow.bf16.pop %v2497
        %v2500 = vmul.bf16 %v2257, 1069105081
        %v2501 = vpow.bf16.pop %v2500
        %v2503 = vmul.bf16 %v2258, 1069105081
        %v2504 = vpow.bf16.pop %v2503
        %v2506 = vmul.bf16 %v2259, 1069105081
        %v2507 = vpow.bf16.pop %v2506
        %v2509 = vmul.bf16 %v2260, 1069105081
        %v2510 = vpow.bf16.pop %v2509
        %v2512 = vmul.bf16 %v2261, 1069105081
        %v2513 = vpow.bf16.pop %v2512
        %v2515 = vmul.bf16 %v2262, 1069105081
        %v2516 = vpow.bf16.pop %v2515
        %v2518 = vmul.bf16 %v2263, 1069105081
        %v2519 = vpow.bf16.pop %v2518
        %v2521 = vmul.bf16 %v2264, 1069105081
        %v2522 = vpow.bf16.pop %v2521
        %v2524 = vmul.bf16 %v2265, 1069105081
        %v2525 = vpow.bf16.pop %v2524
        %v2527 = vmul.bf16 %v2266, 1069105081
        %v2528 = vpow.bf16.pop %v2527
        %v2530 = vmul.bf16 %v2267, 1069105081
        %v2531 = vpow.bf16.pop %v2530
        %v2533 = vmul.bf16 %v2268, 1069105081
        %v2534 = vpow.bf16.pop %v2533
        %v2536 = vmul.bf16 %v2269, 1069105081
        %v2537 = vpow.bf16.pop %v2536
        %v2539 = vmul.bf16 %v2270, 1069105081
        %v2540 = vpow.bf16.pop %v2539
        %v2542 = vmul.bf16 %v2271, 1069105081
        %v2543 = vpow.bf16.pop %v2542
        %v2545 = vmul.bf16 %v2272, 1069105081
        %v2546 = vpow.bf16.pop %v2545
        %v2548 = vmul.bf16 %v2273, 1069105081
        %v2549 = vpow.bf16.pop %v2548
        %v2551 = vmul.bf16 %v2274, 1069105081
        %v2552 = vpow.bf16.pop %v2551
        %v2554 = vmul.bf16 %v2275, 1069105081
        %v2555 = vpow.bf16.pop %v2554
        %v2557 = vmul.bf16 %v2276, 1069105081
        %v2558 = vpow.bf16.pop %v2557
        %v2560 = vmul.bf16 %v2277, 1069105081
        %v2561 = vpow.bf16.pop %v2560
        %v2563 = vmul.bf16 %v2278, 1069105081
        %v2564 = vpow.bf16.pop %v2563
        %v2566 = vmul.bf16 %v2279, 1069105081
        %v2567 = vpow.bf16.pop %v2566
        %v2569 = vmul.bf16 %v2280, 1069105081
        %v2570 = vpow.bf16.pop %v2569
        %v2572 = vmul.bf16 %v2281, 1069105081
        %v2573 = vpow.bf16.pop %v2572
        %v2575 = vmul.bf16 %v2282, 1069105081
        %v2576 = vpow.bf16.pop %v2575
        %v2578 = vmul.bf16 %v2283, 1069105081
        %v2579 = vpow.bf16.pop %v2578
        %v2581 = vmul.bf16 %v2284, 1069105081
        %v2582 = vpow.bf16.pop %v2581
        %v2584 = vmul.bf16 %v2285, 1069105081
        %v2585 = vpow.bf16.pop %v2584
        %v2587 = vmul.bf16 %v2286, 1069105081
        %v2588 = vpow.bf16.pop %v2587
        %v2590 = vmul.bf16 %v2287, 1069105081
        %v2591 = vpow.bf16.pop %v2590
        %v2593 = vmul.bf16 %v2288, 1069105081
        %v2594 = vpow.bf16.pop %v2593
        %v2596 = vmul.bf16 %v2289, 1069105081
        %v2597 = vpow.bf16.pop %v2596
        %v2599 = vmul.bf16 %v2290, 1069105081
        %v2600 = vpow.bf16.pop %v2599
        %v2602 = vmul.bf16 %v2291, 1069105081
        %v2603 = vpow.bf16.pop %v2602
        %v2605 = vmul.bf16 %v2292, 1069105081
        %v2606 = vpow.bf16.pop %v2605
        %v2608 = vmul.bf16 %v2293, 1069105081
        %v2609 = vpow.bf16.pop %v2608
        %v2611 = vmul.bf16 %v2294, 1069105081
        %v2612 = vpow.bf16.pop %v2611
        %v2614 = vmul.bf16 %v2295, 1069105081
        %v2615 = vpow.bf16.pop %v2614
        %v2617 = vmul.bf16 %v2296, 1069105081
        %v2618 = vpow.bf16.pop %v2617
        %v2620 = vmul.bf16 %v2297, 1069105081
        %v2621 = vpow.bf16.pop %v2620
        %v2623 = vmul.bf16 %v2298, 1069105081
        %v2624 = vpow.bf16.pop %v2623
        %v2626 = vmul.bf16 %v2299, 1069105081
        %v2627 = vpow.bf16.pop %v2626
        %v2629 = vmul.bf16 %v2300, 1069105081
        %v2630 = vpow.bf16.pop %v2629
        %v2632 = vmul.bf16 %v2301, 1069105081
        %v2633 = vpow.bf16.pop %v2632
        %v2635 = vmul.bf16 %v2302, 1069105081
        %v2636 = vpow.bf16.pop %v2635
        %v2638 = vmul.bf16 %v2303, 1069105081
        %v2639 = vpow.bf16.pop %v2638
        %v2641 = vmul.bf16 %v2304, 1069105081
        %v2642 = vpow.bf16.pop %v2641
        %v2644 = vmul.bf16 %v2305, 1069105081
        %v2645 = vpow.bf16.pop %v2644
        %v2647 = vmul.bf16 %v2306, 1069105081
        %v2648 = vpow.bf16.pop %v2647
        %v2650 = vmul.bf16 %v2307, 1069105081
        %v2651 = vpow.bf16.pop %v2650
        %v2653 = vmul.bf16 %v2308, 1069105081
        %v2654 = vpow.bf16.pop %v2653
        %v2656 = vmul.bf16 %v2309, 1069105081
        %v2657 = vpow.bf16.pop %v2656
        %v2659 = vmul.bf16 %v2310, 1069105081
        %v2660 = vpow.bf16.pop %v2659
        %v2662 = vmul.bf16 %v2311, 1069105081
        %v2663 = vpow.bf16.pop %v2662
        %v2665 = vmul.bf16 %v2312, 1069105081
        %v2666 = vpow.bf16.pop %v2665
        %v2668 = vmul.bf16 %v2313, 1069105081
        %v2669 = vpow.bf16.pop %v2668
        %v2671 = vmul.bf16 %v2314, 1069105081
        %v2672 = vpow.bf16.pop %v2671
        %v2674 = vmul.bf16 %v2315, 1069105081
        %v2675 = vpow.bf16.pop %v2674
        %v2677 = vmul.bf16 %v2316, 1069105081
        %v2678 = vpow.bf16.pop %v2677
        %v2680 = vmul.bf16 %v2317, 1069105081
        %v2681 = vpow.bf16.pop %v2680
        %v2683 = vmul.bf16 %v2318, 1069105081
        %v2684 = vpow.bf16.pop %v2683
        %v2686 = vmul.bf16 %v2319, 1069105081
        %v2687 = vpow.bf16.pop %v2686
        %v2689 = vmul.bf16 %v2320, 1069105081
        %v2690 = vpow.bf16.pop %v2689
        %v2692 = vmul.bf16 %v2321, 1069105081
        %v2693 = vpow.bf16.pop %v2692
        %v2695 = vmul.bf16 %v2322, 1069105081
        %v2696 = vpow.bf16.pop %v2695
        %v2698 = vmul.bf16 %v2323, 1069105081
        %v2699 = vpow.bf16.pop %v2698
        %v2701 = vmul.bf16 %v2324, 1069105081
        %v2702 = vpow.bf16.pop %v2701
        %v2704 = vmul.bf16 %v2325, 1069105081
        %v2705 = vpow.bf16.pop %v2704
        %v2707 = vmul.bf16 %v2326, 1069105081
        %v2708 = vpow.bf16.pop %v2707
        %v2710 = vmul.bf16 %v2327, 1069105081
        %v2711 = vpow.bf16.pop %v2710
        %v2713 = vmul.bf16 %v2328, 1069105081
        %v2714 = vpow.bf16.pop %v2713
        %v2716 = vmul.bf16 %v2329, 1069105081
        %v2717 = vpow.bf16.pop %v2716
        %v2719 = vmul.bf16 %v2330, 1069105081
        %v2720 = vpow.bf16.pop %v2719
        %v2722 = vmul.bf16 %v2331, 1069105081
        %v2723 = vpow.bf16.pop %v2722
        %v2725 = vmul.bf16 %v2332, 1069105081
        %v2726 = vpow.bf16.pop %v2725
        %v2728 = vmul.bf16 %v2333, 1069105081
        %v2729 = vpow.bf16.pop %v2728
        %v2731 = vmul.bf16 %v2334, 1069105081
        %v2732 = vpow.bf16.pop %v2731
        %v2734 = vmul.bf16 %v2335, 1069105081
        %v2735 = vpow.bf16.pop %v2734
        %v2737 = vmul.bf16 %v2336, 1069105081
        %v2738 = vpow.bf16.pop %v2737
        %v2740 = vmul.bf16 %v2337, 1069105081
        %v2741 = vpow.bf16.pop %v2740
        %v2743 = vmul.bf16 %v2338, 1069105081
        %v2744 = vpow.bf16.pop %v2743
        %v2746 = vmul.bf16 %v2339, 1069105081
        %v2747 = vpow.bf16.pop %v2746
        %v2749 = vmul.bf16 %v2340, 1069105081
        %v2750 = vpow.bf16.pop %v2749
        %v2752 = vmul.bf16 %v2341, 1069105081
        %v2753 = vpow.bf16.pop %v2752
        %v2755 = vmul.bf16 %v2342, 1069105081
        %v2756 = vpow.bf16.pop %v2755
        %v2758 = vmul.bf16 %v2343, 1069105081
        %v2759 = vpow.bf16.pop %v2758
        %v2761 = vmul.bf16 %v2344, 1069105081
        %v2762 = vpow.bf16.pop %v2761
        %v2764 = vmul.bf16 %v2345, 1069105081
        %v2765 = vpow.bf16.pop %v2764
        %v2767 = vmul.bf16 %v2346, 1069105081
        %v2768 = vpow.bf16.pop %v2767
        %v2770 = vmul.bf16 %v2347, 1069105081
        %v2771 = vpow.bf16.pop %v2770
        %v2773 = vmul.bf16 %v2348, 1069105081
        %v2774 = vpow.bf16.pop %v2773
        %v2776 = vmul.bf16 %v2349, 1069105081
        %v2777 = vpow.bf16.pop %v2776
        %v2779 = vmul.bf16 %v2350, 1069105081
        %v2780 = vpow.bf16.pop %v2779
        %v2782 = vmul.bf16 %v2351, 1069105081
        %v2783 = vpow.bf16.pop %v2782
        %v2785 = vmul.bf16 %v2352, 1069105081
        %v2786 = vpow.bf16.pop %v2785
        %v2788 = vmul.bf16 %v2353, 1069105081
        %v2789 = vpow.bf16.pop %v2788
        %v2791 = vmul.bf16 %v2354, 1069105081
        %v2792 = vpow.bf16.pop %v2791
        %v2794 = vmul.bf16 %v2355, 1069105081
        %v2795 = vpow.bf16.pop %v2794
        %v2797 = vmul.bf16 %v2356, 1069105081
        %v2798 = vpow.bf16.pop %v2797
        %v2800 = vmul.bf16 %v2357, 1069105081
        %v2801 = vpow.bf16.pop %v2800
        %v2803 = vmul.bf16 %v2358, 1069105081
        %v2804 = vpow.bf16.pop %v2803
        %v2806 = vmul.bf16 %v2359, 1069105081
        %v2807 = vpow.bf16.pop %v2806
        %v2809 = vmul.bf16 %v2360, 1069105081
        %v2810 = vpow.bf16.pop %v2809
        %v2812 = vmul.bf16 %v2361, 1069105081
        %v2813 = vpow.bf16.pop %v2812
        %v2815 = vmul.bf16 %v2362, 1069105081
        %v2816 = vpow.bf16.pop %v2815
        %v2818 = vmul.bf16 %v2363, 1069105081
        %v2819 = vpow.bf16.pop %v2818
        %v2821 = vmul.bf16 %v2364, 1069105081
        %v2822 = vpow.bf16.pop %v2821
        %v2824 = vmul.bf16 %v2365, 1069105081
        %v2825 = vpow.bf16.pop %v2824
        %v2827 = vmul.bf16 %v2366, 1069105081
        %v2828 = vpow.bf16.pop %v2827
        %v2830 = vmul.bf16 %v2367, 1069105081
        %v2831 = vpow.bf16.pop %v2830
        %v2833 = vmul.bf16 %v2368, 1069105081
        %v2834 = vpow.bf16.pop %v2833
        %v2836 = vmul.bf16 %v2369, 1069105081
        %v2837 = vpow.bf16.pop %v2836
        %v2839 = vmul.bf16 %v2370, 1069105081
        %v2840 = vpow.bf16.pop %v2839
        %v2842 = vmul.bf16 %v2371, 1069105081
        %v2843 = vpow.bf16.pop %v2842
        %v2845 = vmul.bf16 %v2372, 1069105081
        %v2846 = vpow.bf16.pop %v2845
        %v2848 = vmul.bf16 %v2373, 1069105081
        %v2849 = vpow.bf16.pop %v2848
        %v2851 = vmul.bf16 %v2374, 1069105081
        %v2852 = vpow.bf16.pop %v2851
        %v2854 = vmul.bf16 %v2375, 1069105081
        %v2855 = vpow.bf16.pop %v2854
        %v2856 = vadd.bf16 %v2378, 1065369472
        %v2857 = vadd.bf16 %v2381, 1065369472
        %v2858 = vadd.bf16 %v2384, 1065369472
        %v2859 = vadd.bf16 %v2387, 1065369472
        %v2860 = vadd.bf16 %v2390, 1065369472
        %v2861 = vadd.bf16 %v2393, 1065369472
        %v2862 = vadd.bf16 %v2396, 1065369472
        %v2863 = vadd.bf16 %v2399, 1065369472
        %v2864 = vadd.bf16 %v2402, 1065369472
        %v2865 = vadd.bf16 %v2405, 1065369472
        %v2866 = vadd.bf16 %v2408, 1065369472
        %v2867 = vadd.bf16 %v2411, 1065369472
        %v2868 = vadd.bf16 %v2414, 1065369472
        %v2869 = vadd.bf16 %v2417, 1065369472
        %v2870 = vadd.bf16 %v2420, 1065369472
        %v2871 = vadd.bf16 %v2423, 1065369472
        %v2872 = vadd.bf16 %v2426, 1065369472
        %v2873 = vadd.bf16 %v2429, 1065369472
        %v2874 = vadd.bf16 %v2432, 1065369472
        %v2875 = vadd.bf16 %v2435, 1065369472
        %v2876 = vadd.bf16 %v2438, 1065369472
        %v2877 = vadd.bf16 %v2441, 1065369472
        %v2878 = vadd.bf16 %v2444, 1065369472
        %v2879 = vadd.bf16 %v2447, 1065369472
        %v2880 = vadd.bf16 %v2450, 1065369472
        %v2881 = vadd.bf16 %v2453, 1065369472
        %v2882 = vadd.bf16 %v2456, 1065369472
        %v2883 = vadd.bf16 %v2459, 1065369472
        %v2884 = vadd.bf16 %v2462, 1065369472
        %v2885 = vadd.bf16 %v2465, 1065369472
        %v2886 = vadd.bf16 %v2468, 1065369472
        %v2887 = vadd.bf16 %v2471, 1065369472
        %v2888 = vadd.bf16 %v2474, 1065369472
        %v2889 = vadd.bf16 %v2477, 1065369472
        %v2890 = vadd.bf16 %v2480, 1065369472
        %v2891 = vadd.bf16 %v2483, 1065369472
        %v2892 = vadd.bf16 %v2486, 1065369472
        %v2893 = vadd.bf16 %v2489, 1065369472
        %v2894 = vadd.bf16 %v2492, 1065369472
        %v2895 = vadd.bf16 %v2495, 1065369472
        %v2896 = vadd.bf16 %v2498, 1065369472
        %v2897 = vadd.bf16 %v2501, 1065369472
        %v2898 = vadd.bf16 %v2504, 1065369472
        %v2899 = vadd.bf16 %v2507, 1065369472
        %v2900 = vadd.bf16 %v2510, 1065369472
        %v2901 = vadd.bf16 %v2513, 1065369472
        %v2902 = vadd.bf16 %v2516, 1065369472
        %v2903 = vadd.bf16 %v2519, 1065369472
        %v2904 = vadd.bf16 %v2522, 1065369472
        %v2905 = vadd.bf16 %v2525, 1065369472
        %v2906 = vadd.bf16 %v2528, 1065369472
        %v2907 = vadd.bf16 %v2531, 1065369472
        %v2908 = vadd.bf16 %v2534, 1065369472
        %v2909 = vadd.bf16 %v2537, 1065369472
        %v2910 = vadd.bf16 %v2540, 1065369472
        %v2911 = vadd.bf16 %v2543, 1065369472
        %v2912 = vadd.bf16 %v2546, 1065369472
        %v2913 = vadd.bf16 %v2549, 1065369472
        %v2914 = vadd.bf16 %v2552, 1065369472
        %v2915 = vadd.bf16 %v2555, 1065369472
        %v2916 = vadd.bf16 %v2558, 1065369472
        %v2917 = vadd.bf16 %v2561, 1065369472
        %v2918 = vadd.bf16 %v2564, 1065369472
        %v2919 = vadd.bf16 %v2567, 1065369472
        %v2920 = vadd.bf16 %v2570, 1065369472
        %v2921 = vadd.bf16 %v2573, 1065369472
        %v2922 = vadd.bf16 %v2576, 1065369472
        %v2923 = vadd.bf16 %v2579, 1065369472
        %v2924 = vadd.bf16 %v2582, 1065369472
        %v2925 = vadd.bf16 %v2585, 1065369472
        %v2926 = vadd.bf16 %v2588, 1065369472
        %v2927 = vadd.bf16 %v2591, 1065369472
        %v2928 = vadd.bf16 %v2594, 1065369472
        %v2929 = vadd.bf16 %v2597, 1065369472
        %v2930 = vadd.bf16 %v2600, 1065369472
        %v2931 = vadd.bf16 %v2603, 1065369472
        %v2932 = vadd.bf16 %v2606, 1065369472
        %v2933 = vadd.bf16 %v2609, 1065369472
        %v2934 = vadd.bf16 %v2612, 1065369472
        %v2935 = vadd.bf16 %v2615, 1065369472
        %v2936 = vadd.bf16 %v2618, 1065369472
        %v2937 = vadd.bf16 %v2621, 1065369472
        %v2938 = vadd.bf16 %v2624, 1065369472
        %v2939 = vadd.bf16 %v2627, 1065369472
        %v2940 = vadd.bf16 %v2630, 1065369472
        %v2941 = vadd.bf16 %v2633, 1065369472
        %v2942 = vadd.bf16 %v2636, 1065369472
        %v2943 = vadd.bf16 %v2639, 1065369472
        %v2944 = vadd.bf16 %v2642, 1065369472
        %v2945 = vadd.bf16 %v2645, 1065369472
        %v2946 = vadd.bf16 %v2648, 1065369472
        %v2947 = vadd.bf16 %v2651, 1065369472
        %v2948 = vadd.bf16 %v2654, 1065369472
        %v2949 = vadd.bf16 %v2657, 1065369472
        %v2950 = vadd.bf16 %v2660, 1065369472
        %v2951 = vadd.bf16 %v2663, 1065369472
        %v2952 = vadd.bf16 %v2666, 1065369472
        %v2953 = vadd.bf16 %v2669, 1065369472
        %v2954 = vadd.bf16 %v2672, 1065369472
        %v2955 = vadd.bf16 %v2675, 1065369472
        %v2956 = vadd.bf16 %v2678, 1065369472
        %v2957 = vadd.bf16 %v2681, 1065369472
        %v2958 = vadd.bf16 %v2684, 1065369472
        %v2959 = vadd.bf16 %v2687, 1065369472
        %v2960 = vadd.bf16 %v2690, 1065369472
        %v2961 = vadd.bf16 %v2693, 1065369472
        %v2962 = vadd.bf16 %v2696, 1065369472
        %v2963 = vadd.bf16 %v2699, 1065369472
        %v2964 = vadd.bf16 %v2702, 1065369472
        %v2965 = vadd.bf16 %v2705, 1065369472
        %v2966 = vadd.bf16 %v2708, 1065369472
        %v2967 = vadd.bf16 %v2711, 1065369472
        %v2968 = vadd.bf16 %v2714, 1065369472
        %v2969 = vadd.bf16 %v2717, 1065369472
        %v2970 = vadd.bf16 %v2720, 1065369472
        %v2971 = vadd.bf16 %v2723, 1065369472
        %v2972 = vadd.bf16 %v2726, 1065369472
        %v2973 = vadd.bf16 %v2729, 1065369472
        %v2974 = vadd.bf16 %v2732, 1065369472
        %v2975 = vadd.bf16 %v2735, 1065369472
        %v2976 = vadd.bf16 %v2738, 1065369472
        %v2977 = vadd.bf16 %v2741, 1065369472
        %v2978 = vadd.bf16 %v2744, 1065369472
        %v2979 = vadd.bf16 %v2747, 1065369472
        %v2980 = vadd.bf16 %v2750, 1065369472
        %v2981 = vadd.bf16 %v2753, 1065369472
        %v2982 = vadd.bf16 %v2756, 1065369472
        %v2983 = vadd.bf16 %v2759, 1065369472
        %v2984 = vadd.bf16 %v2762, 1065369472
        %v2985 = vadd.bf16 %v2765, 1065369472
        %v2986 = vadd.bf16 %v2768, 1065369472
        %v2987 = vadd.bf16 %v2771, 1065369472
        %v2988 = vadd.bf16 %v2774, 1065369472
        %v2989 = vadd.bf16 %v2777, 1065369472
        %v2990 = vadd.bf16 %v2780, 1065369472
        %v2991 = vadd.bf16 %v2783, 1065369472
        %v2992 = vadd.bf16 %v2786, 1065369472
        %v2993 = vadd.bf16 %v2789, 1065369472
        %v2994 = vadd.bf16 %v2792, 1065369472
        %v2995 = vadd.bf16 %v2795, 1065369472
        %v2996 = vadd.bf16 %v2798, 1065369472
        %v2997 = vadd.bf16 %v2801, 1065369472
        %v2998 = vadd.bf16 %v2804, 1065369472
        %v2999 = vadd.bf16 %v2807, 1065369472
        %v3000 = vadd.bf16 %v2810, 1065369472
        %v3001 = vadd.bf16 %v2813, 1065369472
        %v3002 = vadd.bf16 %v2816, 1065369472
        %v3003 = vadd.bf16 %v2819, 1065369472
        %v3004 = vadd.bf16 %v2822, 1065369472
        %v3005 = vadd.bf16 %v2825, 1065369472
        %v3006 = vadd.bf16 %v2828, 1065369472
        %v3007 = vadd.bf16 %v2831, 1065369472
        %v3008 = vadd.bf16 %v2834, 1065369472
        %v3009 = vadd.bf16 %v2837, 1065369472
        %v3010 = vadd.bf16 %v2840, 1065369472
        %v3011 = vadd.bf16 %v2843, 1065369472
        %v3012 = vadd.bf16 %v2846, 1065369472
        %v3013 = vadd.bf16 %v2849, 1065369472
        %v3014 = vadd.bf16 %v2852, 1065369472
        %v3015 = vadd.bf16 %v2855, 1065369472
        %v3016 = vrcp.bf16.pop %v2856
        %v3017 = vmul.bf16 1065369472, %v3016
        %v3018 = vrcp.bf16.pop %v2857
        %v3019 = vmul.bf16 1065369472, %v3018
        %v3020 = vrcp.bf16.pop %v2858
        %v3021 = vmul.bf16 1065369472, %v3020
        %v3022 = vrcp.bf16.pop %v2859
        %v3023 = vmul.bf16 1065369472, %v3022
        %v3024 = vrcp.bf16.pop %v2860
        %v3025 = vmul.bf16 1065369472, %v3024
        %v3026 = vrcp.bf16.pop %v2861
        %v3027 = vmul.bf16 1065369472, %v3026
        %v3028 = vrcp.bf16.pop %v2862
        %v3029 = vmul.bf16 1065369472, %v3028
        %v3030 = vrcp.bf16.pop %v2863
        %v3031 = vmul.bf16 1065369472, %v3030
        %v3032 = vrcp.bf16.pop %v2864
        %v3033 = vmul.bf16 1065369472, %v3032
        %v3034 = vrcp.bf16.pop %v2865
        %v3035 = vmul.bf16 1065369472, %v3034
        %v3036 = vrcp.bf16.pop %v2866
        %v3037 = vmul.bf16 1065369472, %v3036
        %v3038 = vrcp.bf16.pop %v2867
        %v3039 = vmul.bf16 1065369472, %v3038
        %v3040 = vrcp.bf16.pop %v2868
        %v3041 = vmul.bf16 1065369472, %v3040
        %v3042 = vrcp.bf16.pop %v2869
        %v3043 = vmul.bf16 1065369472, %v3042
        %v3044 = vrcp.bf16.pop %v2870
        %v3045 = vmul.bf16 1065369472, %v3044
        %v3046 = vrcp.bf16.pop %v2871
        %v3047 = vmul.bf16 1065369472, %v3046
        %v3048 = vrcp.bf16.pop %v2872
        %v3049 = vmul.bf16 1065369472, %v3048
        %v3050 = vrcp.bf16.pop %v2873
        %v3051 = vmul.bf16 1065369472, %v3050
        %v3052 = vrcp.bf16.pop %v2874
        %v3053 = vmul.bf16 1065369472, %v3052
        %v3054 = vrcp.bf16.pop %v2875
        %v3055 = vmul.bf16 1065369472, %v3054
        %v3056 = vrcp.bf16.pop %v2876
        %v3057 = vmul.bf16 1065369472, %v3056
        %v3058 = vrcp.bf16.pop %v2877
        %v3059 = vmul.bf16 1065369472, %v3058
        %v3060 = vrcp.bf16.pop %v2878
        %v3061 = vmul.bf16 1065369472, %v3060
        %v3062 = vrcp.bf16.pop %v2879
        %v3063 = vmul.bf16 1065369472, %v3062
        %v3064 = vrcp.bf16.pop %v2880
        %v3065 = vmul.bf16 1065369472, %v3064
        %v3066 = vrcp.bf16.pop %v2881
        %v3067 = vmul.bf16 1065369472, %v3066
        %v3068 = vrcp.bf16.pop %v2882
        %v3069 = vmul.bf16 1065369472, %v3068
        %v3070 = vrcp.bf16.pop %v2883
        %v3071 = vmul.bf16 1065369472, %v3070
        %v3072 = vrcp.bf16.pop %v2884
        %v3073 = vmul.bf16 1065369472, %v3072
        %v3074 = vrcp.bf16.pop %v2885
        %v3075 = vmul.bf16 1065369472, %v3074
        %v3076 = vrcp.bf16.pop %v2886
        %v3077 = vmul.bf16 1065369472, %v3076
        %v3078 = vrcp.bf16.pop %v2887
        %v3079 = vmul.bf16 1065369472, %v3078
        %v3080 = vrcp.bf16.pop %v2888
        %v3081 = vmul.bf16 1065369472, %v3080
        %v3082 = vrcp.bf16.pop %v2889
        %v3083 = vmul.bf16 1065369472, %v3082
        %v3084 = vrcp.bf16.pop %v2890
        %v3085 = vmul.bf16 1065369472, %v3084
        %v3086 = vrcp.bf16.pop %v2891
        %v3087 = vmul.bf16 1065369472, %v3086
        %v3088 = vrcp.bf16.pop %v2892
        %v3089 = vmul.bf16 1065369472, %v3088
        %v3090 = vrcp.bf16.pop %v2893
        %v3091 = vmul.bf16 1065369472, %v3090
        %v3092 = vrcp.bf16.pop %v2894
        %v3093 = vmul.bf16 1065369472, %v3092
        %v3094 = vrcp.bf16.pop %v2895
        %v3095 = vmul.bf16 1065369472, %v3094
        %v3096 = vrcp.bf16.pop %v2896
        %v3097 = vmul.bf16 1065369472, %v3096
        %v3098 = vrcp.bf16.pop %v2897
        %v3099 = vmul.bf16 1065369472, %v3098
        %v3100 = vrcp.bf16.pop %v2898
        %v3101 = vmul.bf16 1065369472, %v3100
        %v3102 = vrcp.bf16.pop %v2899
        %v3103 = vmul.bf16 1065369472, %v3102
        %v3104 = vrcp.bf16.pop %v2900
        %v3105 = vmul.bf16 1065369472, %v3104
        %v3106 = vrcp.bf16.pop %v2901
        %v3107 = vmul.bf16 1065369472, %v3106
        %v3108 = vrcp.bf16.pop %v2902
        %v3109 = vmul.bf16 1065369472, %v3108
        %v3110 = vrcp.bf16.pop %v2903
        %v3111 = vmul.bf16 1065369472, %v3110
        %v3112 = vrcp.bf16.pop %v2904
        %v3113 = vmul.bf16 1065369472, %v3112
        %v3114 = vrcp.bf16.pop %v2905
        %v3115 = vmul.bf16 1065369472, %v3114
        %v3116 = vrcp.bf16.pop %v2906
        %v3117 = vmul.bf16 1065369472, %v3116
        %v3118 = vrcp.bf16.pop %v2907
        %v3119 = vmul.bf16 1065369472, %v3118
        %v3120 = vrcp.bf16.pop %v2908
        %v3121 = vmul.bf16 1065369472, %v3120
        %v3122 = vrcp.bf16.pop %v2909
        %v3123 = vmul.bf16 1065369472, %v3122
        %v3124 = vrcp.bf16.pop %v2910
        %v3125 = vmul.bf16 1065369472, %v3124
        %v3126 = vrcp.bf16.pop %v2911
        %v3127 = vmul.bf16 1065369472, %v3126
        %v3128 = vrcp.bf16.pop %v2912
        %v3129 = vmul.bf16 1065369472, %v3128
        %v3130 = vrcp.bf16.pop %v2913
        %v3131 = vmul.bf16 1065369472, %v3130
        %v3132 = vrcp.bf16.pop %v2914
        %v3133 = vmul.bf16 1065369472, %v3132
        %v3134 = vrcp.bf16.pop %v2915
        %v3135 = vmul.bf16 1065369472, %v3134
        %v3136 = vrcp.bf16.pop %v2916
        %v3137 = vmul.bf16 1065369472, %v3136
        %v3138 = vrcp.bf16.pop %v2917
        %v3139 = vmul.bf16 1065369472, %v3138
        %v3140 = vrcp.bf16.pop %v2918
        %v3141 = vmul.bf16 1065369472, %v3140
        %v3142 = vrcp.bf16.pop %v2919
        %v3143 = vmul.bf16 1065369472, %v3142
        %v3144 = vrcp.bf16.pop %v2920
        %v3145 = vmul.bf16 1065369472, %v3144
        %v3146 = vrcp.bf16.pop %v2921
        %v3147 = vmul.bf16 1065369472, %v3146
        %v3148 = vrcp.bf16.pop %v2922
        %v3149 = vmul.bf16 1065369472, %v3148
        %v3150 = vrcp.bf16.pop %v2923
        %v3151 = vmul.bf16 1065369472, %v3150
        %v3152 = vrcp.bf16.pop %v2924
        %v3153 = vmul.bf16 1065369472, %v3152
        %v3154 = vrcp.bf16.pop %v2925
        %v3155 = vmul.bf16 1065369472, %v3154
        %v3156 = vrcp.bf16.pop %v2926
        %v3157 = vmul.bf16 1065369472, %v3156
        %v3158 = vrcp.bf16.pop %v2927
        %v3159 = vmul.bf16 1065369472, %v3158
        %v3160 = vrcp.bf16.pop %v2928
        %v3161 = vmul.bf16 1065369472, %v3160
        %v3162 = vrcp.bf16.pop %v2929
        %v3163 = vmul.bf16 1065369472, %v3162
        %v3164 = vrcp.bf16.pop %v2930
        %v3165 = vmul.bf16 1065369472, %v3164
        %v3166 = vrcp.bf16.pop %v2931
        %v3167 = vmul.bf16 1065369472, %v3166
        %v3168 = vrcp.bf16.pop %v2932
        %v3169 = vmul.bf16 1065369472, %v3168
        %v3170 = vrcp.bf16.pop %v2933
        %v3171 = vmul.bf16 1065369472, %v3170
        %v3172 = vrcp.bf16.pop %v2934
        %v3173 = vmul.bf16 1065369472, %v3172
        %v3174 = vrcp.bf16.pop %v2935
        %v3175 = vmul.bf16 1065369472, %v3174
        %v3176 = vrcp.bf16.pop %v2936
        %v3177 = vmul.bf16 1065369472, %v3176
        %v3178 = vrcp.bf16.pop %v2937
        %v3179 = vmul.bf16 1065369472, %v3178
        %v3180 = vrcp.bf16.pop %v2938
        %v3181 = vmul.bf16 1065369472, %v3180
        %v3182 = vrcp.bf16.pop %v2939
        %v3183 = vmul.bf16 1065369472, %v3182
        %v3184 = vrcp.bf16.pop %v2940
        %v3185 = vmul.bf16 1065369472, %v3184
        %v3186 = vrcp.bf16.pop %v2941
        %v3187 = vmul.bf16 1065369472, %v3186
        %v3188 = vrcp.bf16.pop %v2942
        %v3189 = vmul.bf16 1065369472, %v3188
        %v3190 = vrcp.bf16.pop %v2943
        %v3191 = vmul.bf16 1065369472, %v3190
        %v3192 = vrcp.bf16.pop %v2944
        %v3193 = vmul.bf16 1065369472, %v3192
        %v3194 = vrcp.bf16.pop %v2945
        %v3195 = vmul.bf16 1065369472, %v3194
        %v3196 = vrcp.bf16.pop %v2946
        %v3197 = vmul.bf16 1065369472, %v3196
        %v3198 = vrcp.bf16.pop %v2947
        %v3199 = vmul.bf16 1065369472, %v3198
        %v3200 = vrcp.bf16.pop %v2948
        %v3201 = vmul.bf16 1065369472, %v3200
        %v3202 = vrcp.bf16.pop %v2949
        %v3203 = vmul.bf16 1065369472, %v3202
        %v3204 = vrcp.bf16.pop %v2950
        %v3205 = vmul.bf16 1065369472, %v3204
        %v3206 = vrcp.bf16.pop %v2951
        %v3207 = vmul.bf16 1065369472, %v3206
        %v3208 = vrcp.bf16.pop %v2952
        %v3209 = vmul.bf16 1065369472, %v3208
        %v3210 = vrcp.bf16.pop %v2953
        %v3211 = vmul.bf16 1065369472, %v3210
        %v3212 = vrcp.bf16.pop %v2954
        %v3213 = vmul.bf16 1065369472, %v3212
        %v3214 = vrcp.bf16.pop %v2955
        %v3215 = vmul.bf16 1065369472, %v3214
        %v3216 = vrcp.bf16.pop %v2956
        %v3217 = vmul.bf16 1065369472, %v3216
        %v3218 = vrcp.bf16.pop %v2957
        %v3219 = vmul.bf16 1065369472, %v3218
        %v3220 = vrcp.bf16.pop %v2958
        %v3221 = vmul.bf16 1065369472, %v3220
        %v3222 = vrcp.bf16.pop %v2959
        %v3223 = vmul.bf16 1065369472, %v3222
        %v3224 = vrcp.bf16.pop %v2960
        %v3225 = vmul.bf16 1065369472, %v3224
        %v3226 = vrcp.bf16.pop %v2961
        %v3227 = vmul.bf16 1065369472, %v3226
        %v3228 = vrcp.bf16.pop %v2962
        %v3229 = vmul.bf16 1065369472, %v3228
        %v3230 = vrcp.bf16.pop %v2963
        %v3231 = vmul.bf16 1065369472, %v3230
        %v3232 = vrcp.bf16.pop %v2964
        %v3233 = vmul.bf16 1065369472, %v3232
        %v3234 = vrcp.bf16.pop %v2965
        %v3235 = vmul.bf16 1065369472, %v3234
        %v3236 = vrcp.bf16.pop %v2966
        %v3237 = vmul.bf16 1065369472, %v3236
        %v3238 = vrcp.bf16.pop %v2967
        %v3239 = vmul.bf16 1065369472, %v3238
        %v3240 = vrcp.bf16.pop %v2968
        %v3241 = vmul.bf16 1065369472, %v3240
        %v3242 = vrcp.bf16.pop %v2969
        %v3243 = vmul.bf16 1065369472, %v3242
        %v3244 = vrcp.bf16.pop %v2970
        %v3245 = vmul.bf16 1065369472, %v3244
        %v3246 = vrcp.bf16.pop %v2971
        %v3247 = vmul.bf16 1065369472, %v3246
        %v3248 = vrcp.bf16.pop %v2972
        %v3249 = vmul.bf16 1065369472, %v3248
        %v3250 = vrcp.bf16.pop %v2973
        %v3251 = vmul.bf16 1065369472, %v3250
        %v3252 = vrcp.bf16.pop %v2974
        %v3253 = vmul.bf16 1065369472, %v3252
        %v3254 = vrcp.bf16.pop %v2975
        %v3255 = vmul.bf16 1065369472, %v3254
        %v3256 = vrcp.bf16.pop %v2976
        %v3257 = vmul.bf16 1065369472, %v3256
        %v3258 = vrcp.bf16.pop %v2977
        %v3259 = vmul.bf16 1065369472, %v3258
        %v3260 = vrcp.bf16.pop %v2978
        %v3261 = vmul.bf16 1065369472, %v3260
        %v3262 = vrcp.bf16.pop %v2979
        %v3263 = vmul.bf16 1065369472, %v3262
        %v3264 = vrcp.bf16.pop %v2980
        %v3265 = vmul.bf16 1065369472, %v3264
        %v3266 = vrcp.bf16.pop %v2981
        %v3267 = vmul.bf16 1065369472, %v3266
        %v3268 = vrcp.bf16.pop %v2982
        %v3269 = vmul.bf16 1065369472, %v3268
        %v3270 = vrcp.bf16.pop %v2983
        %v3271 = vmul.bf16 1065369472, %v3270
        %v3272 = vrcp.bf16.pop %v2984
        %v3273 = vmul.bf16 1065369472, %v3272
        %v3274 = vrcp.bf16.pop %v2985
        %v3275 = vmul.bf16 1065369472, %v3274
        %v3276 = vrcp.bf16.pop %v2986
        %v3277 = vmul.bf16 1065369472, %v3276
        %v3278 = vrcp.bf16.pop %v2987
        %v3279 = vmul.bf16 1065369472, %v3278
        %v3280 = vrcp.bf16.pop %v2988
        %v3281 = vmul.bf16 1065369472, %v3280
        %v3282 = vrcp.bf16.pop %v2989
        %v3283 = vmul.bf16 1065369472, %v3282
        %v3284 = vrcp.bf16.pop %v2990
        %v3285 = vmul.bf16 1065369472, %v3284
        %v3286 = vrcp.bf16.pop %v2991
        %v3287 = vmul.bf16 1065369472, %v3286
        %v3288 = vrcp.bf16.pop %v2992
        %v3289 = vmul.bf16 1065369472, %v3288
        %v3290 = vrcp.bf16.pop %v2993
        %v3291 = vmul.bf16 1065369472, %v3290
        %v3292 = vrcp.bf16.pop %v2994
        %v3293 = vmul.bf16 1065369472, %v3292
        %v3294 = vrcp.bf16.pop %v2995
        %v3295 = vmul.bf16 1065369472, %v3294
        %v3296 = vrcp.bf16.pop %v2996
        %v3297 = vmul.bf16 1065369472, %v3296
        %v3298 = vrcp.bf16.pop %v2997
        %v3299 = vmul.bf16 1065369472, %v3298
        %v3300 = vrcp.bf16.pop %v2998
        %v3301 = vmul.bf16 1065369472, %v3300
        %v3302 = vrcp.bf16.pop %v2999
        %v3303 = vmul.bf16 1065369472, %v3302
        %v3304 = vrcp.bf16.pop %v3000
        %v3305 = vmul.bf16 1065369472, %v3304
        %v3306 = vrcp.bf16.pop %v3001
        %v3307 = vmul.bf16 1065369472, %v3306
        %v3308 = vrcp.bf16.pop %v3002
        %v3309 = vmul.bf16 1065369472, %v3308
        %v3310 = vrcp.bf16.pop %v3003
        %v3311 = vmul.bf16 1065369472, %v3310
        %v3312 = vrcp.bf16.pop %v3004
        %v3313 = vmul.bf16 1065369472, %v3312
        %v3314 = vrcp.bf16.pop %v3005
        %v3315 = vmul.bf16 1065369472, %v3314
        %v3316 = vrcp.bf16.pop %v3006
        %v3317 = vmul.bf16 1065369472, %v3316
        %v3318 = vrcp.bf16.pop %v3007
        %v3319 = vmul.bf16 1065369472, %v3318
        %v3320 = vrcp.bf16.pop %v3008
        %v3321 = vmul.bf16 1065369472, %v3320
        %v3322 = vrcp.bf16.pop %v3009
        %v3323 = vmul.bf16 1065369472, %v3322
        %v3324 = vrcp.bf16.pop %v3010
        %v3325 = vmul.bf16 1065369472, %v3324
        %v3326 = vrcp.bf16.pop %v3011
        %v3327 = vmul.bf16 1065369472, %v3326
        %v3328 = vrcp.bf16.pop %v3012
        %v3329 = vmul.bf16 1065369472, %v3328
        %v3330 = vrcp.bf16.pop %v3013
        %v3331 = vmul.bf16 1065369472, %v3330
        %v3332 = vrcp.bf16.pop %v3014
        %v3333 = vmul.bf16 1065369472, %v3332
        %v3334 = vrcp.bf16.pop %v3015
        %v3335 = vmul.bf16 1065369472, %v3334
        %v3336 = vmul.bf16 %v2056, %v3017
        %v3337 = vmul.bf16 %v2057, %v3019
        %v3338 = vmul.bf16 %v2058, %v3021
        %v3339 = vmul.bf16 %v2059, %v3023
        %v3340 = vmul.bf16 %v2060, %v3025
        %v3341 = vmul.bf16 %v2061, %v3027
        %v3342 = vmul.bf16 %v2062, %v3029
        %v3343 = vmul.bf16 %v2063, %v3031
        %v3344 = vmul.bf16 %v2064, %v3033
        %v3345 = vmul.bf16 %v2065, %v3035
        %v3346 = vmul.bf16 %v2066, %v3037
        %v3347 = vmul.bf16 %v2067, %v3039
        %v3348 = vmul.bf16 %v2068, %v3041
        %v3349 = vmul.bf16 %v2069, %v3043
        %v3350 = vmul.bf16 %v2070, %v3045
        %v3351 = vmul.bf16 %v2071, %v3047
        %v3352 = vmul.bf16 %v2072, %v3049
        %v3353 = vmul.bf16 %v2073, %v3051
        %v3354 = vmul.bf16 %v2074, %v3053
        %v3355 = vmul.bf16 %v2075, %v3055
        %v3356 = vmul.bf16 %v2076, %v3057
        %v3357 = vmul.bf16 %v2077, %v3059
        %v3358 = vmul.bf16 %v2078, %v3061
        %v3359 = vmul.bf16 %v2079, %v3063
        %v3360 = vmul.bf16 %v2080, %v3065
        %v3361 = vmul.bf16 %v2081, %v3067
        %v3362 = vmul.bf16 %v2082, %v3069
        %v3363 = vmul.bf16 %v2083, %v3071
        %v3364 = vmul.bf16 %v2084, %v3073
        %v3365 = vmul.bf16 %v2085, %v3075
        %v3366 = vmul.bf16 %v2086, %v3077
        %v3367 = vmul.bf16 %v2087, %v3079
        %v3368 = vmul.bf16 %v2088, %v3081
        %v3369 = vmul.bf16 %v2089, %v3083
        %v3370 = vmul.bf16 %v2090, %v3085
        %v3371 = vmul.bf16 %v2091, %v3087
        %v3372 = vmul.bf16 %v2092, %v3089
        %v3373 = vmul.bf16 %v2093, %v3091
        %v3374 = vmul.bf16 %v2094, %v3093
        %v3375 = vmul.bf16 %v2095, %v3095
        %v3376 = vmul.bf16 %v2096, %v3097
        %v3377 = vmul.bf16 %v2097, %v3099
        %v3378 = vmul.bf16 %v2098, %v3101
        %v3379 = vmul.bf16 %v2099, %v3103
        %v3380 = vmul.bf16 %v2100, %v3105
        %v3381 = vmul.bf16 %v2101, %v3107
        %v3382 = vmul.bf16 %v2102, %v3109
        %v3383 = vmul.bf16 %v2103, %v3111
        %v3384 = vmul.bf16 %v2104, %v3113
        %v3385 = vmul.bf16 %v2105, %v3115
        %v3386 = vmul.bf16 %v2106, %v3117
        %v3387 = vmul.bf16 %v2107, %v3119
        %v3388 = vmul.bf16 %v2108, %v3121
        %v3389 = vmul.bf16 %v2109, %v3123
        %v3390 = vmul.bf16 %v2110, %v3125
        %v3391 = vmul.bf16 %v2111, %v3127
        %v3392 = vmul.bf16 %v2112, %v3129
        %v3393 = vmul.bf16 %v2113, %v3131
        %v3394 = vmul.bf16 %v2114, %v3133
        %v3395 = vmul.bf16 %v2115, %v3135
        %v3396 = vmul.bf16 %v2116, %v3137
        %v3397 = vmul.bf16 %v2117, %v3139
        %v3398 = vmul.bf16 %v2118, %v3141
        %v3399 = vmul.bf16 %v2119, %v3143
        %v3400 = vmul.bf16 %v2120, %v3145
        %v3401 = vmul.bf16 %v2121, %v3147
        %v3402 = vmul.bf16 %v2122, %v3149
        %v3403 = vmul.bf16 %v2123, %v3151
        %v3404 = vmul.bf16 %v2124, %v3153
        %v3405 = vmul.bf16 %v2125, %v3155
        %v3406 = vmul.bf16 %v2126, %v3157
        %v3407 = vmul.bf16 %v2127, %v3159
        %v3408 = vmul.bf16 %v2128, %v3161
        %v3409 = vmul.bf16 %v2129, %v3163
        %v3410 = vmul.bf16 %v2130, %v3165
        %v3411 = vmul.bf16 %v2131, %v3167
        %v3412 = vmul.bf16 %v2132, %v3169
        %v3413 = vmul.bf16 %v2133, %v3171
        %v3414 = vmul.bf16 %v2134, %v3173
        %v3415 = vmul.bf16 %v2135, %v3175
        %v3416 = vmul.bf16 %v2136, %v3177
        %v3417 = vmul.bf16 %v2137, %v3179
        %v3418 = vmul.bf16 %v2138, %v3181
        %v3419 = vmul.bf16 %v2139, %v3183
        %v3420 = vmul.bf16 %v2140, %v3185
        %v3421 = vmul.bf16 %v2141, %v3187
        %v3422 = vmul.bf16 %v2142, %v3189
        %v3423 = vmul.bf16 %v2143, %v3191
        %v3424 = vmul.bf16 %v2144, %v3193
        %v3425 = vmul.bf16 %v2145, %v3195
        %v3426 = vmul.bf16 %v2146, %v3197
        %v3427 = vmul.bf16 %v2147, %v3199
        %v3428 = vmul.bf16 %v2148, %v3201
        %v3429 = vmul.bf16 %v2149, %v3203
        %v3430 = vmul.bf16 %v2150, %v3205
        %v3431 = vmul.bf16 %v2151, %v3207
        %v3432 = vmul.bf16 %v2152, %v3209
        %v3433 = vmul.bf16 %v2153, %v3211
        %v3434 = vmul.bf16 %v2154, %v3213
        %v3435 = vmul.bf16 %v2155, %v3215
        %v3436 = vmul.bf16 %v2156, %v3217
        %v3437 = vmul.bf16 %v2157, %v3219
        %v3438 = vmul.bf16 %v2158, %v3221
        %v3439 = vmul.bf16 %v2159, %v3223
        %v3440 = vmul.bf16 %v2160, %v3225
        %v3441 = vmul.bf16 %v2161, %v3227
        %v3442 = vmul.bf16 %v2162, %v3229
        %v3443 = vmul.bf16 %v2163, %v3231
        %v3444 = vmul.bf16 %v2164, %v3233
        %v3445 = vmul.bf16 %v2165, %v3235
        %v3446 = vmul.bf16 %v2166, %v3237
        %v3447 = vmul.bf16 %v2167, %v3239
        %v3448 = vmul.bf16 %v2168, %v3241
        %v3449 = vmul.bf16 %v2169, %v3243
        %v3450 = vmul.bf16 %v2170, %v3245
        %v3451 = vmul.bf16 %v2171, %v3247
        %v3452 = vmul.bf16 %v2172, %v3249
        %v3453 = vmul.bf16 %v2173, %v3251
        %v3454 = vmul.bf16 %v2174, %v3253
        %v3455 = vmul.bf16 %v2175, %v3255
        %v3456 = vmul.bf16 %v2176, %v3257
        %v3457 = vmul.bf16 %v2177, %v3259
        %v3458 = vmul.bf16 %v2178, %v3261
        %v3459 = vmul.bf16 %v2179, %v3263
        %v3460 = vmul.bf16 %v2180, %v3265
        %v3461 = vmul.bf16 %v2181, %v3267
        %v3462 = vmul.bf16 %v2182, %v3269
        %v3463 = vmul.bf16 %v2183, %v3271
        %v3464 = vmul.bf16 %v2184, %v3273
        %v3465 = vmul.bf16 %v2185, %v3275
        %v3466 = vmul.bf16 %v2186, %v3277
        %v3467 = vmul.bf16 %v2187, %v3279
        %v3468 = vmul.bf16 %v2188, %v3281
        %v3469 = vmul.bf16 %v2189, %v3283
        %v3470 = vmul.bf16 %v2190, %v3285
        %v3471 = vmul.bf16 %v2191, %v3287
        %v3472 = vmul.bf16 %v2192, %v3289
        %v3473 = vmul.bf16 %v2193, %v3291
        %v3474 = vmul.bf16 %v2194, %v3293
        %v3475 = vmul.bf16 %v2195, %v3295
        %v3476 = vmul.bf16 %v2196, %v3297
        %v3477 = vmul.bf16 %v2197, %v3299
        %v3478 = vmul.bf16 %v2198, %v3301
        %v3479 = vmul.bf16 %v2199, %v3303
        %v3480 = vmul.bf16 %v2200, %v3305
        %v3481 = vmul.bf16 %v2201, %v3307
        %v3482 = vmul.bf16 %v2202, %v3309
        %v3483 = vmul.bf16 %v2203, %v3311
        %v3484 = vmul.bf16 %v2204, %v3313
        %v3485 = vmul.bf16 %v2205, %v3315
        %v3486 = vmul.bf16 %v2206, %v3317
        %v3487 = vmul.bf16 %v2207, %v3319
        %v3488 = vmul.bf16 %v2208, %v3321
        %v3489 = vmul.bf16 %v2209, %v3323
        %v3490 = vmul.bf16 %v2210, %v3325
        %v3491 = vmul.bf16 %v2211, %v3327
        %v3492 = vmul.bf16 %v2212, %v3329
        %v3493 = vmul.bf16 %v2213, %v3331
        %v3494 = vmul.bf16 %v2214, %v3333
        %v3495 = vmul.bf16 %v2215, %v3335
        %v3496 = vld [vmem:[#allocation2] sm:$0xff]
        %v3497 = vld [vmem:[#allocation2 + $0x8] sm:$0x3]
        %3498 = vmatprep.subr.bf16.mxu0 %v3337
        %3499 = vmatpush1.bf16.msra.mxu0 %v3336
        %3500 = vmatprep.subr.bf16.mxu0 %v3347
        %3501 = vmatpush1.bf16.msra.mxu0 %v3346
        %3502 = vmatprep.subr.bf16.mxu0 %v3357
        %3503 = vmatpush1.bf16.msra.mxu0 %v3356
        %3504 = vmatprep.subr.bf16.mxu0 %v3367
        %3505 = vmatpush1.bf16.msra.mxu0 %v3366
        %3506 = vmatprep.subr.bf16.mxu0 %v3377
        %3507 = vmatpush1.bf16.msra.mxu0 %v3376
        %3508 = vmatprep.subr.bf16.mxu0 %v3387
        %3509 = vmatpush1.bf16.msra.mxu0 %v3386
        %3510 = vmatprep.subr.bf16.mxu0 %v3397
        %3511 = vmatpush1.bf16.msra.mxu0 %v3396
        %3512 = vmatprep.subr.bf16.mxu0 %v3407
        %3513 = vmatpush1.bf16.msra.mxu0 %v3406
        %3514 = vmatprep.subr.bf16.mxu0 %v3417
        %3515 = vmatpush1.bf16.msra.mxu0 %v3416
        %3516 = vmatprep.subr.bf16.mxu0 %v3427
        %3517 = vmatpush1.bf16.msra.mxu0 %v3426
        %3518 = vmatprep.subr.bf16.mxu0 %v3437
        %3519 = vmatpush1.bf16.msra.mxu0 %v3436
        %3520 = vmatprep.subr.bf16.mxu0 %v3447
        %3521 = vmatpush1.bf16.msra.mxu0 %v3446
        %3522 = vmatprep.subr.bf16.mxu0 %v3457
        %3523 = vmatpush1.bf16.msra.mxu0 %v3456
        %3524 = vmatprep.subr.bf16.mxu0 %v3467
        %3525 = vmatpush1.bf16.msra.mxu0 %v3466
        %3526 = vmatprep.subr.bf16.mxu0 %v3477
        %3527 = vmatpush1.bf16.msra.mxu0 %v3476
        %3528 = vmatprep.subr.bf16.mxu0 %v3487
        %3529 = vmatpush1.bf16.msra.mxu0 %v3486
        %3530 = vmatprep.mubr.bf16.mxu0 1065369472
        %3531 = vmatmul.mubr.bf16.gmra.mrb[0].mxu0 1065369472
        %v3532 = vpop.f32.mrb[0].mxu0
        %v3533 = vadd.f32 0.0, %v3532
        %v3534 = vpop.f32.mrb[0].mxu0
        %v3535 = vadd.f32 0.0, %v3534
        %v3536 = vpop.f32.mrb[0].mxu0
        %v3537 = vpop.f32.mrb[0].mxu0
        %3538 = vdwg.mxu0
        %3539 = vmatprep.subr.bf16.mxu0 %v3339
        %3540 = vmatpush1.bf16.msra.mxu0 %v3338
        %3541 = vmatprep.subr.bf16.mxu0 %v3349
        %3542 = vmatpush1.bf16.msra.mxu0 %v3348
        %3543 = vmatprep.subr.bf16.mxu0 %v3359
        %3544 = vmatpush1.bf16.msra.mxu0 %v3358
        %3545 = vmatprep.subr.bf16.mxu0 %v3369
        %3546 = vmatpush1.bf16.msra.mxu0 %v3368
        %3547 = vmatprep.subr.bf16.mxu0 %v3379
        %3548 = vmatpush1.bf16.msra.mxu0 %v3378
        %3549 = vmatprep.subr.bf16.mxu0 %v3389
        %3550 = vmatpush1.bf16.msra.mxu0 %v3388
        %3551 = vmatprep.subr.bf16.mxu0 %v3399
        %3552 = vmatpush1.bf16.msra.mxu0 %v3398
        %3553 = vmatprep.subr.bf16.mxu0 %v3409
        %3554 = vmatpush1.bf16.msra.mxu0 %v3408
        %3555 = vmatprep.subr.bf16.mxu0 %v3419
        %3556 = vmatpush1.bf16.msra.mxu0 %v3418
        %3557 = vmatprep.subr.bf16.mxu0 %v3429
        %3558 = vmatpush1.bf16.msra.mxu0 %v3428
        %3559 = vmatprep.subr.bf16.mxu0 %v3439
        %3560 = vmatpush1.bf16.msra.mxu0 %v3438
        %3561 = vmatprep.subr.bf16.mxu0 %v3449
        %3562 = vmatpush1.bf16.msra.mxu0 %v3448
        %3563 = vmatprep.subr.bf16.mxu0 %v3459
        %3564 = vmatpush1.bf16.msra.mxu0 %v3458
        %3565 = vmatprep.subr.bf16.mxu0 %v3469
        %3566 = vmatpush1.bf16.msra.mxu0 %v3468
        %3567 = vmatprep.subr.bf16.mxu0 %v3479
        %3568 = vmatpush1.bf16.msra.mxu0 %v3478
        %3569 = vmatprep.subr.bf16.mxu0 %v3489
        %3570 = vmatpush1.bf16.msra.mxu0 %v3488
        %3571 = vmatprep.mubr.bf16.mxu0 1065369472
        %3572 = vmatmul.mubr.bf16.gmra.mrb[0].mxu0 1065369472
        %v3573 = vpop.f32.mrb[0].mxu0
        %v3574 = vadd.f32 0.0, %v3573
        %v3575 = vpop.f32.mrb[0].mxu0
        %v3576 = vadd.f32 0.0, %v3575
        %v3577 = vpop.f32.mrb[0].mxu0
        %v3578 = vpop.f32.mrb[0].mxu0
        %3579 = vdwg.mxu0
        %3580 = vmatprep.subr.bf16.mxu0 %v3341
        %3581 = vmatpush1.bf16.msra.mxu0 %v3340
        %3582 = vmatprep.subr.bf16.mxu0 %v3351
        %3583 = vmatpush1.bf16.msra.mxu0 %v3350
        %3584 = vmatprep.subr.bf16.mxu0 %v3361
        %3585 = vmatpush1.bf16.msra.mxu0 %v3360
        %3586 = vmatprep.subr.bf16.mxu0 %v3371
        %3587 = vmatpush1.bf16.msra.mxu0 %v3370
        %3588 = vmatprep.subr.bf16.mxu0 %v3381
        %3589 = vmatpush1.bf16.msra.mxu0 %v3380
        %3590 = vmatprep.subr.bf16.mxu0 %v3391
        %3591 = vmatpush1.bf16.msra.mxu0 %v3390
        %3592 = vmatprep.subr.bf16.mxu0 %v3401
        %3593 = vmatpush1.bf16.msra.mxu0 %v3400
        %3594 = vmatprep.subr.bf16.mxu0 %v3411
        %3595 = vmatpush1.bf16.msra.mxu0 %v3410
        %3596 = vmatprep.subr.bf16.mxu0 %v3421
        %3597 = vmatpush1.bf16.msra.mxu0 %v3420
        %3598 = vmatprep.subr.bf16.mxu0 %v3431
        %3599 = vmatpush1.bf16.msra.mxu0 %v3430
        %3600 = vmatprep.subr.bf16.mxu0 %v3441
        %3601 = vmatpush1.bf16.msra.mxu0 %v3440
        %3602 = vmatprep.subr.bf16.mxu0 %v3451
        %3603 = vmatpush1.bf16.msra.mxu0 %v3450
        %3604 = vmatprep.subr.bf16.mxu0 %v3461
        %3605 = vmatpush1.bf16.msra.mxu0 %v3460
        %3606 = vmatprep.subr.bf16.mxu0 %v3471
        %3607 = vmatpush1.bf16.msra.mxu0 %v3470
        %3608 = vmatprep.subr.bf16.mxu0 %v3481
        %3609 = vmatpush1.bf16.msra.mxu0 %v3480
        %3610 = vmatprep.subr.bf16.mxu0 %v3491
        %3611 = vmatpush1.bf16.msra.mxu0 %v3490
        %3612 = vmatprep.mubr.bf16.mxu0 1065369472
        %3613 = vmatmul.mubr.bf16.gmra.mrb[0].mxu0 1065369472
        %v3614 = vpop.f32.mrb[0].mxu0
        %v3615 = vadd.f32 0.0, %v3614
        %v3616 = vpop.f32.mrb[0].mxu0
        %v3617 = vadd.f32 0.0, %v3616
        %v3618 = vpop.f32.mrb[0].mxu0
        %v3619 = vpop.f32.mrb[0].mxu0
        %3620 = vdwg.mxu0
        %3621 = vmatprep.subr.bf16.mxu0 %v3343
        %3622 = vmatpush1.bf16.msra.mxu0 %v3342
        %3623 = vmatprep.subr.bf16.mxu0 %v3353
        %3624 = vmatpush1.bf16.msra.mxu0 %v3352
        %3625 = vmatprep.subr.bf16.mxu0 %v3363
        %3626 = vmatpush1.bf16.msra.mxu0 %v3362
        %3627 = vmatprep.subr.bf16.mxu0 %v3373
        %3628 = vmatpush1.bf16.msra.mxu0 %v3372
        %3629 = vmatprep.subr.bf16.mxu0 %v3383
        %3630 = vmatpush1.bf16.msra.mxu0 %v3382
        %3631 = vmatprep.subr.bf16.mxu0 %v3393
        %3632 = vmatpush1.bf16.msra.mxu0 %v3392
        %3633 = vmatprep.subr.bf16.mxu0 %v3403
        %3634 = vmatpush1.bf16.msra.mxu0 %v3402
        %3635 = vmatprep.subr.bf16.mxu0 %v3413
        %3636 = vmatpush1.bf16.msra.mxu0 %v3412
        %3637 = vmatprep.subr.bf16.mxu0 %v3423
        %3638 = vmatpush1.bf16.msra.mxu0 %v3422
        %3639 = vmatprep.subr.bf16.mxu0 %v3433
        %3640 = vmatpush1.bf16.msra.mxu0 %v3432
        %3641 = vmatprep.subr.bf16.mxu0 %v3443
        %3642 = vmatpush1.bf16.msra.mxu0 %v3442
        %3643 = vmatprep.subr.bf16.mxu0 %v3453
        %3644 = vmatpush1.bf16.msra.mxu0 %v3452
        %3645 = vmatprep.subr.bf16.mxu0 %v3463
        %3646 = vmatpush1.bf16.msra.mxu0 %v3462
        %3647 = vmatprep.subr.bf16.mxu0 %v3473
        %3648 = vmatpush1.bf16.msra.mxu0 %v3472
        %3649 = vmatprep.subr.bf16.mxu0 %v3483
        %3650 = vmatpush1.bf16.msra.mxu0 %v3482
        %3651 = vmatprep.subr.bf16.mxu0 %v3493
        %3652 = vmatpush1.bf16.msra.mxu0 %v3492
        %3653 = vmatprep.mubr.bf16.mxu0 1065369472
        %3654 = vmatmul.mubr.bf16.gmra.mrb[0].mxu0 1065369472
        %v3655 = vpop.f32.mrb[0].mxu0
        %v3656 = vadd.f32 0.0, %v3655
        %v3657 = vpop.f32.mrb[0].mxu0
        %v3658 = vadd.f32 0.0, %v3657
        %v3659 = vpop.f32.mrb[0].mxu0
        %v3660 = vpop.f32.mrb[0].mxu0
        %3661 = vdwg.mxu0
        %3662 = vmatprep.subr.bf16.mxu0 %v3345
        %3663 = vmatpush1.bf16.msra.mxu0 %v3344
        %3664 = vmatprep.subr.bf16.mxu0 %v3355
        %3665 = vmatpush1.bf16.msra.mxu0 %v3354
        %3666 = vmatprep.subr.bf16.mxu0 %v3365
        %3667 = vmatpush1.bf16.msra.mxu0 %v3364
        %3668 = vmatprep.subr.bf16.mxu0 %v3375
        %3669 = vmatpush1.bf16.msra.mxu0 %v3374
        %3670 = vmatprep.subr.bf16.mxu0 %v3385
        %3671 = vmatpush1.bf16.msra.mxu0 %v3384
        %3672 = vmatprep.subr.bf16.mxu0 %v3395
        %3673 = vmatpush1.bf16.msra.mxu0 %v3394
        %3674 = vmatprep.subr.bf16.mxu0 %v3405
        %3675 = vmatpush1.bf16.msra.mxu0 %v3404
        %3676 = vmatprep.subr.bf16.mxu0 %v3415
        %3677 = vmatpush1.bf16.msra.mxu0 %v3414
        %3678 = vmatprep.subr.bf16.mxu0 %v3425
        %3679 = vmatpush1.bf16.msra.mxu0 %v3424
        %3680 = vmatprep.subr.bf16.mxu0 %v3435
        %3681 = vmatpush1.bf16.msra.mxu0 %v3434
        %3682 = vmatprep.subr.bf16.mxu0 %v3445
        %3683 = vmatpush1.bf16.msra.mxu0 %v3444
        %3684 = vmatprep.subr.bf16.mxu0 %v3455
        %3685 = vmatpush1.bf16.msra.mxu0 %v3454
        %3686 = vmatprep.subr.bf16.mxu0 %v3465
        %3687 = vmatpush1.bf16.msra.mxu0 %v3464
        %3688 = vmatprep.subr.bf16.mxu0 %v3475
        %3689 = vmatpush1.bf16.msra.mxu0 %v3474
        %3690 = vmatprep.subr.bf16.mxu0 %v3485
        %3691 = vmatpush1.bf16.msra.mxu0 %v3484
        %3692 = vmatprep.subr.bf16.mxu0 %v3495
        %3693 = vmatpush1.bf16.msra.mxu0 %v3494
        %3694 = vmatprep.mubr.bf16.mxu0 1065369472
        %3695 = vmatmul.mubr.bf16.gmra.mrb[0].mxu0 1065369472
        %v3696 = vpop.f32.mrb[0].mxu0
        %v3697 = vadd.f32 0.0, %v3696
        %v3698 = vpop.f32.mrb[0].mxu0
        %v3699 = vadd.f32 0.0, %v3698
        %v3700 = vpop.f32.mrb[0].mxu0
        %v3701 = vpop.f32.mrb[0].mxu0
        %3702 = vdwg.mxu0
        %v3713 = vcombine.low %v3533, %v3535
        %v3714 = vcombine.low %v3574, %v3576
        %v3715 = vcombine.low %v3615, %v3617
        %v3716 = vcombine.low %v3656, %v3658
        %v3718 = vunpack.c.l.s4 1966171168
        %v3719 = vunpack.c.0.s8 %v3718
        %v3720 = vlaneseq
        %v3721 = vshrl.u32 %v3720, 7
        %v3722 = vsub.s32 %v3719, %v3721
        %v3723 = vrot.slane %v3713, %v3722
        %v3725 = vunpack.c.l.s4 1966171168
        %v3726 = vunpack.c.0.s8 %v3725
        %v3727 = vlaneseq
        %v3728 = vshrl.u32 %v3727, 7
        %v3729 = vsub.s32 %v3726, %v3728
        %v3730 = vrot.slane %v3714, %v3729
        %v3732 = vunpack.c.l.s4 1966171168
        %v3733 = vunpack.c.0.s8 %v3732
        %v3734 = vlaneseq
        %v3735 = vshrl.u32 %v3734, 7
        %v3736 = vsub.s32 %v3733, %v3735
        %v3737 = vrot.slane %v3715, %v3736
        %v3739 = vunpack.c.l.s4 1966171168
        %v3740 = vunpack.c.0.s8 %v3739
        %v3741 = vlaneseq
        %v3742 = vshrl.u32 %v3741, 7
        %v3743 = vsub.s32 %v3740, %v3742
        %v3744 = vrot.slane %v3716, %v3743
        %v3745 = vcombine.low %v3723, %v3730
        %v3746 = vcombine.low %v3737, %v3744
        %v3748 = vunpack.c.l.s4 1966171168
        %v3749 = vunpack.c.0.s8 %v3748
        %v3750 = vlaneseq
        %v3751 = vshrl.u32 %v3750, 7
        %v3752 = vsub.s32 %v3749, %v3751
        %v3753 = vrot.slane %v3745, %v3752
        %v3755 = vunpack.c.l.s4 1966171168
        %v3756 = vunpack.c.0.s8 %v3755
        %v3757 = vlaneseq
        %v3758 = vshrl.u32 %v3757, 7
        %v3759 = vsub.s32 %v3756, %v3758
        %v3760 = vrot.slane %v3746, %v3759
        %v3761 = vcombine.low %v3753, %v3760
        %v3762 = vcombine.low %v3697, %v3699
        %v3764 = vunpack.c.l.s4 1966171168
        %v3765 = vunpack.c.0.s8 %v3764
        %v3766 = vlaneseq
        %v3767 = vshrl.u32 %v3766, 7
        %v3768 = vsub.s32 %v3765, %v3767
        %v3769 = vrot.slane %v3762, %v3768
        %v3771 = vunpack.c.l.s4 1966171168
        %v3772 = vunpack.c.0.s8 %v3771
        %v3773 = vlaneseq
        %v3774 = vshrl.u32 %v3773, 7
        %v3775 = vsub.s32 %v3772, %v3774
        %v3776 = vrot.slane %v3769, %v3775
        %v3779 = vadd.f32 %v3496, %v3761
        %v3780 = vadd.f32 %v3497, %v3776
        %3781 = vst [vmem:[#allocation2] sm:$0xff] %v3779
        %v3782 = vlaneseq
        %vm3783 = vcmp.ge.s32.totalorder %v3782, 0
        %vm3784 = vcmp.lt.s32.totalorder %v3782, 256
        %vm3785 = vmand %vm3783, %vm3784
        %3786 = vst.msk [vmem:[#allocation2 + $0x8] sm:$0x3] %vm3785, %v3780
        // Predicated region
        $region53: #{simple_card_classifier_forward.1} parent=47 // pred_check
          %p3787 = pneg %p306
        $region54: #{simple_card_classifier_forward.1} parent=47 // pred_check_branch
          %3789 = sbr.rel (%p3787) target = $region56
        $region55: #{simple_card_classifier_forward.1} parent=47 // pred_region
          %v3790 = vld [vmem:[#allocation2] sm:$0xff]
          %v3791 = vld [vmem:[#allocation2 + $0x8] sm:$0x3]
          %v3792 = vmul.f32 %v3790, 0.00390625
          %v3793 = vmul.f32 %v3791, 0.00390625
          %v3796 = vlaneseq
          %v3797 = vshrl.u32 %v3796, 7
          %v3798 = vsub.s32 0, %v3797
          %v3799 = vrot.slane %v3792, %v3798
          %v3800 = vlaneseq
          %v3801 = vshrl.u32 %v3800, 7
          %v3802 = vsub.s32 1, %v3801
          %v3803 = vrot.slane %v3792, %v3802
          %v3804 = vlaneseq
          %v3805 = vshrl.u32 %v3804, 7
          %v3806 = vsub.s32 2, %v3805
          %v3807 = vrot.slane %v3792, %v3806
          %v3808 = vlaneseq
          %v3809 = vshrl.u32 %v3808, 7
          %v3810 = vsub.s32 3, %v3809
          %v3811 = vrot.slane %v3792, %v3810
          %v3812 = vlaneseq
          %v3813 = vshrl.u32 %v3812, 7
          %v3814 = vsub.s32 4, %v3813
          %v3815 = vrot.slane %v3792, %v3814
          %v3816 = vlaneseq
          %v3817 = vshrl.u32 %v3816, 7
          %v3818 = vsub.s32 5, %v3817
          %v3819 = vrot.slane %v3792, %v3818
          %v3820 = vlaneseq
          %v3821 = vshrl.u32 %v3820, 7
          %v3822 = vsub.s32 6, %v3821
          %v3823 = vrot.slane %v3792, %v3822
          %v3824 = vlaneseq
          %v3825 = vshrl.u32 %v3824, 7
          %v3826 = vsub.s32 7, %v3825
          %v3827 = vrot.slane %v3792, %v3826
          %v3828 = vlaneseq
          %v3829 = vshrl.u32 %v3828, 7
          %v3830 = vsub.s32 0, %v3829
          %v3831 = vrot.slane %v3793, %v3830
          %v3832 = vlaneseq
          %v3833 = vshrl.u32 %v3832, 7
          %v3834 = vsub.s32 1, %v3833
          %v3835 = vrot.slane %v3793, %v3834
          %v3846 = vpack.c.bf16 %v3799, %v3799
          %v3847 = vpack.c.bf16 %v3803, %v3803
          %v3848 = vpack.c.bf16 %v3807, %v3807
          %v3849 = vpack.c.bf16 %v3811, %v3811
          %v3850 = vpack.c.bf16 %v3815, %v3815
          %v3851 = vpack.c.bf16 %v3819, %v3819
          %v3852 = vpack.c.bf16 %v3823, %v3823
          %v3853 = vpack.c.bf16 %v3827, %v3827
          %v3854 = vpack.c.bf16 %v3831, %v3831
          %v3855 = vpack.c.bf16 %v3835, %v3835
          %v3856 = vld [vmem:[%s5] sm:$0xf]
          %v3857 = vld [vmem:[%s5 + $0x4] sm:$0xf]
          %v3858 = vld [vmem:[%s5 + $0x8] sm:$0xf]
          %v3859 = vld [vmem:[%s5 + $0xc] sm:$0xf]
          %v3860 = vld [vmem:[%s5 + $0x10] sm:$0xf]
          %v3861 = vld [vmem:[%s5 + $0x14] sm:$0xf]
          %v3862 = vld [vmem:[%s5 + $0x18] sm:$0xf]
          %v3863 = vld [vmem:[%s5 + $0x1c] sm:$0xf]
          %v3864 = vld [vmem:[%s5 + $0x20] sm:$0xf]
          %v3865 = vld [vmem:[%s5 + $0x24] sm:$0xf]
          %v3866 = vld [vmem:[%s5 + $0x28] sm:$0xf]
          %v3867 = vld [vmem:[%s5 + $0x2c] sm:$0xf]
          %v3868 = vld [vmem:[%s5 + $0x30] sm:$0xf]
          %v3869 = vld [vmem:[%s5 + $0x34] sm:$0xf]
          %v3870 = vld [vmem:[%s5 + $0x38] sm:$0xf]
          %v3871 = vld [vmem:[%s5 + $0x3c] sm:$0xf]
          %v3872 = vld [vmem:[%s5 + $0x40] sm:$0xf]
          %v3873 = vld [vmem:[%s5 + $0x44] sm:$0xf]
          %v3874 = vld [vmem:[%s5 + $0x48] sm:$0xf]
          %v3875 = vld [vmem:[%s5 + $0x4c] sm:$0xf]
          %v3876 = vld [vmem:[%s5 + $0x50] sm:$0xf]
          %v3877 = vld [vmem:[%s5 + $0x54] sm:$0xf]
          %v3878 = vld [vmem:[%s5 + $0x58] sm:$0xf]
          %v3879 = vld [vmem:[%s5 + $0x5c] sm:$0xf]
          %v3880 = vld [vmem:[%s5 + $0x60] sm:$0xf]
          %v3881 = vld [vmem:[%s5 + $0x64] sm:$0xf]
          %v3882 = vld [vmem:[%s5 + $0x68] sm:$0xf]
          %v3883 = vld [vmem:[%s5 + $0x6c] sm:$0xf]
          %v3884 = vld [vmem:[%s5 + $0x70] sm:$0xf]
          %v3885 = vld [vmem:[%s5 + $0x74] sm:$0xf]
          %v3886 = vld [vmem:[%s5 + $0x78] sm:$0xf]
          %v3887 = vld [vmem:[%s5 + $0x7c] sm:$0xf]
          %v3888 = vld [vmem:[%s5 + $0x80] sm:$0xf]
          %v3889 = vld [vmem:[%s5 + $0x84] sm:$0xf]
          %v3890 = vld [vmem:[%s5 + $0x88] sm:$0xf]
          %v3891 = vld [vmem:[%s5 + $0x8c] sm:$0xf]
          %v3892 = vld [vmem:[%s5 + $0x90] sm:$0xf]
          %v3893 = vld [vmem:[%s5 + $0x94] sm:$0xf]
          %v3894 = vld [vmem:[%s5 + $0x98] sm:$0xf]
          %v3895 = vld [vmem:[%s5 + $0x9c] sm:$0xf]
          %v3896 = vld [vmem:[%s5 + $0xa0] sm:$0xf]
          %v3897 = vld [vmem:[%s5 + $0xa4] sm:$0xf]
          %v3898 = vld [vmem:[%s5 + $0xa8] sm:$0xf]
          %v3899 = vld [vmem:[%s5 + $0xac] sm:$0xf]
          %v3900 = vld [vmem:[%s5 + $0xb0] sm:$0xf]
          %v3901 = vld [vmem:[%s5 + $0xb4] sm:$0xf]
          %v3902 = vld [vmem:[%s5 + $0xb8] sm:$0xf]
          %v3903 = vld [vmem:[%s5 + $0xbc] sm:$0xf]
          %v3904 = vld [vmem:[%s5 + $0xc0] sm:$0xf]
          %v3905 = vld [vmem:[%s5 + $0xc4] sm:$0xf]
          %v3906 = vld [vmem:[%s5 + $0xc8] sm:$0xf]
          %v3907 = vld [vmem:[%s5 + $0xcc] sm:$0xf]
          %v3908 = vld [vmem:[%s5 + $0xd0] sm:$0xf]
          %v3909 = vld [vmem:[%s5 + $0xd4] sm:$0xf]
          %v3910 = vld [vmem:[%s5 + $0xd8] sm:$0xf]
          %v3911 = vld [vmem:[%s5 + $0xdc] sm:$0xf]
          %v3912 = vld [vmem:[%s5 + $0xe0] sm:$0xf]
          %v3913 = vld [vmem:[%s5 + $0xe4] sm:$0xf]
          %v3914 = vld [vmem:[%s5 + $0xe8] sm:$0xf]
          %v3915 = vld [vmem:[%s5 + $0xec] sm:$0xf]
          %v3916 = vld [vmem:[%s5 + $0xf0] sm:$0xf]
          %v3917 = vld [vmem:[%s5 + $0xf4] sm:$0xf]
          %v3918 = vld [vmem:[%s5 + $0xf8] sm:$0xf]
          %v3919 = vld [vmem:[%s5 + $0xfc] sm:$0xf]
          %v3920 = vld [vmem:[%s5 + $0x100] sm:$0xf]
          %v3921 = vld [vmem:[%s5 + $0x104] sm:$0xf]
          %v3922 = vld [vmem:[%s5 + $0x108] sm:$0xf]
          %v3923 = vld [vmem:[%s5 + $0x10c] sm:$0xf]
          %v3924 = vld [vmem:[%s5 + $0x110] sm:$0xf]
          %v3925 = vld [vmem:[%s5 + $0x114] sm:$0xf]
          %v3926 = vld [vmem:[%s5 + $0x118] sm:$0xf]
          %v3927 = vld [vmem:[%s5 + $0x11c] sm:$0xf]
          %v3928 = vld [vmem:[%s5 + $0x120] sm:$0xf]
          %v3929 = vld [vmem:[%s5 + $0x124] sm:$0xf]
          %v3930 = vld [vmem:[%s5 + $0x128] sm:$0xf]
          %v3931 = vld [vmem:[%s5 + $0x12c] sm:$0xf]
          %v3932 = vld [vmem:[%s5 + $0x130] sm:$0xf]
          %v3933 = vld [vmem:[%s5 + $0x134] sm:$0xf]
          %v3934 = vld [vmem:[%s5 + $0x138] sm:$0xf]
          %v3935 = vld [vmem:[%s5 + $0x13c] sm:$0xf]
          %v3936 = vld [vmem:[%s5 + $0x140] sm:$0xf]
          %v3937 = vld [vmem:[%s5 + $0x144] sm:$0xf]
          %v3938 = vld [vmem:[%s5 + $0x148] sm:$0xf]
          %v3939 = vld [vmem:[%s5 + $0x14c] sm:$0xf]
          %v3940 = vld [vmem:[%s5 + $0x150] sm:$0xf]
          %v3941 = vld [vmem:[%s5 + $0x154] sm:$0xf]
          %v3942 = vld [vmem:[%s5 + $0x158] sm:$0xf]
          %v3943 = vld [vmem:[%s5 + $0x15c] sm:$0xf]
          %v3944 = vld [vmem:[%s5 + $0x160] sm:$0xf]
          %v3945 = vld [vmem:[%s5 + $0x164] sm:$0xf]
          %v3946 = vld [vmem:[%s5 + $0x168] sm:$0xf]
          %v3947 = vld [vmem:[%s5 + $0x16c] sm:$0xf]
          %v3948 = vld [vmem:[%s5 + $0x170] sm:$0xf]
          %v3949 = vld [vmem:[%s5 + $0x174] sm:$0xf]
          %v3950 = vld [vmem:[%s5 + $0x178] sm:$0xf]
          %v3951 = vld [vmem:[%s5 + $0x17c] sm:$0xf]
          %v3952 = vld [vmem:[%s5 + $0x180] sm:$0xf]
          %v3953 = vld [vmem:[%s5 + $0x184] sm:$0xf]
          %v3954 = vld [vmem:[%s5 + $0x188] sm:$0xf]
          %v3955 = vld [vmem:[%s5 + $0x18c] sm:$0xf]
          %v3956 = vld [vmem:[%s5 + $0x190] sm:$0xf]
          %v3957 = vld [vmem:[%s5 + $0x194] sm:$0xf]
          %v3958 = vld [vmem:[%s5 + $0x198] sm:$0xf]
          %v3959 = vld [vmem:[%s5 + $0x19c] sm:$0xf]
          %v3960 = vld [vmem:[%s5 + $0x1a0] sm:$0xf]
          %v3961 = vld [vmem:[%s5 + $0x1a4] sm:$0xf]
          %v3962 = vld [vmem:[%s5 + $0x1a8] sm:$0xf]
          %v3963 = vld [vmem:[%s5 + $0x1ac] sm:$0xf]
          %v3964 = vld [vmem:[%s5 + $0x1b0] sm:$0xf]
          %v3965 = vld [vmem:[%s5 + $0x1b4] sm:$0xf]
          %v3966 = vld [vmem:[%s5 + $0x1b8] sm:$0xf]
          %v3967 = vld [vmem:[%s5 + $0x1bc] sm:$0xf]
          %v3968 = vld [vmem:[%s5 + $0x1c0] sm:$0xf]
          %v3969 = vld [vmem:[%s5 + $0x1c4] sm:$0xf]
          %v3970 = vld [vmem:[%s5 + $0x1c8] sm:$0xf]
          %v3971 = vld [vmem:[%s5 + $0x1cc] sm:$0xf]
          %v3972 = vld [vmem:[%s5 + $0x1d0] sm:$0xf]
          %v3973 = vld [vmem:[%s5 + $0x1d4] sm:$0xf]
          %v3974 = vld [vmem:[%s5 + $0x1d8] sm:$0xf]
          %v3975 = vld [vmem:[%s5 + $0x1dc] sm:$0xf]
          %v3976 = vld [vmem:[%s5 + $0x1e0] sm:$0xf]
          %v3977 = vld [vmem:[%s5 + $0x1e4] sm:$0xf]
          %v3978 = vld [vmem:[%s5 + $0x1e8] sm:$0xf]
          %v3979 = vld [vmem:[%s5 + $0x1ec] sm:$0xf]
          %v3980 = vld [vmem:[%s5 + $0x1f0] sm:$0xf]
          %v3981 = vld [vmem:[%s5 + $0x1f4] sm:$0xf]
          %v3982 = vld [vmem:[%s5 + $0x1f8] sm:$0xf]
          %v3983 = vld [vmem:[%s5 + $0x1fc] sm:$0xf]
          %v3984 = vld [vmem:[%s5 + $0x200] sm:$0xf]
          %v3985 = vld [vmem:[%s5 + $0x204] sm:$0xf]
          %v3986 = vld [vmem:[%s5 + $0x208] sm:$0xf]
          %v3987 = vld [vmem:[%s5 + $0x20c] sm:$0xf]
          %v3988 = vld [vmem:[%s5 + $0x210] sm:$0xf]
          %v3989 = vld [vmem:[%s5 + $0x214] sm:$0xf]
          %v3990 = vld [vmem:[%s5 + $0x218] sm:$0xf]
          %v3991 = vld [vmem:[%s5 + $0x21c] sm:$0xf]
          %v3992 = vld [vmem:[%s5 + $0x220] sm:$0xf]
          %v3993 = vld [vmem:[%s5 + $0x224] sm:$0xf]
          %v3994 = vld [vmem:[%s5 + $0x228] sm:$0xf]
          %v3995 = vld [vmem:[%s5 + $0x22c] sm:$0xf]
          %v3996 = vld [vmem:[%s5 + $0x230] sm:$0xf]
          %v3997 = vld [vmem:[%s5 + $0x234] sm:$0xf]
          %v3998 = vld [vmem:[%s5 + $0x238] sm:$0xf]
          %v3999 = vld [vmem:[%s5 + $0x23c] sm:$0xf]
          %v4000 = vld [vmem:[%s5 + $0x240] sm:$0xf]
          %v4001 = vld [vmem:[%s5 + $0x244] sm:$0xf]
          %v4002 = vld [vmem:[%s5 + $0x248] sm:$0xf]
          %v4003 = vld [vmem:[%s5 + $0x24c] sm:$0xf]
          %v4004 = vld [vmem:[%s5 + $0x250] sm:$0xf]
          %v4005 = vld [vmem:[%s5 + $0x254] sm:$0xf]
          %v4006 = vld [vmem:[%s5 + $0x258] sm:$0xf]
          %v4007 = vld [vmem:[%s5 + $0x25c] sm:$0xf]
          %v4008 = vld [vmem:[%s5 + $0x260] sm:$0xf]
          %v4009 = vld [vmem:[%s5 + $0x264] sm:$0xf]
          %v4010 = vld [vmem:[%s5 + $0x268] sm:$0xf]
          %v4011 = vld [vmem:[%s5 + $0x26c] sm:$0xf]
          %v4012 = vld [vmem:[%s5 + $0x270] sm:$0xf]
          %v4013 = vld [vmem:[%s5 + $0x274] sm:$0xf]
          %v4014 = vld [vmem:[%s5 + $0x278] sm:$0xf]
          %v4015 = vld [vmem:[%s5 + $0x27c] sm:$0xf]
          %v4016 = vld [vmem:[%s6] sm:$0x1]
          %v4177 = vunpack.c.l.b16 %v3856
          %v4178 = vunpack.c.l.b16 %v3857
          %v4179 = vunpack.c.l.b16 %v3858
          %v4180 = vunpack.c.l.b16 %v3859
          %v4181 = vunpack.c.l.b16 %v3860
          %v4182 = vunpack.c.l.b16 %v3861
          %v4183 = vunpack.c.l.b16 %v3862
          %v4184 = vunpack.c.l.b16 %v3863
          %v4185 = vunpack.c.l.b16 %v3864
          %v4186 = vunpack.c.l.b16 %v3865
          %v4187 = vunpack.c.l.b16 %v3866
          %v4188 = vunpack.c.l.b16 %v3867
          %v4189 = vunpack.c.l.b16 %v3868
          %v4190 = vunpack.c.l.b16 %v3869
          %v4191 = vunpack.c.l.b16 %v3870
          %v4192 = vunpack.c.l.b16 %v3871
          %v4193 = vunpack.c.l.b16 %v3872
          %v4194 = vunpack.c.l.b16 %v3873
          %v4195 = vunpack.c.l.b16 %v3874
          %v4196 = vunpack.c.l.b16 %v3875
          %v4197 = vunpack.c.l.b16 %v3876
          %v4198 = vunpack.c.l.b16 %v3877
          %v4199 = vunpack.c.l.b16 %v3878
          %v4200 = vunpack.c.l.b16 %v3879
          %v4201 = vunpack.c.l.b16 %v3880
          %v4202 = vunpack.c.l.b16 %v3881
          %v4203 = vunpack.c.l.b16 %v3882
          %v4204 = vunpack.c.l.b16 %v3883
          %v4205 = vunpack.c.l.b16 %v3884
          %v4206 = vunpack.c.l.b16 %v3885
          %v4207 = vunpack.c.l.b16 %v3886
          %v4208 = vunpack.c.l.b16 %v3887
          %v4209 = vunpack.c.l.b16 %v3888
          %v4210 = vunpack.c.l.b16 %v3889
          %v4211 = vunpack.c.l.b16 %v3890
          %v4212 = vunpack.c.l.b16 %v3891
          %v4213 = vunpack.c.l.b16 %v3892
          %v4214 = vunpack.c.l.b16 %v3893
          %v4215 = vunpack.c.l.b16 %v3894
          %v4216 = vunpack.c.l.b16 %v3895
          %v4217 = vunpack.c.l.b16 %v3896
          %v4218 = vunpack.c.l.b16 %v3897
          %v4219 = vunpack.c.l.b16 %v3898
          %v4220 = vunpack.c.l.b16 %v3899
          %v4221 = vunpack.c.l.b16 %v3900
          %v4222 = vunpack.c.l.b16 %v3901
          %v4223 = vunpack.c.l.b16 %v3902
          %v4224 = vunpack.c.l.b16 %v3903
          %v4225 = vunpack.c.l.b16 %v3904
          %v4226 = vunpack.c.l.b16 %v3905
          %v4227 = vunpack.c.l.b16 %v3906
          %v4228 = vunpack.c.l.b16 %v3907
          %v4229 = vunpack.c.l.b16 %v3908
          %v4230 = vunpack.c.l.b16 %v3909
          %v4231 = vunpack.c.l.b16 %v3910
          %v4232 = vunpack.c.l.b16 %v3911
          %v4233 = vunpack.c.l.b16 %v3912
          %v4234 = vunpack.c.l.b16 %v3913
          %v4235 = vunpack.c.l.b16 %v3914
          %v4236 = vunpack.c.l.b16 %v3915
          %v4237 = vunpack.c.l.b16 %v3916
          %v4238 = vunpack.c.l.b16 %v3917
          %v4239 = vunpack.c.l.b16 %v3918
          %v4240 = vunpack.c.l.b16 %v3919
          %v4241 = vunpack.c.l.b16 %v3920
          %v4242 = vunpack.c.l.b16 %v3921
          %v4243 = vunpack.c.l.b16 %v3922
          %v4244 = vunpack.c.l.b16 %v3923
          %v4245 = vunpack.c.l.b16 %v3924
          %v4246 = vunpack.c.l.b16 %v3925
          %v4247 = vunpack.c.l.b16 %v3926
          %v4248 = vunpack.c.l.b16 %v3927
          %v4249 = vunpack.c.l.b16 %v3928
          %v4250 = vunpack.c.l.b16 %v3929
          %v4251 = vunpack.c.l.b16 %v3930
          %v4252 = vunpack.c.l.b16 %v3931
          %v4253 = vunpack.c.l.b16 %v3932
          %v4254 = vunpack.c.l.b16 %v3933
          %v4255 = vunpack.c.l.b16 %v3934
          %v4256 = vunpack.c.l.b16 %v3935
          %v4257 = vunpack.c.l.b16 %v3936
          %v4258 = vunpack.c.l.b16 %v3937
          %v4259 = vunpack.c.l.b16 %v3938
          %v4260 = vunpack.c.l.b16 %v3939
          %v4261 = vunpack.c.l.b16 %v3940
          %v4262 = vunpack.c.l.b16 %v3941
          %v4263 = vunpack.c.l.b16 %v3942
          %v4264 = vunpack.c.l.b16 %v3943
          %v4265 = vunpack.c.l.b16 %v3944
          %v4266 = vunpack.c.l.b16 %v3945
          %v4267 = vunpack.c.l.b16 %v3946
          %v4268 = vunpack.c.l.b16 %v3947
          %v4269 = vunpack.c.l.b16 %v3948
          %v4270 = vunpack.c.l.b16 %v3949
          %v4271 = vunpack.c.l.b16 %v3950
          %v4272 = vunpack.c.l.b16 %v3951
          %v4273 = vunpack.c.l.b16 %v3952
          %v4274 = vunpack.c.l.b16 %v3953
          %v4275 = vunpack.c.l.b16 %v3954
          %v4276 = vunpack.c.l.b16 %v3955
          %v4277 = vunpack.c.l.b16 %v3956
          %v4278 = vunpack.c.l.b16 %v3957
          %v4279 = vunpack.c.l.b16 %v3958
          %v4280 = vunpack.c.l.b16 %v3959
          %v4281 = vunpack.c.l.b16 %v3960
          %v4282 = vunpack.c.l.b16 %v3961
          %v4283 = vunpack.c.l.b16 %v3962
          %v4284 = vunpack.c.l.b16 %v3963
          %v4285 = vunpack.c.l.b16 %v3964
          %v4286 = vunpack.c.l.b16 %v3965
          %v4287 = vunpack.c.l.b16 %v3966
          %v4288 = vunpack.c.l.b16 %v3967
          %v4289 = vunpack.c.l.b16 %v3968
          %v4290 = vunpack.c.l.b16 %v3969
          %v4291 = vunpack.c.l.b16 %v3970
          %v4292 = vunpack.c.l.b16 %v3971
          %v4293 = vunpack.c.l.b16 %v3972
          %v4294 = vunpack.c.l.b16 %v3973
          %v4295 = vunpack.c.l.b16 %v3974
          %v4296 = vunpack.c.l.b16 %v3975
          %v4297 = vunpack.c.l.b16 %v3976
          %v4298 = vunpack.c.l.b16 %v3977
          %v4299 = vunpack.c.l.b16 %v3978
          %v4300 = vunpack.c.l.b16 %v3979
          %v4301 = vunpack.c.l.b16 %v3980
          %v4302 = vunpack.c.l.b16 %v3981
          %v4303 = vunpack.c.l.b16 %v3982
          %v4304 = vunpack.c.l.b16 %v3983
          %v4305 = vunpack.c.l.b16 %v3984
          %v4306 = vunpack.c.l.b16 %v3985
          %v4307 = vunpack.c.l.b16 %v3986
          %v4308 = vunpack.c.l.b16 %v3987
          %v4309 = vunpack.c.l.b16 %v3988
          %v4310 = vunpack.c.l.b16 %v3989
          %v4311 = vunpack.c.l.b16 %v3990
          %v4312 = vunpack.c.l.b16 %v3991
          %v4313 = vunpack.c.l.b16 %v3992
          %v4314 = vunpack.c.l.b16 %v3993
          %v4315 = vunpack.c.l.b16 %v3994
          %v4316 = vunpack.c.l.b16 %v3995
          %v4317 = vunpack.c.l.b16 %v3996
          %v4318 = vunpack.c.l.b16 %v3997
          %v4319 = vunpack.c.l.b16 %v3998
          %v4320 = vunpack.c.l.b16 %v3999
          %v4321 = vunpack.c.l.b16 %v4000
          %v4322 = vunpack.c.l.b16 %v4001
          %v4323 = vunpack.c.l.b16 %v4002
          %v4324 = vunpack.c.l.b16 %v4003
          %v4325 = vunpack.c.l.b16 %v4004
          %v4326 = vunpack.c.l.b16 %v4005
          %v4327 = vunpack.c.l.b16 %v4006
          %v4328 = vunpack.c.l.b16 %v4007
          %v4329 = vunpack.c.l.b16 %v4008
          %v4330 = vunpack.c.l.b16 %v4009
          %v4331 = vunpack.c.l.b16 %v4010
          %v4332 = vunpack.c.l.b16 %v4011
          %v4333 = vunpack.c.l.b16 %v4012
          %v4334 = vunpack.c.l.b16 %v4013
          %v4335 = vunpack.c.l.b16 %v4014
          %v4336 = vunpack.c.l.b16 %v4015
          %v4337 = vpack.c.b16 %v4178, %v4177
          %v4338 = vpack.c.b16 %v4180, %v4179
          %v4339 = vpack.c.b16 %v4182, %v4181
          %v4340 = vpack.c.b16 %v4184, %v4183
          %v4341 = vpack.c.b16 %v4186, %v4185
          %v4342 = vpack.c.b16 %v4188, %v4187
          %v4343 = vpack.c.b16 %v4190, %v4189
          %v4344 = vpack.c.b16 %v4192, %v4191
          %v4345 = vpack.c.b16 %v4194, %v4193
          %v4346 = vpack.c.b16 %v4196, %v4195
          %v4347 = vpack.c.b16 %v4198, %v4197
          %v4348 = vpack.c.b16 %v4200, %v4199
          %v4349 = vpack.c.b16 %v4202, %v4201
          %v4350 = vpack.c.b16 %v4204, %v4203
          %v4351 = vpack.c.b16 %v4206, %v4205
          %v4352 = vpack.c.b16 %v4208, %v4207
          %v4353 = vpack.c.b16 %v4210, %v4209
          %v4354 = vpack.c.b16 %v4212, %v4211
          %v4355 = vpack.c.b16 %v4214, %v4213
          %v4356 = vpack.c.b16 %v4216, %v4215
          %v4357 = vpack.c.b16 %v4218, %v4217
          %v4358 = vpack.c.b16 %v4220, %v4219
          %v4359 = vpack.c.b16 %v4222, %v4221
          %v4360 = vpack.c.b16 %v4224, %v4223
          %v4361 = vpack.c.b16 %v4226, %v4225
          %v4362 = vpack.c.b16 %v4228, %v4227
          %v4363 = vpack.c.b16 %v4230, %v4229
          %v4364 = vpack.c.b16 %v4232, %v4231
          %v4365 = vpack.c.b16 %v4234, %v4233
          %v4366 = vpack.c.b16 %v4236, %v4235
          %v4367 = vpack.c.b16 %v4238, %v4237
          %v4368 = vpack.c.b16 %v4240, %v4239
          %v4369 = vpack.c.b16 %v4242, %v4241
          %v4370 = vpack.c.b16 %v4244, %v4243
          %v4371 = vpack.c.b16 %v4246, %v4245
          %v4372 = vpack.c.b16 %v4248, %v4247
          %v4373 = vpack.c.b16 %v4250, %v4249
          %v4374 = vpack.c.b16 %v4252, %v4251
          %v4375 = vpack.c.b16 %v4254, %v4253
          %v4376 = vpack.c.b16 %v4256, %v4255
          %v4377 = vpack.c.b16 %v4258, %v4257
          %v4378 = vpack.c.b16 %v4260, %v4259
          %v4379 = vpack.c.b16 %v4262, %v4261
          %v4380 = vpack.c.b16 %v4264, %v4263
          %v4381 = vpack.c.b16 %v4266, %v4265
          %v4382 = vpack.c.b16 %v4268, %v4267
          %v4383 = vpack.c.b16 %v4270, %v4269
          %v4384 = vpack.c.b16 %v4272, %v4271
          %v4385 = vpack.c.b16 %v4274, %v4273
          %v4386 = vpack.c.b16 %v4276, %v4275
          %v4387 = vpack.c.b16 %v4278, %v4277
          %v4388 = vpack.c.b16 %v4280, %v4279
          %v4389 = vpack.c.b16 %v4282, %v4281
          %v4390 = vpack.c.b16 %v4284, %v4283
          %v4391 = vpack.c.b16 %v4286, %v4285
          %v4392 = vpack.c.b16 %v4288, %v4287
          %v4393 = vpack.c.b16 %v4290, %v4289
          %v4394 = vpack.c.b16 %v4292, %v4291
          %v4395 = vpack.c.b16 %v4294, %v4293
          %v4396 = vpack.c.b16 %v4296, %v4295
          %v4397 = vpack.c.b16 %v4298, %v4297
          %v4398 = vpack.c.b16 %v4300, %v4299
          %v4399 = vpack.c.b16 %v4302, %v4301
          %v4400 = vpack.c.b16 %v4304, %v4303
          %v4401 = vpack.c.b16 %v4306, %v4305
          %v4402 = vpack.c.b16 %v4308, %v4307
          %v4403 = vpack.c.b16 %v4310, %v4309
          %v4404 = vpack.c.b16 %v4312, %v4311
          %v4405 = vpack.c.b16 %v4314, %v4313
          %v4406 = vpack.c.b16 %v4316, %v4315
          %v4407 = vpack.c.b16 %v4318, %v4317
          %v4408 = vpack.c.b16 %v4320, %v4319
          %v4409 = vpack.c.b16 %v4322, %v4321
          %v4410 = vpack.c.b16 %v4324, %v4323
          %v4411 = vpack.c.b16 %v4326, %v4325
          %v4412 = vpack.c.b16 %v4328, %v4327
          %v4413 = vpack.c.b16 %v4330, %v4329
          %v4414 = vpack.c.b16 %v4332, %v4331
          %v4415 = vpack.c.b16 %v4334, %v4333
          %v4416 = vpack.c.b16 %v4336, %v4335
          %4497 = vmatprep.subr.bf16.mxu0 0
          %4498 = vmatpush1.bf16.msra.mxu0 %v4337
          %4499 = vmatprep.subr.bf16.mxu0 0
          %4500 = vmatpush1.bf16.msra.mxu0 %v4338
          %4501 = vmatprep.subr.bf16.mxu0 0
          %4502 = vmatpush1.bf16.msra.mxu0 %v4339
          %4503 = vmatprep.subr.bf16.mxu0 0
          %4504 = vmatpush1.bf16.msra.mxu0 %v4340
          %4505 = vmatprep.subr.bf16.mxu0 0
          %4506 = vmatpush1.bf16.msra.mxu0 %v4341
          %4507 = vmatprep.subr.bf16.mxu0 0
          %4508 = vmatpush1.bf16.msra.mxu0 %v4342
          %4509 = vmatprep.subr.bf16.mxu0 0
          %4510 = vmatpush1.bf16.msra.mxu0 %v4343
          %4511 = vmatprep.subr.bf16.mxu0 0
          %4512 = vmatpush1.bf16.msra.mxu0 %v4344
          %4513 = vmatprep.subr.bf16.mxu0 0
          %4514 = vmatpush1.bf16.msra.mxu0 %v4345
          %4515 = vmatprep.subr.bf16.mxu0 0
          %4516 = vmatpush1.bf16.msra.mxu0 %v4346
          %4517 = vmatprep.subr.bf16.mxu0 0
          %4518 = vmatpush1.bf16.msra.mxu0 %v4347
          %4519 = vmatprep.subr.bf16.mxu0 0
          %4520 = vmatpush1.bf16.msra.mxu0 %v4348
          %4521 = vmatprep.subr.bf16.mxu0 0
          %4522 = vmatpush1.bf16.msra.mxu0 %v4349
          %4523 = vmatprep.subr.bf16.mxu0 0
          %4524 = vmatpush1.bf16.msra.mxu0 %v4350
          %4525 = vmatprep.subr.bf16.mxu0 0
          %4526 = vmatpush1.bf16.msra.mxu0 %v4351
          %4527 = vmatprep.subr.bf16.mxu0 0
          %4528 = vmatpush1.bf16.msra.mxu0 %v4352
          %4529 = vmatprep.mubr.bf16.mxu0 %v3847
          %4530 = vmatmul.mubr.bf16.gmra.mrb[0].mxu0 %v3846
          %v4531 = vpop.f32.mrb[0].mxu0
          %v4532 = vadd.f32 %v4016, %v4531
          %v4533 = vpop.f32.mrb[0].mxu0
          %v4534 = vpop.f32.mrb[0].mxu0
          %v4535 = vpop.f32.mrb[0].mxu0
          %4536 = vdwg.mxu0
          %4537 = vmatprep.subr.bf16.mxu0 0
          %4538 = vmatpush1.bf16.msra.mxu0 %v4353
          %4539 = vmatprep.subr.bf16.mxu0 0
          %4540 = vmatpush1.bf16.msra.mxu0 %v4354
          %4541 = vmatprep.subr.bf16.mxu0 0
          %4542 = vmatpush1.bf16.msra.mxu0 %v4355
          %4543 = vmatprep.subr.bf16.mxu0 0
          %4544 = vmatpush1.bf16.msra.mxu0 %v4356
          %4545 = vmatprep.subr.bf16.mxu0 0
          %4546 = vmatpush1.bf16.msra.mxu0 %v4357
          %4547 = vmatprep.subr.bf16.mxu0 0
          %4548 = vmatpush1.bf16.msra.mxu0 %v4358
          %4549 = vmatprep.subr.bf16.mxu0 0
          %4550 = vmatpush1.bf16.msra.mxu0 %v4359
          %4551 = vmatprep.subr.bf16.mxu0 0
          %4552 = vmatpush1.bf16.msra.mxu0 %v4360
          %4553 = vmatprep.subr.bf16.mxu0 0
          %4554 = vmatpush1.bf16.msra.mxu0 %v4361
          %4555 = vmatprep.subr.bf16.mxu0 0
          %4556 = vmatpush1.bf16.msra.mxu0 %v4362
          %4557 = vmatprep.subr.bf16.mxu0 0
          %4558 = vmatpush1.bf16.msra.mxu0 %v4363
          %4559 = vmatprep.subr.bf16.mxu0 0
          %4560 = vmatpush1.bf16.msra.mxu0 %v4364
          %4561 = vmatprep.subr.bf16.mxu0 0
          %4562 = vmatpush1.bf16.msra.mxu0 %v4365
          %4563 = vmatprep.subr.bf16.mxu0 0
          %4564 = vmatpush1.bf16.msra.mxu0 %v4366
          %4565 = vmatprep.subr.bf16.mxu0 0
          %4566 = vmatpush1.bf16.msra.mxu0 %v4367
          %4567 = vmatprep.subr.bf16.mxu0 0
          %4568 = vmatpush1.bf16.msra.mxu0 %v4368
          %4569 = vmatprep.mubr.bf16.mxu0 %v3849
          %4570 = vmatmul.mubr.bf16.gmra.mrb[0].mxu0 %v3848
          %v4571 = vpop.f32.mrb[0].mxu0
          %v4572 = vadd.f32 %v4532, %v4571
          %v4573 = vpop.f32.mrb[0].mxu0
          %v4574 = vpop.f32.mrb[0].mxu0
          %v4575 = vpop.f32.mrb[0].mxu0
          %4576 = vdwg.mxu0
          %4577 = vmatprep.subr.bf16.mxu0 0
          %4578 = vmatpush1.bf16.msra.mxu0 %v4369
          %4579 = vmatprep.subr.bf16.mxu0 0
          %4580 = vmatpush1.bf16.msra.mxu0 %v4370
          %4581 = vmatprep.subr.bf16.mxu0 0
          %4582 = vmatpush1.bf16.msra.mxu0 %v4371
          %4583 = vmatprep.subr.bf16.mxu0 0
          %4584 = vmatpush1.bf16.msra.mxu0 %v4372
          %4585 = vmatprep.subr.bf16.mxu0 0
          %4586 = vmatpush1.bf16.msra.mxu0 %v4373
          %4587 = vmatprep.subr.bf16.mxu0 0
          %4588 = vmatpush1.bf16.msra.mxu0 %v4374
          %4589 = vmatprep.subr.bf16.mxu0 0
          %4590 = vmatpush1.bf16.msra.mxu0 %v4375
          %4591 = vmatprep.subr.bf16.mxu0 0
          %4592 = vmatpush1.bf16.msra.mxu0 %v4376
          %4593 = vmatprep.subr.bf16.mxu0 0
          %4594 = vmatpush1.bf16.msra.mxu0 %v4377
          %4595 = vmatprep.subr.bf16.mxu0 0
          %4596 = vmatpush1.bf16.msra.mxu0 %v4378
          %4597 = vmatprep.subr.bf16.mxu0 0
          %4598 = vmatpush1.bf16.msra.mxu0 %v4379
          %4599 = vmatprep.subr.bf16.mxu0 0
          %4600 = vmatpush1.bf16.msra.mxu0 %v4380
          %4601 = vmatprep.subr.bf16.mxu0 0
          %4602 = vmatpush1.bf16.msra.mxu0 %v4381
          %4603 = vmatprep.subr.bf16.mxu0 0
          %4604 = vmatpush1.bf16.msra.mxu0 %v4382
          %4605 = vmatprep.subr.bf16.mxu0 0
          %4606 = vmatpush1.bf16.msra.mxu0 %v4383
          %4607 = vmatprep.subr.bf16.mxu0 0
          %4608 = vmatpush1.bf16.msra.mxu0 %v4384
          %4609 = vmatprep.mubr.bf16.mxu0 %v3851
          %4610 = vmatmul.mubr.bf16.gmra.mrb[0].mxu0 %v3850
          %v4611 = vpop.f32.mrb[0].mxu0
          %v4612 = vadd.f32 %v4572, %v4611
          %v4613 = vpop.f32.mrb[0].mxu0
          %v4614 = vpop.f32.mrb[0].mxu0
          %v4615 = vpop.f32.mrb[0].mxu0
          %4616 = vdwg.mxu0
          %4617 = vmatprep.subr.bf16.mxu0 0
          %4618 = vmatpush1.bf16.msra.mxu0 %v4385
          %4619 = vmatprep.subr.bf16.mxu0 0
          %4620 = vmatpush1.bf16.msra.mxu0 %v4386
          %4621 = vmatprep.subr.bf16.mxu0 0
          %4622 = vmatpush1.bf16.msra.mxu0 %v4387
          %4623 = vmatprep.subr.bf16.mxu0 0
          %4624 = vmatpush1.bf16.msra.mxu0 %v4388
          %4625 = vmatprep.subr.bf16.mxu0 0
          %4626 = vmatpush1.bf16.msra.mxu0 %v4389
          %4627 = vmatprep.subr.bf16.mxu0 0
          %4628 = vmatpush1.bf16.msra.mxu0 %v4390
          %4629 = vmatprep.subr.bf16.mxu0 0
          %4630 = vmatpush1.bf16.msra.mxu0 %v4391
          %4631 = vmatprep.subr.bf16.mxu0 0
          %4632 = vmatpush1.bf16.msra.mxu0 %v4392
          %4633 = vmatprep.subr.bf16.mxu0 0
          %4634 = vmatpush1.bf16.msra.mxu0 %v4393
          %4635 = vmatprep.subr.bf16.mxu0 0
          %4636 = vmatpush1.bf16.msra.mxu0 %v4394
          %4637 = vmatprep.subr.bf16.mxu0 0
          %4638 = vmatpush1.bf16.msra.mxu0 %v4395
          %4639 = vmatprep.subr.bf16.mxu0 0
          %4640 = vmatpush1.bf16.msra.mxu0 %v4396
          %4641 = vmatprep.subr.bf16.mxu0 0
          %4642 = vmatpush1.bf16.msra.mxu0 %v4397
          %4643 = vmatprep.subr.bf16.mxu0 0
          %4644 = vmatpush1.bf16.msra.mxu0 %v4398
          %4645 = vmatprep.subr.bf16.mxu0 0
          %4646 = vmatpush1.bf16.msra.mxu0 %v4399
          %4647 = vmatprep.subr.bf16.mxu0 0
          %4648 = vmatpush1.bf16.msra.mxu0 %v4400
          %4649 = vmatprep.mubr.bf16.mxu0 %v3853
          %4650 = vmatmul.mubr.bf16.gmra.mrb[0].mxu0 %v3852
          %v4651 = vpop.f32.mrb[0].mxu0
          %v4652 = vadd.f32 %v4612, %v4651
          %v4653 = vpop.f32.mrb[0].mxu0
          %v4654 = vpop.f32.mrb[0].mxu0
          %v4655 = vpop.f32.mrb[0].mxu0
          %4656 = vdwg.mxu0
          %4657 = vmatprep.subr.bf16.mxu0 0
          %4658 = vmatpush1.bf16.msra.mxu0 %v4401
          %4659 = vmatprep.subr.bf16.mxu0 0
          %4660 = vmatpush1.bf16.msra.mxu0 %v4402
          %4661 = vmatprep.subr.bf16.mxu0 0
          %4662 = vmatpush1.bf16.msra.mxu0 %v4403
          %4663 = vmatprep.subr.bf16.mxu0 0
          %4664 = vmatpush1.bf16.msra.mxu0 %v4404
          %4665 = vmatprep.subr.bf16.mxu0 0
          %4666 = vmatpush1.bf16.msra.mxu0 %v4405
          %4667 = vmatprep.subr.bf16.mxu0 0
          %4668 = vmatpush1.bf16.msra.mxu0 %v4406
          %4669 = vmatprep.subr.bf16.mxu0 0
          %4670 = vmatpush1.bf16.msra.mxu0 %v4407
          %4671 = vmatprep.subr.bf16.mxu0 0
          %4672 = vmatpush1.bf16.msra.mxu0 %v4408
          %4673 = vmatprep.subr.bf16.mxu0 0
          %4674 = vmatpush1.bf16.msra.mxu0 %v4409
          %4675 = vmatprep.subr.bf16.mxu0 0
          %4676 = vmatpush1.bf16.msra.mxu0 %v4410
          %4677 = vmatprep.subr.bf16.mxu0 0
          %4678 = vmatpush1.bf16.msra.mxu0 %v4411
          %4679 = vmatprep.subr.bf16.mxu0 0
          %4680 = vmatpush1.bf16.msra.mxu0 %v4412
          %4681 = vmatprep.subr.bf16.mxu0 0
          %4682 = vmatpush1.bf16.msra.mxu0 %v4413
          %4683 = vmatprep.subr.bf16.mxu0 0
          %4684 = vmatpush1.bf16.msra.mxu0 %v4414
          %4685 = vmatprep.subr.bf16.mxu0 0
          %4686 = vmatpush1.bf16.msra.mxu0 %v4415
          %4687 = vmatprep.subr.bf16.mxu0 0
          %4688 = vmatpush1.bf16.msra.mxu0 %v4416
          %4689 = vmatprep.mubr.bf16.mxu0 %v3855
          %4690 = vmatmul.mubr.bf16.gmra.mrb[0].mxu0 %v3854
          %v4691 = vpop.f32.mrb[0].mxu0
          %v4692 = vadd.f32 %v4652, %v4691
          %v4693 = vpop.f32.mrb[0].mxu0
          %v4694 = vpop.f32.mrb[0].mxu0
          %v4695 = vpop.f32.mrb[0].mxu0
          %4696 = vdwg.mxu0
          %4697 = vst [vmem:[%s293] sm:$0x1] %v4692
        $region56: #{simple_card_classifier_forward.1} parent=47 // pred_fallthru
          _
        %s4698 = sand.u32 %s195, 1
        %s4699 = scalar_lea.sflag [#allocation4], %s4698
        %s4700 = sand.u32 %s195, 1
        %s4701 = scalar_lea.vmem [#allocation3], %s4700
        // Predicated region
        $region57: #{simple_card_classifier_forward.1} parent=47 // pred_check
          %p4702 = pneg %p205
        $region58: #{simple_card_classifier_forward.1} parent=47 // pred_check_branch
          %4704 = sbr.rel (%p4702) target = $region60
        $region59: #{simple_card_classifier_forward.1} parent=47 // pred_region
          %s4706 = ssub.s32 16, 16
          %4707 = vsyncadd %s4699, %s4706
          %s4708 = smul.addr %s25, 16
          %s4709 = scalar_lea.hbm %s7, %s4708
          %s4711 = sshll.u32 %s4701, 4
          %s4712 = int_to_ptr.vmem [resolvable:$true] %s4711
          %4714 = dma.vmem_to_hbm [thread:$0]  %s4712, 16, %s4709, %s4699
        $region60: #{simple_card_classifier_forward.1} parent=47 // pred_fallthru
          _
      $region48: #{simple_card_classifier_forward.1} parent=5 // pred_fallthru
        _
      %p4715 = scmp.le.s32.totalorder 2, %s16
      // Predicated region
      $region61: #{simple_card_classifier_forward.1} parent=5 // pred_check
        %p4716 = pneg %p4715
      $region62: #{simple_card_classifier_forward.1} parent=5 // pred_check_branch
        %4718 = sbr.rel (%p4716) target = $region64
      $region63: #{simple_card_classifier_forward.1} parent=5 // pred_region
        %s4719 = ssub.s32 %s16, 2
        // Predicated region
        $region65: #{simple_card_classifier_forward.1} parent=63 // pred_check
          %p4720 = pneg %p211
        $region66: #{simple_card_classifier_forward.1} parent=63 // pred_check_branch
          %4722 = sbr.rel (%p4720) target = $region68
        $region67: #{simple_card_classifier_forward.1} parent=63 // pred_region
          %s4723 = sand.u32 %s196, 1
          %s4724 = scalar_lea.sflag [#allocation4], %s4723
          %s4725 = sand.u32 %s196, 1
          %s4726 = scalar_lea.vmem [#allocation3], %s4725
          %4727 = dma.done %s4724, 16
        $region68: #{simple_card_classifier_forward.1} parent=63 // pred_fallthru
          _
      $region64: #{simple_card_classifier_forward.1} parent=5 // pred_fallthru
        _
    $region6: #{simple_card_classifier_forward.1} parent=1 // loop_footer
      %s20 = sadd.s32 1, %s16
    $region7: #{simple_card_classifier_forward.1} parent=1 // loop_footer_branch
      %15 = sbr.rel target = $region3
    $region8: #{simple_card_classifier_forward.1} parent=1 // loop_exit
      _
    %4728 = vsyncpa [#allocation4], 1
    %s4729 = scalar_lea.sflag [#allocation4], 1
    %4730 = vsyncpa %s4729, 1

</llo_original>
